<compile_context>
chip_gen: v6e
topology: v6e:2x2x1
jax: 0.10.0
libtpu: 0.0.40
codegen_flags: <defaults>
</compile_context>

<pallas_src>
import functools
import inspect
import math

import jax
import jax.numpy as jnp
from jax.experimental import pallas as pl
from jax.experimental.pallas import tpu as pltpu

LN_EPS = 1e-12                     # HF BertConfig default layer_norm_eps
_SQRT_HALF = 1.0 / math.sqrt(2.0)
_VMEM_LIMIT_BYTES = 64 * 1024 * 1024   # fits every generation (== v7x physical VMEM)


# -------------------------- constant-operand BlockSpec helper --------------------------

def _supports_pipeline_mode():
    if not hasattr(pl, "Buffered"):
        return False
    try:
        return "pipeline_mode" in inspect.signature(pl.BlockSpec).parameters
    except (TypeError, ValueError):
        return False


_HAS_PIPELINE_MODE = _supports_pipeline_mode()
# Flipped off (once) if the TPU lowering rejects Buffered(1); bert_layer_ca_forward retries.
_SINGLE_BUFFER_OK = [True]


def _const_spec(shape, single_buffer):
    """Spec for an operand whose block index never changes across the grid (weights, biases,
    LayerNorm params).  Single-buffer it when supported: default double-buffering would keep
    two VMEM copies of e.g. a (Hd, 3Hd) weight for zero benefit."""
    index_map = lambda *_: (0,) * len(shape)
    if single_buffer and _HAS_PIPELINE_MODE:
        return pl.BlockSpec(shape, index_map, pipeline_mode=pl.Buffered(1))
    return pl.BlockSpec(shape, index_map)


# -------------------------- in-kernel helpers --------------------------

def _layernorm_f32(y, gamma, beta):
    """LayerNorm over the last axis in f32; gamma/beta are (1, Hd) f32."""
    mu = jnp.mean(y, axis=-1, keepdims=True)
    var = jnp.mean((y - mu) ** 2, axis=-1, keepdims=True)
    return (y - mu) * jax.lax.rsqrt(var + LN_EPS) * gamma + beta


def _softmax_lastaxis_f32(s):
    """Softmax over the last axis in f32. EUP approx reciprocal (free slot) + 1 Newton step."""
    s = s - jnp.max(s, axis=-1, keepdims=True)
    p = jnp.exp(s)
    denom = jnp.sum(p, axis=-1, keepdims=True)
    inv = pl.reciprocal(denom, approx=True)
    inv = inv * (2.0 - denom * inv)          # Newton step -> ~f32-exact on a tiny (H,S,1) vector
    return p * inv


def _mha_packed(q2, k2, v2, mask_add, num_heads, compute_dtype):
    """Multi-head attention with heads packed on the lane axis at the interface.
    q2:(S,Hd), k2/v2:(Sk,Hd) in compute dtype (1/sqrt(D) already folded into q2),
    mask_add:(1,Sk) additive f32.  Returns (S, Hd) f32 context with heads re-packed.
    Heads are handled with two batched einsums over a leading head axis (one relayout per
    tensor) instead of per-head lane slicing + an H-way lane-axis concatenate."""
    sq, hd = q2.shape
    sk = k2.shape[0]
    d = hd // num_heads
    q = jnp.swapaxes(q2.reshape(sq, num_heads, d), 0, 1)    # (H, S,  D)
    k = jnp.swapaxes(k2.reshape(sk, num_heads, d), 0, 1)    # (H, Sk, D)
    v = jnp.swapaxes(v2.reshape(sk, num_heads, d), 0, 1)    # (H, Sk, D)
    s = jnp.einsum("hqd,hkd->hqk", q, k,
                   preferred_element_type=jnp.float32)       # (H, S, Sk), f32 accumulation
    s = s + mask_add[None]                                   # (1,1,Sk) broadcast
    p = _softmax_lastaxis_f32(s).astype(compute_dtype)
    ctx = jnp.einsum("hqk,hkd->hqd", p, v,
                     preferred_element_type=jnp.float32)     # (H, S, D)
    return jnp.swapaxes(ctx, 0, 1).reshape(sq, hd)           # (S, Hd) f32


# -------------------------- Pallas kernels --------------------------

def _self_attn_block_kernel(x_ref, wqkv_ref, bqkv_ref, wo_ref, bo_ref,
                            g_ref, b_ref, mask_ref, o_ref, *, num_heads):
    """Fused BertAttention: fused QKV proj -> MHA -> output proj -> +residual -> LayerNorm.
    One batch element per grid step; heads stay packed on the lane axis at the matmul interfaces."""
    x = x_ref[0]                                                       # (S, Hd) compute dtype
    cd = x.dtype
    hd = x.shape[-1]

    qkv = (jnp.dot(x, wqkv_ref[...], preferred_element_type=jnp.float32)
           + bqkv_ref[...]).astype(cd)                                 # (S, 3Hd); scale folded in q
    m = mask_ref[0]                                                    # (1, Sk) additive, f32

    ctx = _mha_packed(qkv[:, :hd], qkv[:, hd:2 * hd], qkv[:, 2 * hd:],
                      m, num_heads, cd).astype(cd)                     # (S, Hd)

    y = jnp.dot(ctx, wo_ref[...], preferred_element_type=jnp.float32) + bo_ref[...]
    y = y + x.astype(jnp.float32)                                      # residual
    o_ref[0] = _layernorm_f32(y, g_ref[...], b_ref[...]).astype(o_ref.dtype)


def _cross_attn_block_kernel(x_ref, inj_ref, wq_ref, bq_ref, wkv_ref, bkv_ref,
                             wo_ref, bo_ref, g_ref, b_ref, mask_ref,
                             o_ref, present_ref, *, num_heads):
    """Fused InjectCrossAttention (absolute positions): Q proj + fused KV proj + MHA
    + output proj + residual + LayerNorm, plus present = attn_out + cross_out."""
    x = x_ref[0]                                                       # (S, Hd)  self-attn output
    inj = inj_ref[0]                                                   # (Sk, KV) injected states
    cd = x.dtype
    hd = x.shape[-1]

    q = (jnp.dot(x, wq_ref[...], preferred_element_type=jnp.float32)
         + bq_ref[...]).astype(cd)                                     # scale folded into wq/bq
    kv = (jnp.dot(inj, wkv_ref[...], preferred_element_type=jnp.float32)
          + bkv_ref[...]).astype(cd)                                   # (Sk, 2Hd)
    m = mask_ref[0]                                                    # (1, Sk) additive, f32

    ctx = _mha_packed(q, kv[:, :hd], kv[:, hd:], m, num_heads, cd).astype(cd)

    y = jnp.dot(ctx, wo_ref[...], preferred_element_type=jnp.float32) + bo_ref[...]
    y = y + x.astype(jnp.float32)                                      # residual
    cross = _layernorm_f32(y, g_ref[...], b_ref[...])
    o_ref[0] = cross.astype(o_ref.dtype)
    # present_key_value = self-attention output + cross-attention output (literal tensor add),
    # fused here as a second output to avoid an extra XLA op / HBM pass.
    present_ref[0] = (x.astype(jnp.float32) + cross).astype(present_ref.dtype)


def _ffn_block_kernel(x_ref, wi_ref, bi_ref, wo_ref, bo_ref, g_ref, b_ref, o_ref):
    """Fused feed_forward_chunk: intermediate matmul + exact GELU + output matmul
    + residual + LayerNorm, on one (TM, Hd) row tile."""
    x = x_ref[...]                                                     # (TM, Hd)
    cd = x.dtype
    h = jnp.dot(x, wi_ref[...], preferred_element_type=jnp.float32) + bi_ref[...]
    h = 0.5 * h * (1.0 + jax.lax.erf(h * _SQRT_HALF))                  # HF 'gelu' (erf), f32
    y = jnp.dot(h.astype(cd), wo_ref[...], preferred_element_type=jnp.float32) + bo_ref[...]
    y = y + x.astype(jnp.float32)                                      # residual
    o_ref[...] = _layernorm_f32(y, g_ref[...], b_ref[...]).astype(o_ref.dtype)


# -------------------------- Pallas wrappers --------------------------

def _compiler_params(num_parallel_axes):
    return pltpu.CompilerParams(
        dimension_semantics=("parallel",) * num_parallel_axes,
        vmem_limit_bytes=_VMEM_LIMIT_BYTES)


def self_attention_block(x, w_qkv, b_qkv, w_o, b_o, gamma, beta, mask_add,
                         num_heads, single_buffer):
    """x:(B,S,Hd), w_qkv:(Hd,3Hd), mask:(B,1,S) additive. Returns LN(x + proj(MHA(x)))."""
    B, S, Hd = x.shape
    Sk = mask_add.shape[-1]
    kernel = functools.partial(_self_attn_block_kernel, num_heads=num_heads)
    return pl.pallas_call(
        kernel,
        out_shape=jax.ShapeDtypeStruct((B, S, Hd), x.dtype),
        grid=(B,),
        in_specs=[
            pl.BlockSpec((1, S, Hd), lambda b: (b, 0, 0)),
            _const_spec((Hd, 3 * Hd), single_buffer),       # weights VMEM-resident, single-buffered
            _const_spec((1, 3 * Hd), single_buffer),
            _const_spec((Hd, Hd), single_buffer),
            _const_spec((1, Hd), single_buffer),
            _const_spec((1, Hd), single_buffer),
            _const_spec((1, Hd), single_buffer),
            pl.BlockSpec((1, 1, Sk), lambda b: (b, 0, 0)),
        ],
        out_specs=pl.BlockSpec((1, S, Hd), lambda b: (b, 0, 0)),
        compiler_params=_compiler_params(1),
    )(x, w_qkv, b_qkv, w_o, b_o, gamma, beta, mask_add)


def cross_attention_block(x, inj, w_q, b_q, w_kv, b_kv, w_o, b_o, gamma, beta,
                          mask_add, num_heads, single_buffer):
    """x:(B,S,Hd) queries/residual, inj:(B,Sk,KV) keys/values source, mask:(B,1,Sk).
    Returns (cross_out, present) where present = x + cross_out."""
    B, S, Hd = x.shape
    Sk, KV = inj.shape[1], inj.shape[2]
    kernel = functools.partial(_cross_attn_block_kernel, num_heads=num_heads)
    return pl.pallas_call(
        kernel,
        out_shape=(jax.ShapeDtypeStruct((B, S, Hd), x.dtype),
                   jax.ShapeDtypeStruct((B, S, Hd), x.dtype)),
        grid=(B,),
        in_specs=[
            pl.BlockSpec((1, S, Hd), lambda b: (b, 0, 0)),
            pl.BlockSpec((1, Sk, KV), lambda b: (b, 0, 0)),
            _const_spec((Hd, Hd), single_buffer),
            _const_spec((1, Hd), single_buffer),
            _const_spec((KV, 2 * Hd), single_buffer),
            _const_spec((1, 2 * Hd), single_buffer),
            _const_spec((Hd, Hd), single_buffer),
            _const_spec((1, Hd), single_buffer),
            _const_spec((1, Hd), single_buffer),
            _const_spec((1, Hd), single_buffer),
            pl.BlockSpec((1, 1, Sk), lambda b: (b, 0, 0)),
        ],
        out_specs=(pl.BlockSpec((1, S, Hd), lambda b: (b, 0, 0)),
                   pl.BlockSpec((1, S, Hd), lambda b: (b, 0, 0))),
        compiler_params=_compiler_params(1),
    )(x, inj, w_q, b_q, w_kv, b_kv, w_o, b_o, gamma, beta, mask_add)


def _pick_tile_m(m, max_tile=256):
    """Largest multiple-of-8 divisor of m that is <= max_tile, preferring >= 2 grid steps
    (so the 'parallel' axis can shard across TensorCores on v7x and pipeline the DMA).
    max_tile=256 keeps the (tm, Inter) f32 GELU intermediate + single-buffered bf16 weights
    comfortably inside v7x's 64 MiB VMEM at BERT-base shapes (Hd=768, Inter=3072).
    NOTE: if m has no multiple-of-8 divisor <= max_tile we fall back to one full-extent
    block (legal, but no pipelining / megacore use)."""
    candidates = [t for t in range(8, min(m, max_tile) + 1, 8) if m % t == 0]
    if not candidates:
        return m
    for t in reversed(candidates):
        if m // t >= 2:
            return t
    return candidates[-1]


def ffn_block(x2, w_i, b_i, w_o, b_o, gamma, beta, single_buffer):
    """x2:(M,Hd). Returns LN(x2 + W_o @ GELU(W_i @ x2)). Tiled over M rows."""
    M, Hd = x2.shape
    Inter = w_i.shape[1]
    tm = _pick_tile_m(M)
    return pl.pallas_call(
        _ffn_block_kernel,
        out_shape=jax.ShapeDtypeStruct((M, Hd), x2.dtype),
        grid=(M // tm,),
        in_specs=[
            pl.BlockSpec((tm, Hd), lambda i: (i, 0)),
            _const_spec((Hd, Inter), single_buffer),         # weights VMEM-resident, single-buffered
            _const_spec((1, Inter), single_buffer),
            _const_spec((Inter, Hd), single_buffer),
            _const_spec((1, Hd), single_buffer),
            _const_spec((1, Hd), single_buffer),
            _const_spec((1, Hd), single_buffer),
        ],
        out_specs=pl.BlockSpec((tm, Hd), lambda i: (i, 0)),
        compiler_params=_compiler_params(1),
    )(x2, w_i, b_i, w_o, b_o, gamma, beta)


# -------------------------- parameter fusion (load-time, not per-forward) --------------------------

def fuse_params(p, num_heads, compute_dtype=jnp.bfloat16):
    """One-time parameter preprocessing (hoisted out of the forward):
      * fuse Q/K/V (self-attn) and K/V (cross-attn) projection weights,
      * fold the 1/sqrt(D) attention scale into the Q weights/biases (free at runtime),
      * cast matmul weights to the MXU compute dtype (bf16 by default: ~4x MXU throughput,
        half the weight VMEM/DMA bytes on v5e/v6e/v7x),
      * keep biases and LayerNorm params in f32 (they add into f32 accumulators)."""
    hd = p["sa_q_w"].shape[0]
    scale = 1.0 / math.sqrt(hd // num_heads)
    wd = compute_dtype
    row = lambda a: a.reshape(1, -1).astype(jnp.float32)
    return {
        "sa_wqkv": jnp.concatenate([p["sa_q_w"] * scale, p["sa_k_w"], p["sa_v_w"]], 1).astype(wd),
        "sa_bqkv": jnp.concatenate([p["sa_q_b"] * scale, p["sa_k_b"], p["sa_v_b"]], 0)
                     .reshape(1, -1).astype(jnp.float32),
        "sa_wo": p["sa_o_w"].astype(wd), "sa_bo": row(p["sa_o_b"]),
        "sa_ln_g": row(p["sa_ln_g"]), "sa_ln_b": row(p["sa_ln_b"]),
        "ca_wq": (p["ca_q_w"] * scale).astype(wd), "ca_bq": row(p["ca_q_b"] * scale),
        "ca_wkv": jnp.concatenate([p["ca_k_w"], p["ca_v_w"]], 1).astype(wd),
        "ca_bkv": jnp.concatenate([p["ca_k_b"], p["ca_v_b"]], 0)
                    .reshape(1, -1).astype(jnp.float32),
        "ca_wo": p["ca_o_w"].astype(wd), "ca_bo": row(p["ca_o_b"]),
        "ca_ln_g": row(p["ca_ln_g"]), "ca_ln_b": row(p["ca_ln_b"]),
        "ff_wi": p["ff_i_w"].astype(wd), "ff_bi": row(p["ff_i_b"]),
        "ff_wo": p["ff_o_w"].astype(wd), "ff_bo": row(p["ff_o_b"]),
        "ff_ln_g": row(p["ff_ln_g"]), "ff_ln_b": row(p["ff_ln_b"]),
    }


# -------------------------- BertLayerCA forward --------------------------

def _forward_impl(f, hidden_states, attn_mask, injected, inj_mask, num_heads, single_buffer):
    B, S, Hd = hidden_states.shape
    cd = f["sa_wqkv"].dtype
    x = hidden_states.astype(cd)
    inj = injected.astype(cd)
    attn_mask = attn_mask.astype(jnp.float32)
    inj_mask = inj_mask.astype(jnp.float32)

    # --- BertAttention (self-attention + BertSelfOutput), one fused call ---
    attn_out = self_attention_block(
        x, f["sa_wqkv"], f["sa_bqkv"], f["sa_wo"], f["sa_bo"],
        f["sa_ln_g"], f["sa_ln_b"], attn_mask, num_heads, single_buffer)

    # --- InjectCrossAttention ('absolute'), one fused call, also emits present ---
    cross_out, present = cross_attention_block(
        attn_out, inj, f["ca_wq"], f["ca_bq"], f["ca_wkv"], f["ca_bkv"],
        f["ca_wo"], f["ca_bo"], f["ca_ln_g"], f["ca_ln_b"],
        inj_mask, num_heads, single_buffer)

    # --- feed_forward_chunk: BertIntermediate (GELU) + BertOutput, one fused call ---
    layer_out = ffn_block(
        cross_out.reshape(B * S, Hd),
        f["ff_wi"], f["ff_bi"], f["ff_wo"], f["ff_bo"],
        f["ff_ln_g"], f["ff_ln_b"], single_buffer)

    out_dtype = hidden_states.dtype
    return layer_out.reshape(B, S, Hd).astype(out_dtype), present.astype(out_dtype)


def bert_layer_ca_forward(fused_params, hidden_states, attn_mask, injected, inj_mask, num_heads):
    """BertLayerCA.forward (eval mode, absolute positions, past_key_value=None, head_mask=None,
    output_attentions=False).  Returns (layer_output, present_key_value)."""
    try:
        return _forward_impl(fused_params, hidden_states, attn_mask, injected, inj_mask,
                             num_heads, single_buffer=_SINGLE_BUFFER_OK[0])
    except Exception:
        # one-shot fallback if this runtime rejects pipeline_mode=pl.Buffered(1)
        if not _SINGLE_BUFFER_OK[0]:
            raise
        _SINGLE_BUFFER_OK[0] = False
        return _forward_impl(fused_params, hidden_states, attn_mask, injected, inj_mask,
                             num_heads, single_buffer=False)


# -------------------------- pure-JAX reference --------------------------

def ref_forward(p, hidden_states, attn_mask, injected, inj_mask, num_heads):
    B, S, Hd = hidden_states.shape
    _, Sk, KV = injected.shape
    D = Hd // num_heads

    def lin(x, w, b):
        return x @ w + b

    def ln(x, g, b):
        mu = x.mean(-1, keepdims=True)
        var = ((x - mu) ** 2).mean(-1, keepdims=True)
        return (x - mu) / jnp.sqrt(var + LN_EPS) * g + b

    def heads(x, seq):
        return x.reshape(B, seq, num_heads, D).transpose(0, 2, 1, 3)

    def attn(q, k, v, m):
        s = jnp.einsum("bhqd,bhkd->bhqk", q, k) / math.sqrt(D)
        s = s + m[:, None, :, :]
        pr = jax.nn.softmax(s, axis=-1)
        return jnp.einsum("bhqk,bhkd->bhqd", pr, v)

    def gelu(x):
        return 0.5 * x * (1.0 + jax.lax.erf(x / math.sqrt(2.0)))

    x = hidden_states
    q = heads(lin(x, p["sa_q_w"], p["sa_q_b"]), S)
    k = heads(lin(x, p["sa_k_w"], p["sa_k_b"]), S)
    v = heads(lin(x, p["sa_v_w"], p["sa_v_b"]), S)
    ctx = attn(q, k, v, attn_mask).transpose(0, 2, 1, 3).reshape(B, S, Hd)
    attn_out = ln(lin(ctx, p["sa_o_w"], p["sa_o_b"]) + x, p["sa_ln_g"], p["sa_ln_b"])

    cq = heads(lin(attn_out, p["ca_q_w"], p["ca_q_b"]), S)
    ck = heads(lin(injected, p["ca_k_w"], p["ca_k_b"]), Sk)
    cv = heads(lin(injected, p["ca_v_w"], p["ca_v_b"]), Sk)
    cctx = attn(cq, ck, cv, inj_mask).transpose(0, 2, 1, 3).reshape(B, S, Hd)
    cross_out = ln(lin(cctx, p["ca_o_w"], p["ca_o_b"]) + attn_out, p["ca_ln_g"], p["ca_ln_b"])

    inter = gelu(lin(cross_out, p["ff_i_w"], p["ff_i_b"]))
    layer_out = ln(lin(inter, p["ff_o_w"], p["ff_o_b"]) + cross_out, p["ff_ln_g"], p["ff_ln_b"])
    return layer_out, attn_out + cross_out


# -------------------------- params --------------------------

def init_params(key, hidden, kv_dim, inter):
    keys = jax.random.split(key, 32)
    it = iter(range(32))

    def nrm(shape):
        return jax.random.normal(keys[next(it)], shape, jnp.float32) * 0.02

    p = {}
    # self-attention
    p["sa_q_w"], p["sa_q_b"] = nrm((hidden, hidden)), nrm((hidden,))
    p["sa_k_w"], p["sa_k_b"] = nrm((hidden, hidden)), nrm((hidden,))
    p["sa_v_w"], p["sa_v_b"] = nrm((hidden, hidden)), nrm((hidden,))
    p["sa_o_w"], p["sa_o_b"] = nrm((hidden, hidden)), nrm((hidden,))
    p["sa_ln_g"], p["sa_ln_b"] = jnp.ones((hidden,), jnp.float32), jnp.zeros((hidden,), jnp.float32)
    # cross-attention (q_dim == hidden, k_v_dim == kv_dim)
    p["ca_q_w"], p["ca_q_b"] = nrm((hidden, hidden)), nrm((hidden,))
    p["ca_k_w"], p["ca_k_b"] = nrm((kv_dim, hidden)), nrm((hidden,))
    p["ca_v_w"], p["ca_v_b"] = nrm((kv_dim, hidden)), nrm((hidden,))
    p["ca_o_w"], p["ca_o_b"] = nrm((hidden, hidden)), nrm((hidden,))
    p["ca_ln_g"], p["ca_ln_b"] = jnp.ones((hidden,), jnp.float32), jnp.zeros((hidden,), jnp.float32)
    # FFN
    p["ff_i_w"], p["ff_i_b"] = nrm((hidden, inter)), nrm((inter,))
    p["ff_o_w"], p["ff_o_b"] = nrm((inter, hidden)), nrm((hidden,))
    p["ff_ln_g"], p["ff_ln_b"] = jnp.ones((hidden,), jnp.float32), jnp.zeros((hidden,), jnp.float32)
    return p


# -------------------------- main --------------------------

if __name__ == "__main__":
    B, S, S_INJ = 2, 8, 8
    HIDDEN, HEADS, INTER, KV_DIM = 32, 4, 64, 48

    key = jax.random.PRNGKey(0)
    k_x, k_inj, k_p = jax.random.split(key, 3)
    hidden_states = jax.random.normal(k_x, (B, S, HIDDEN), jnp.float32)
    injected = jax.random.normal(k_inj, (B, S_INJ, KV_DIM), jnp.float32)
    params = init_params(k_p, HIDDEN, KV_DIM, INTER)

    # additive masks (HF extended-attention-mask convention: 0 = keep, -1e9 = masked),
    # key dimension last (lane axis).
    attn_mask = jnp.zeros((B, 1, S), jnp.float32)
    inj_valid = jnp.array([[1.0] * S_INJ, [1.0] * (S_INJ - 2) + [0.0, 0.0]], jnp.float32)
    inj_mask = ((1.0 - inj_valid) * -1e9).reshape(B, 1, S_INJ)

    ref_out, ref_present = ref_forward(
        params, hidden_states, attn_mask, injected, inj_mask, HEADS)

    # --- default production path: bf16 MXU inputs, f32 accumulation / softmax / LayerNorm ---
    fused_bf16 = fuse_params(params, HEADS, jnp.bfloat16)
    layer_out, present = bert_layer_ca_forward(
        fused_bf16, hidden_states, attn_mask, injected, inj_mask, HEADS)
    layer_out = jax.block_until_ready(layer_out)
    present = jax.block_until_ready(present)
    assert layer_out.shape == (B, S, HIDDEN) and present.shape == (B, S, HIDDEN)
    # bf16 activations/weights: expect ~1e-2-level deltas vs the f32 reference.
    assert jnp.allclose(layer_out, ref_out, atol=1e-1, rtol=1e-1)
    assert jnp.allclose(present, ref_present, atol=1e-1, rtol=1e-1)

    # --- f32 path: tight numerical check of the fused kernel structure ---
    fused_f32 = fuse_params(params, HEADS, jnp.float32)
    layer_out_f32, present_f32 = bert_layer_ca_forward(
        fused_f32, hidden_states, attn_mask, injected, inj_mask, HEADS)
    layer_out_f32 = jax.block_until_ready(layer_out_f32)
    present_f32 = jax.block_until_ready(present_f32)
    assert jnp.allclose(layer_out_f32, ref_out, atol=1e-3, rtol=1e-3)
    assert jnp.allclose(present_f32, ref_present, atol=1e-3, rtol=1e-3)

    print("KERNEL_OK")
</pallas_src>

<mosaic_0001>
module attributes {stable_mosaic.version = 11 : i64} {
  func.func @_self_attn_block_kernel(%arg0: i32, %arg1: memref<1x8x32xbf16, #tpu.memory_space<vmem>>, %arg2: memref<32x96xbf16, #tpu.memory_space<vmem>>, %arg3: memref<1x96xf32, #tpu.memory_space<vmem>>, %arg4: memref<32x32xbf16, #tpu.memory_space<vmem>>, %arg5: memref<1x32xf32, #tpu.memory_space<vmem>>, %arg6: memref<1x32xf32, #tpu.memory_space<vmem>>, %arg7: memref<1x32xf32, #tpu.memory_space<vmem>>, %arg8: memref<1x1x8xf32, #tpu.memory_space<vmem>>, %arg9: memref<1x8x32xbf16, #tpu.memory_space<vmem>>) attributes {dimension_semantics = [#tpu.dimension_semantics<parallel>], iteration_bounds = array<i64: 2>, scalar_prefetch = 0 : i64, scratch_operands = 0 : i64, tpu.core_type = #tpu.core_type<tc>, window_params = [{transform_indices = @transform_0, window_bounds = array<i64: 1, 8, 32>}, {pipeline_mode = #tpu.pipeline_mode<synchronous>, transform_indices = @transform_1, window_bounds = array<i64: 32, 96>}, {pipeline_mode = #tpu.pipeline_mode<synchronous>, transform_indices = @transform_2, window_bounds = array<i64: 1, 96>}, {pipeline_mode = #tpu.pipeline_mode<synchronous>, transform_indices = @transform_3, window_bounds = array<i64: 32, 32>}, {pipeline_mode = #tpu.pipeline_mode<synchronous>, transform_indices = @transform_4, window_bounds = array<i64: 1, 32>}, {pipeline_mode = #tpu.pipeline_mode<synchronous>, transform_indices = @transform_5, window_bounds = array<i64: 1, 32>}, {pipeline_mode = #tpu.pipeline_mode<synchronous>, transform_indices = @transform_6, window_bounds = array<i64: 1, 32>}, {transform_indices = @transform_7, window_bounds = array<i64: 1, 1, 8>}, {transform_indices = @transform_8, window_bounds = array<i64: 1, 8, 32>}]} {
    %c0 = arith.constant 0 : index
    %c0_0 = arith.constant 0 : index
    %c0_1 = arith.constant 0 : index
    %0 = vector.load %arg1[%c0, %c0_0, %c0_1] : memref<1x8x32xbf16, #tpu.memory_space<vmem>>, vector<1x8x32xbf16>
    %1 = vector.shape_cast %0 : vector<1x8x32xbf16> to vector<8x32xbf16>
    %c0_2 = arith.constant 0 : index
    %c0_3 = arith.constant 0 : index
    %2 = vector.load %arg2[%c0_2, %c0_3] : memref<32x96xbf16, #tpu.memory_space<vmem>>, vector<32x96xbf16>
    %cst = arith.constant dense<0.000000e+00> : vector<8x96xf32>
    %3 = tpu.matmul %1, %2, %cst {dimension_numbers = #tpu.dot_dimension_numbers<[1], [0], [0], [1], [0, 0, 1, 1], [], []>} : vector<8x32xbf16>, vector<32x96xbf16>, vector<8x96xf32> -> vector<8x96xf32>
    %c0_4 = arith.constant 0 : index
    %c0_5 = arith.constant 0 : index
    %4 = vector.load %arg3[%c0_4, %c0_5] : memref<1x96xf32, #tpu.memory_space<vmem>>, vector<1x96xf32>
    %5 = vector.broadcast %4 : vector<1x96xf32> to vector<8x96xf32>
    %6 = arith.addf %3, %5 : vector<8x96xf32>
    %7 = arith.truncf %6 : vector<8x96xf32> to vector<8x96xbf16>
    %c0_6 = arith.constant 0 : index
    %c0_7 = arith.constant 0 : index
    %c0_8 = arith.constant 0 : index
    %8 = vector.load %arg8[%c0_6, %c0_7, %c0_8] : memref<1x1x8xf32, #tpu.memory_space<vmem>>, vector<1x1x8xf32>
    %9 = vector.shape_cast %8 : vector<1x1x8xf32> to vector<1x8xf32>
    %10 = vector.extract_strided_slice %7 {offsets = [0, 0], sizes = [8, 32], strides = [1, 1]} : vector<8x96xbf16> to vector<8x32xbf16>
    %11 = vector.extract_strided_slice %7 {offsets = [0, 32], sizes = [8, 32], strides = [1, 1]} : vector<8x96xbf16> to vector<8x32xbf16>
    %12 = vector.extract_strided_slice %7 {offsets = [0, 64], sizes = [8, 32], strides = [1, 1]} : vector<8x96xbf16> to vector<8x32xbf16>
    %13 = vector.shape_cast %10 : vector<8x32xbf16> to vector<8x4x8xbf16>
    %14 = tpu.transpose %13, [1, 0, 2] : vector<8x4x8xbf16> -> vector<4x8x8xbf16>
    %15 = vector.shape_cast %11 : vector<8x32xbf16> to vector<8x4x8xbf16>
    %16 = tpu.transpose %15, [1, 0, 2] : vector<8x4x8xbf16> -> vector<4x8x8xbf16>
    %17 = vector.shape_cast %12 : vector<8x32xbf16> to vector<8x4x8xbf16>
    %18 = tpu.transpose %17, [1, 0, 2] : vector<8x4x8xbf16> -> vector<4x8x8xbf16>
    "tpu.trace_start"() <{level = 10 : i32, message = "hqd,hkd->hqk"}> : () -> ()
    %cst_9 = arith.constant dense<0.000000e+00> : vector<4x8x8xf32>
    %19 = tpu.matmul %14, %16, %cst_9 {dimension_numbers = #tpu.dot_dimension_numbers<[2], [2], [1], [1], [0, 0, 0, 1, 1, 1], [0], [0]>} : vector<4x8x8xbf16>, vector<4x8x8xbf16>, vector<4x8x8xf32> -> vector<4x8x8xf32>
    "tpu.trace_stop"() : () -> ()
    %20 = vector.shape_cast %9 : vector<1x8xf32> to vector<1x1x8xf32>
    %21 = vector.broadcast %20 : vector<1x1x8xf32> to vector<4x8x8xf32>
    %22 = arith.addf %19, %21 : vector<4x8x8xf32>
    %cst_10 = arith.constant dense<0xFF800000> : vector<4x8xf32>
    %23 = vector.multi_reduction <maximumf>, %22, %cst_10 [2] : vector<4x8x8xf32> to vector<4x8xf32>
    %24 = vector.shape_cast %23 : vector<4x8xf32> to vector<4x8x1xf32>
    %25 = vector.broadcast %24 : vector<4x8x1xf32> to vector<4x8x8xf32>
    %26 = arith.subf %22, %25 : vector<4x8x8xf32>
    %27 = math.exp %26 : vector<4x8x8xf32>
    %cst_11 = arith.constant dense<0.000000e+00> : vector<4x8xf32>
    %28 = vector.multi_reduction <add>, %27, %cst_11 [2] : vector<4x8x8xf32> to vector<4x8xf32>
    %29 = vector.shape_cast %28 : vector<4x8xf32> to vector<4x8x1xf32>
    %30 = tpu.reciprocal %29 {approx = true} : vector<4x8x1xf32> -> vector<4x8x1xf32>
    %31 = arith.mulf %29, %30 : vector<4x8x1xf32>
    %cst_12 = arith.constant 2.000000e+00 : f32
    %32 = vector.broadcast %cst_12 : f32 to vector<4x8x1xf32>
    %33 = arith.subf %32, %31 : vector<4x8x1xf32>
    %34 = arith.mulf %30, %33 : vector<4x8x1xf32>
    %35 = vector.broadcast %34 : vector<4x8x1xf32> to vector<4x8x8xf32>
    %36 = arith.mulf %27, %35 : vector<4x8x8xf32>
    %37 = arith.truncf %36 : vector<4x8x8xf32> to vector<4x8x8xbf16>
    "tpu.trace_start"() <{level = 10 : i32, message = "hqk,hkd->hqd"}> : () -> ()
    %cst_13 = arith.constant dense<0.000000e+00> : vector<4x8x8xf32>
    %38 = tpu.matmul %37, %18, %cst_13 {dimension_numbers = #tpu.dot_dimension_numbers<[2], [1], [1], [2], [0, 0, 0, 1, 1, 2], [0], [0]>} : vector<4x8x8xbf16>, vector<4x8x8xbf16>, vector<4x8x8xf32> -> vector<4x8x8xf32>
    "tpu.trace_stop"() : () -> ()
    %39 = tpu.transpose %38, [1, 0, 2] : vector<4x8x8xf32> -> vector<8x4x8xf32>
    %40 = vector.shape_cast %39 : vector<8x4x8xf32> to vector<8x32xf32>
    %41 = arith.truncf %40 : vector<8x32xf32> to vector<8x32xbf16>
    %c0_14 = arith.constant 0 : index
    %c0_15 = arith.constant 0 : index
    %42 = vector.load %arg4[%c0_14, %c0_15] : memref<32x32xbf16, #tpu.memory_space<vmem>>, vector<32x32xbf16>
    %cst_16 = arith.constant dense<0.000000e+00> : vector<8x32xf32>
    %43 = tpu.matmul %41, %42, %cst_16 {dimension_numbers = #tpu.dot_dimension_numbers<[1], [0], [0], [1], [0, 0, 1, 1], [], []>} : vector<8x32xbf16>, vector<32x32xbf16>, vector<8x32xf32> -> vector<8x32xf32>
    %c0_17 = arith.constant 0 : index
    %c0_18 = arith.constant 0 : index
    %44 = vector.load %arg5[%c0_17, %c0_18] : memref<1x32xf32, #tpu.memory_space<vmem>>, vector<1x32xf32>
    %45 = vector.broadcast %44 : vector<1x32xf32> to vector<8x32xf32>
    %46 = arith.addf %43, %45 : vector<8x32xf32>
    %47 = arith.extf %1 : vector<8x32xbf16> to vector<8x32xf32>
    %48 = arith.addf %46, %47 : vector<8x32xf32>
    %c0_19 = arith.constant 0 : index
    %c0_20 = arith.constant 0 : index
    %49 = vector.load %arg6[%c0_19, %c0_20] : memref<1x32xf32, #tpu.memory_space<vmem>>, vector<1x32xf32>
    %c0_21 = arith.constant 0 : index
    %c0_22 = arith.constant 0 : index
    %50 = vector.load %arg7[%c0_21, %c0_22] : memref<1x32xf32, #tpu.memory_space<vmem>>, vector<1x32xf32>
    %cst_23 = arith.constant dense<0.000000e+00> : vector<8xf32>
    %51 = vector.multi_reduction <add>, %48, %cst_23 [1] : vector<8x32xf32> to vector<8xf32>
    %52 = vector.shape_cast %51 : vector<8xf32> to vector<8x1xf32>
    %cst_24 = arith.constant 3.200000e+01 : f32
    %53 = vector.broadcast %cst_24 : f32 to vector<8x1xf32>
    %54 = arith.divf %52, %53 : vector<8x1xf32>
    %55 = vector.broadcast %54 : vector<8x1xf32> to vector<8x32xf32>
    %56 = arith.subf %48, %55 : vector<8x32xf32>
    %57 = arith.mulf %56, %56 : vector<8x32xf32>
    %cst_25 = arith.constant dense<0.000000e+00> : vector<8xf32>
    %58 = vector.multi_reduction <add>, %57, %cst_25 [1] : vector<8x32xf32> to vector<8xf32>
    %59 = vector.shape_cast %58 : vector<8xf32> to vector<8x1xf32>
    %cst_26 = arith.constant 3.200000e+01 : f32
    %60 = vector.broadcast %cst_26 : f32 to vector<8x1xf32>
    %61 = arith.divf %59, %60 : vector<8x1xf32>
    %62 = vector.broadcast %54 : vector<8x1xf32> to vector<8x32xf32>
    %63 = arith.subf %48, %62 : vector<8x32xf32>
    %cst_27 = arith.constant 9.99999996E-13 : f32
    %64 = vector.broadcast %cst_27 : f32 to vector<8x1xf32>
    %65 = arith.addf %61, %64 : vector<8x1xf32>
    %66 = math.rsqrt %65 : vector<8x1xf32>
    %67 = vector.broadcast %66 : vector<8x1xf32> to vector<8x32xf32>
    %68 = arith.mulf %63, %67 : vector<8x32xf32>
    %69 = vector.broadcast %49 : vector<1x32xf32> to vector<8x32xf32>
    %70 = arith.mulf %68, %69 : vector<8x32xf32>
    %71 = vector.broadcast %50 : vector<1x32xf32> to vector<8x32xf32>
    %72 = arith.addf %70, %71 : vector<8x32xf32>
    %73 = arith.truncf %72 : vector<8x32xf32> to vector<8x32xbf16>
    %c0_28 = arith.constant 0 : index
    %c0_29 = arith.constant 0 : index
    %c0_30 = arith.constant 0 : index
    %74 = vector.load %arg9[%c0_28, %c0_29, %c0_30] : memref<1x8x32xbf16, #tpu.memory_space<vmem>>, vector<1x8x32xbf16>
    %75 = vector.shape_cast %74 : vector<1x8x32xbf16> to vector<8x32xbf16>
    %76 = vector.shape_cast %73 : vector<8x32xbf16> to vector<1x8x32xbf16>
    tpu.vector_store %arg9[%c0_28, %c0_29, %c0_30], %76 {strides = array<i32>} : memref<1x8x32xbf16, #tpu.memory_space<vmem>>, vector<1x8x32xbf16>,
    return
  }
  func.func @transform_0(%arg0: i32) -> (i32, i32, i32) {
    %c0_i32 = arith.constant 0 : i32
    %c0_i32_0 = arith.constant 0 : i32
    %c0_i32_1 = arith.constant 0 : i32
    return %arg0, %c0_i32, %c0_i32_0 : i32, i32, i32
  }
  func.func @transform_1(%arg0: i32) -> (i32, i32) {
    %c0_i32 = arith.constant 0 : i32
    %c0_i32_0 = arith.constant 0 : i32
    %c0_i32_1 = arith.constant 0 : i32
    return %c0_i32, %c0_i32_0 : i32, i32
  }
  func.func @transform_2(%arg0: i32) -> (i32, i32) {
    %c0_i32 = arith.constant 0 : i32
    %c0_i32_0 = arith.constant 0 : i32
    %c0_i32_1 = arith.constant 0 : i32
    return %c0_i32, %c0_i32_0 : i32, i32
  }
  func.func @transform_3(%arg0: i32) -> (i32, i32) {
    %c0_i32 = arith.constant 0 : i32
    %c0_i32_0 = arith.constant 0 : i32
    %c0_i32_1 = arith.constant 0 : i32
    return %c0_i32, %c0_i32_0 : i32, i32
  }
  func.func @transform_4(%arg0: i32) -> (i32, i32) {
    %c0_i32 = arith.constant 0 : i32
    %c0_i32_0 = arith.constant 0 : i32
    %c0_i32_1 = arith.constant 0 : i32
    return %c0_i32, %c0_i32_0 : i32, i32
  }
  func.func @transform_5(%arg0: i32) -> (i32, i32) {
    %c0_i32 = arith.constant 0 : i32
    %c0_i32_0 = arith.constant 0 : i32
    %c0_i32_1 = arith.constant 0 : i32
    return %c0_i32, %c0_i32_0 : i32, i32
  }
  func.func @transform_6(%arg0: i32) -> (i32, i32) {
    %c0_i32 = arith.constant 0 : i32
    %c0_i32_0 = arith.constant 0 : i32
    %c0_i32_1 = arith.constant 0 : i32
    return %c0_i32, %c0_i32_0 : i32, i32
  }
  func.func @transform_7(%arg0: i32) -> (i32, i32, i32) {
    %c0_i32 = arith.constant 0 : i32
    %c0_i32_0 = arith.constant 0 : i32
    %c0_i32_1 = arith.constant 0 : i32
    return %arg0, %c0_i32, %c0_i32_0 : i32, i32, i32
  }
  func.func @transform_8(%arg0: i32) -> (i32, i32, i32) {
    %c0_i32 = arith.constant 0 : i32
    %c0_i32_0 = arith.constant 0 : i32
    %c0_i32_1 = arith.constant 0 : i32
    return %arg0, %c0_i32, %c0_i32_0 : i32, i32, i32
  }
}

module attributes {stable_mosaic.version = 11 : i64} {
  func.func @_self_attn_block_kernel(%arg0: i32, %arg1: memref<1x8x32xbf16, #tpu.memory_space<vmem>>, %arg2: memref<32x96xbf16, #tpu.memory_space<vmem>>, %arg3: memref<1x96xf32, #tpu.memory_space<vmem>>, %arg4: memref<32x32xbf16, #tpu.memory_space<vmem>>, %arg5: memref<1x32xf32, #tpu.memory_space<vmem>>, %arg6: memref<1x32xf32, #tpu.memory_space<vmem>>, %arg7: memref<1x32xf32, #tpu.memory_space<vmem>>, %arg8: memref<1x1x8xf32, #tpu.memory_space<vmem>>, %arg9: memref<1x8x32xbf16, #tpu.memory_space<vmem>>) attributes {dimension_semantics = [#tpu.dimension_semantics<parallel>], iteration_bounds = array<i64: 2>, scalar_prefetch = 0 : i64, scratch_operands = 0 : i64, tpu.core_type = #tpu.core_type<tc>, window_params = [{transform_indices = @transform_0, window_bounds = array<i64: 1, 8, 32>}, {pipeline_mode = #tpu.pipeline_mode<synchronous>, transform_indices = @transform_1, window_bounds = array<i64: 32, 96>}, {pipeline_mode = #tpu.pipeline_mode<synchronous>, transform_indices = @transform_2, window_bounds = array<i64: 1, 96>}, {pipeline_mode = #tpu.pipeline_mode<synchronous>, transform_indices = @transform_3, window_bounds = array<i64: 32, 32>}, {pipeline_mode = #tpu.pipeline_mode<synchronous>, transform_indices = @transform_4, window_bounds = array<i64: 1, 32>}, {pipeline_mode = #tpu.pipeline_mode<synchronous>, transform_indices = @transform_5, window_bounds = array<i64: 1, 32>}, {pipeline_mode = #tpu.pipeline_mode<synchronous>, transform_indices = @transform_6, window_bounds = array<i64: 1, 32>}, {transform_indices = @transform_7, window_bounds = array<i64: 1, 1, 8>}, {transform_indices = @transform_8, window_bounds = array<i64: 1, 8, 32>}]} {
    %c0 = arith.constant 0 : index
    %c0_0 = arith.constant 0 : index
    %c0_1 = arith.constant 0 : index
    %0 = vector.load %arg1[%c0, %c0_0, %c0_1] : memref<1x8x32xbf16, #tpu.memory_space<vmem>>, vector<1x8x32xbf16>
    %1 = vector.shape_cast %0 : vector<1x8x32xbf16> to vector<8x32xbf16>
    %c0_2 = arith.constant 0 : index
    %c0_3 = arith.constant 0 : index
    %2 = vector.load %arg2[%c0_2, %c0_3] : memref<32x96xbf16, #tpu.memory_space<vmem>>, vector<32x96xbf16>
    %cst = arith.constant dense<0.000000e+00> : vector<8x96xf32>
    %3 = tpu.matmul %1, %2, %cst {dimension_numbers = #tpu.dot_dimension_numbers<[1], [0], [0], [1], [0, 0, 1, 1], [], []>} : vector<8x32xbf16>, vector<32x96xbf16>, vector<8x96xf32> -> vector<8x96xf32>
    %c0_4 = arith.constant 0 : index
    %c0_5 = arith.constant 0 : index
    %4 = vector.load %arg3[%c0_4, %c0_5] : memref<1x96xf32, #tpu.memory_space<vmem>>, vector<1x96xf32>
    %5 = vector.broadcast %4 : vector<1x96xf32> to vector<8x96xf32>
    %6 = arith.addf %3, %5 : vector<8x96xf32>
    %7 = arith.truncf %6 : vector<8x96xf32> to vector<8x96xbf16>
    %c0_6 = arith.constant 0 : index
    %c0_7 = arith.constant 0 : index
    %c0_8 = arith.constant 0 : index
    %8 = vector.load %arg8[%c0_6, %c0_7, %c0_8] : memref<1x1x8xf32, #tpu.memory_space<vmem>>, vector<1x1x8xf32>
    %9 = vector.shape_cast %8 : vector<1x1x8xf32> to vector<1x8xf32>
    %10 = vector.extract_strided_slice %7 {offsets = [0, 0], sizes = [8, 32], strides = [1, 1]} : vector<8x96xbf16> to vector<8x32xbf16>
    %11 = vector.extract_strided_slice %7 {offsets = [0, 32], sizes = [8, 32], strides = [1, 1]} : vector<8x96xbf16> to vector<8x32xbf16>
    %12 = vector.extract_strided_slice %7 {offsets = [0, 64], sizes = [8, 32], strides = [1, 1]} : vector<8x96xbf16> to vector<8x32xbf16>
    %13 = vector.shape_cast %10 : vector<8x32xbf16> to vector<8x4x8xbf16>
    %14 = tpu.transpose %13, [1, 0, 2] : vector<8x4x8xbf16> -> vector<4x8x8xbf16>
    %15 = vector.shape_cast %11 : vector<8x32xbf16> to vector<8x4x8xbf16>
    %16 = tpu.transpose %15, [1, 0, 2] : vector<8x4x8xbf16> -> vector<4x8x8xbf16>
    %17 = vector.shape_cast %12 : vector<8x32xbf16> to vector<8x4x8xbf16>
    %18 = tpu.transpose %17, [1, 0, 2] : vector<8x4x8xbf16> -> vector<4x8x8xbf16>
    "tpu.trace_start"() <{level = 10 : i32, message = "hqd,hkd->hqk"}> : () -> ()
    %cst_9 = arith.constant dense<0.000000e+00> : vector<4x8x8xf32>
    %19 = tpu.matmul %14, %16, %cst_9 {dimension_numbers = #tpu.dot_dimension_numbers<[2], [2], [1], [1], [0, 0, 0, 1, 1, 1], [0], [0]>} : vector<4x8x8xbf16>, vector<4x8x8xbf16>, vector<4x8x8xf32> -> vector<4x8x8xf32>
    "tpu.trace_stop"() : () -> ()
    %20 = vector.shape_cast %9 : vector<1x8xf32> to vector<1x1x8xf32>
    %21 = vector.broadcast %20 : vector<1x1x8xf32> to vector<4x8x8xf32>
    %22 = arith.addf %19, %21 : vector<4x8x8xf32>
    %cst_10 = arith.constant dense<0xFF800000> : vector<4x8xf32>
    %23 = vector.multi_reduction <maximumf>, %22, %cst_10 [2] : vector<4x8x8xf32> to vector<4x8xf32>
    %24 = vector.shape_cast %23 : vector<4x8xf32> to vector<4x8x1xf32>
    %25 = vector.broadcast %24 : vector<4x8x1xf32> to vector<4x8x8xf32>
    %26 = arith.subf %22, %25 : vector<4x8x8xf32>
    %27 = math.exp %26 : vector<4x8x8xf32>
    %cst_11 = arith.constant dense<0.000000e+00> : vector<4x8xf32>
    %28 = vector.multi_reduction <add>, %27, %cst_11 [2] : vector<4x8x8xf32> to vector<4x8xf32>
    %29 = vector.shape_cast %28 : vector<4x8xf32> to vector<4x8x1xf32>
    %30 = tpu.reciprocal %29 {approx = true} : vector<4x8x1xf32> -> vector<4x8x1xf32>
    %31 = arith.mulf %29, %30 : vector<4x8x1xf32>
    %cst_12 = arith.constant 2.000000e+00 : f32
    %32 = vector.broadcast %cst_12 : f32 to vector<4x8x1xf32>
    %33 = arith.subf %32, %31 : vector<4x8x1xf32>
    %34 = arith.mulf %30, %33 : vector<4x8x1xf32>
    %35 = vector.broadcast %34 : vector<4x8x1xf32> to vector<4x8x8xf32>
    %36 = arith.mulf %27, %35 : vector<4x8x8xf32>
    %37 = arith.truncf %36 : vector<4x8x8xf32> to vector<4x8x8xbf16>
    "tpu.trace_start"() <{level = 10 : i32, message = "hqk,hkd->hqd"}> : () -> ()
    %cst_13 = arith.constant dense<0.000000e+00> : vector<4x8x8xf32>
    %38 = tpu.matmul %37, %18, %cst_13 {dimension_numbers = #tpu.dot_dimension_numbers<[2], [1], [1], [2], [0, 0, 0, 1, 1, 2], [0], [0]>} : vector<4x8x8xbf16>, vector<4x8x8xbf16>, vector<4x8x8xf32> -> vector<4x8x8xf32>
    "tpu.trace_stop"() : () -> ()
    %39 = tpu.transpose %38, [1, 0, 2] : vector<4x8x8xf32> -> vector<8x4x8xf32>
    %40 = vector.shape_cast %39 : vector<8x4x8xf32> to vector<8x32xf32>
    %41 = arith.truncf %40 : vector<8x32xf32> to vector<8x32xbf16>
    %c0_14 = arith.constant 0 : index
    %c0_15 = arith.constant 0 : index
    %42 = vector.load %arg4[%c0_14, %c0_15] : memref<32x32xbf16, #tpu.memory_space<vmem>>, vector<32x32xbf16>
    %cst_16 = arith.constant dense<0.000000e+00> : vector<8x32xf32>
    %43 = tpu.matmul %41, %42, %cst_16 {dimension_numbers = #tpu.dot_dimension_numbers<[1], [0], [0], [1], [0, 0, 1, 1], [], []>} : vector<8x32xbf16>, vector<32x32xbf16>, vector<8x32xf32> -> vector<8x32xf32>
    %c0_17 = arith.constant 0 : index
    %c0_18 = arith.constant 0 : index
    %44 = vector.load %arg5[%c0_17, %c0_18] : memref<1x32xf32, #tpu.memory_space<vmem>>, vector<1x32xf32>
    %45 = vector.broadcast %44 : vector<1x32xf32> to vector<8x32xf32>
    %46 = arith.addf %43, %45 : vector<8x32xf32>
    %47 = arith.extf %1 : vector<8x32xbf16> to vector<8x32xf32>
    %48 = arith.addf %46, %47 : vector<8x32xf32>
    %c0_19 = arith.constant 0 : index
    %c0_20 = arith.constant 0 : index
    %49 = vector.load %arg6[%c0_19, %c0_20] : memref<1x32xf32, #tpu.memory_space<vmem>>, vector<1x32xf32>
    %c0_21 = arith.constant 0 : index
    %c0_22 = arith.constant 0 : index
    %50 = vector.load %arg7[%c0_21, %c0_22] : memref<1x32xf32, #tpu.memory_space<vmem>>, vector<1x32xf32>
    %cst_23 = arith.constant dense<0.000000e+00> : vector<8xf32>
    %51 = vector.multi_reduction <add>, %48, %cst_23 [1] : vector<8x32xf32> to vector<8xf32>
    %52 = vector.shape_cast %51 : vector<8xf32> to vector<8x1xf32>
    %cst_24 = arith.constant 3.200000e+01 : f32
    %53 = vector.broadcast %cst_24 : f32 to vector<8x1xf32>
    %54 = arith.divf %52, %53 : vector<8x1xf32>
    %55 = vector.broadcast %54 : vector<8x1xf32> to vector<8x32xf32>
    %56 = arith.subf %48, %55 : vector<8x32xf32>
    %57 = arith.mulf %56, %56 : vector<8x32xf32>
    %cst_25 = arith.constant dense<0.000000e+00> : vector<8xf32>
    %58 = vector.multi_reduction <add>, %57, %cst_25 [1] : vector<8x32xf32> to vector<8xf32>
    %59 = vector.shape_cast %58 : vector<8xf32> to vector<8x1xf32>
    %cst_26 = arith.constant 3.200000e+01 : f32
    %60 = vector.broadcast %cst_26 : f32 to vector<8x1xf32>
    %61 = arith.divf %59, %60 : vector<8x1xf32>
    %62 = vector.broadcast %54 : vector<8x1xf32> to vector<8x32xf32>
    %63 = arith.subf %48, %62 : vector<8x32xf32>
    %cst_27 = arith.constant 9.99999996E-13 : f32
    %64 = vector.broadcast %cst_27 : f32 to vector<8x1xf32>
    %65 = arith.addf %61, %64 : vector<8x1xf32>
    %66 = math.rsqrt %65 : vector<8x1xf32>
    %67 = vector.broadcast %66 : vector<8x1xf32> to vector<8x32xf32>
    %68 = arith.mulf %63, %67 : vector<8x32xf32>
    %69 = vector.broadcast %49 : vector<1x32xf32> to vector<8x32xf32>
    %70 = arith.mulf %68, %69 : vector<8x32xf32>
    %71 = vector.broadcast %50 : vector<1x32xf32> to vector<8x32xf32>
    %72 = arith.addf %70, %71 : vector<8x32xf32>
    %73 = arith.truncf %72 : vector<8x32xf32> to vector<8x32xbf16>
    %c0_28 = arith.constant 0 : index
    %c0_29 = arith.constant 0 : index
    %c0_30 = arith.constant 0 : index
    %74 = vector.load %arg9[%c0_28, %c0_29, %c0_30] : memref<1x8x32xbf16, #tpu.memory_space<vmem>>, vector<1x8x32xbf16>
    %75 = vector.shape_cast %74 : vector<1x8x32xbf16> to vector<8x32xbf16>
    %76 = vector.shape_cast %73 : vector<8x32xbf16> to vector<1x8x32xbf16>
    tpu.vector_store %arg9[%c0_28, %c0_29, %c0_30], %76 {strides = array<i32>} : memref<1x8x32xbf16, #tpu.memory_space<vmem>>, vector<1x8x32xbf16>,
    return
  }
  func.func @transform_0(%arg0: i32) -> (i32, i32, i32) {
    %c0_i32 = arith.constant 0 : i32
    %c0_i32_0 = arith.constant 0 : i32
    %c0_i32_1 = arith.constant 0 : i32
    return %arg0, %c0_i32, %c0_i32_0 : i32, i32, i32
  }
  func.func @transform_1(%arg0: i32) -> (i32, i32) {
    %c0_i32 = arith.constant 0 : i32
    %c0_i32_0 = arith.constant 0 : i32
    %c0_i32_1 = arith.constant 0 : i32
    return %c0_i32, %c0_i32_0 : i32, i32
  }
  func.func @transform_2(%arg0: i32) -> (i32, i32) {
    %c0_i32 = arith.constant 0 : i32
    %c0_i32_0 = arith.constant 0 : i32
    %c0_i32_1 = arith.constant 0 : i32
    return %c0_i32, %c0_i32_0 : i32, i32
  }
  func.func @transform_3(%arg0: i32) -> (i32, i32) {
    %c0_i32 = arith.constant 0 : i32
    %c0_i32_0 = arith.constant 0 : i32
    %c0_i32_1 = arith.constant 0 : i32
    return %c0_i32, %c0_i32_0 : i32, i32
  }
  func.func @transform_4(%arg0: i32) -> (i32, i32) {
    %c0_i32 = arith.constant 0 : i32
    %c0_i32_0 = arith.constant 0 : i32
    %c0_i32_1 = arith.constant 0 : i32
    return %c0_i32, %c0_i32_0 : i32, i32
  }
  func.func @transform_5(%arg0: i32) -> (i32, i32) {
    %c0_i32 = arith.constant 0 : i32
    %c0_i32_0 = arith.constant 0 : i32
    %c0_i32_1 = arith.constant 0 : i32
    return %c0_i32, %c0_i32_0 : i32, i32
  }
  func.func @transform_6(%arg0: i32) -> (i32, i32) {
    %c0_i32 = arith.constant 0 : i32
    %c0_i32_0 = arith.constant 0 : i32
    %c0_i32_1 = arith.constant 0 : i32
    return %c0_i32, %c0_i32_0 : i32, i32
  }
  func.func @transform_7(%arg0: i32) -> (i32, i32, i32) {
    %c0_i32 = arith.constant 0 : i32
    %c0_i32_0 = arith.constant 0 : i32
    %c0_i32_1 = arith.constant 0 : i32
    return %arg0, %c0_i32, %c0_i32_0 : i32, i32, i32
  }
  func.func @transform_8(%arg0: i32) -> (i32, i32, i32) {
    %c0_i32 = arith.constant 0 : i32
    %c0_i32_0 = arith.constant 0 : i32
    %c0_i32_1 = arith.constant 0 : i32
    return %arg0, %c0_i32, %c0_i32_0 : i32, i32, i32
  }
}

</mosaic_0001>

<llo_original>
// kernel: tpu_custom_call.1
$region0: #{tpu_custom_call.1}
  #allocation0 [shape = 'u32[]', space=smem, size = 0x4, offset = 0x4, fixed_abs, tag = 'smem constant byte address 0x4 - core index']
  #allocation1 [shape = 'u32[144,128]{1,0:T(1,128)}', space=vmem, size = 0x12000, scoped, tag = 'internal scratch']
  %s0 = inlined_call_operand.hbm [shape: bf16[2,8,32], index: 0, kind: input, shape index: {}]
  %s1 = inlined_call_operand.hbm [shape: bf16[32,96], index: 1, kind: input, shape index: {}]
  %s2 = inlined_call_operand.vmem [shape: f32[1,96], index: 2, kind: input, shape index: {}]
  %s3 = inlined_call_operand.hbm [shape: bf16[32,32], index: 3, kind: input, shape index: {}]
  %s4 = inlined_call_operand.vmem [shape: f32[1,32], index: 4, kind: input, shape index: {}]
  %s5 = inlined_call_operand.vmem [shape: f32[1,32], index: 5, kind: input, shape index: {}]
  %s6 = inlined_call_operand.vmem [shape: f32[1,32], index: 6, kind: input, shape index: {}]
  %s7 = inlined_call_operand.vmem [shape: f32[2,1,8], index: 7, kind: input, shape index: {}]
  %s8 = inlined_call_operand.hbm [shape: bf16[2,8,32], index: 8, kind: output, shape index: {}]
  %s9 = sld [smem:[#allocation0]]
  $region77: #{tpu_custom_call.1} parent=0
    _
  %s11 = ssub.s32 1, %s9
  %s12 = scalar_select 0, %s11, %s9
  $region1: #{tpu_custom_call.1} parent=0
    #allocation2 [shape = 'u8[4096]{0}', space=vmem, size = 0x1000, scoped, tag = 'input window, operand 0']
    #allocation3 [shape = 's32[2]{0}', space=sflag, size = 0x8, scoped, tag = 'scoped memory for tpu_custom_call.1']
    #allocation4 [shape = 's32[2]{0}', space=sflag, size = 0x8, scoped, tag = 'scoped memory for tpu_custom_call.1']
    #allocation5 [shape = 'u8[8192]{0}', space=vmem, size = 0x2000, scoped, tag = 'input window, operand 1, single buffered']
    #allocation6 [shape = 's32[1]{0}', space=sflag, size = 0x4, scoped, tag = 'scoped memory for tpu_custom_call.1']
    #allocation7 [shape = 'u8[8192]{0}', space=vmem, size = 0x2000, scoped, tag = 'input window, operand 3, single buffered']
    #allocation8 [shape = 'u8[4096]{0}', space=vmem, size = 0x1000, scoped, tag = 'output window, operand 0']
    %13 = vsyncpa [#allocation3], 0
    %s14 = scalar_lea.sflag [#allocation3], 1
    %15 = vsyncpa %s14, 0
    %16 = vsyncpa [#allocation6], 0
    %17 = vsyncpa [#allocation4], 0
    %s18 = scalar_lea.sflag [#allocation4], 1
    %19 = vsyncpa %s18, 0
    loop: start=0, step=1, limit=4
    $region2: #{tpu_custom_call.1} parent=1 // loop_pre_header
      _
    $region3: #{tpu_custom_call.1} parent=1 // loop_header
      %s21 = sphi 0, %s25
      %p22 = scmp.ge.s32.totalorder %s21, 4
      %s31 = sphi 0, %s33
      %s34 = sphi 0, %s31
      %s35 = sphi 0, %s34
      %s51 = sphi 0, %s35
      %s55 = sphi 0, %s55
      %s57 = sphi 0, %s55
      %s58 = sphi 0, %s57
      %s72 = sphi 0, %s58
      %s76 = sphi 0, %s76
      %s78 = sphi 0, %s76
      %s79 = sphi 0, %s78
      %s93 = sphi 0, %s79
      %s97 = sphi 0, %s97
      %s99 = sphi 0, %s97
      %s100 = sphi 0, %s99
      %s114 = sphi 0, %s100
      %s118 = sphi 0, %s118
      %s120 = sphi 0, %s118
      %s121 = sphi 0, %s120
      %s135 = sphi 0, %s121
      %s139 = sphi 0, %s139
      %s141 = sphi 0, %s139
      %s142 = sphi 0, %s141
      %s156 = sphi 0, %s142
      %s160 = sphi 0, %s160
      %s162 = sphi 0, %s160
      %s163 = sphi 0, %s162
      %s177 = sphi 0, %s163
      %s183 = sphi 0, %s185
      %s186 = sphi 0, %s183
      %s187 = sphi 0, %s186
      %s203 = sphi 0, %s187
      %s209 = sphi 0, %s211
      %s212 = sphi 0, %s209
      %s213 = sphi 0, %s212
      %s229 = sphi 0, %s213
    $region4: #{tpu_custom_call.1} parent=1 // loop_header_branch
      %24 = sbr.rel (%p22) target = $region8
    $region5: #{tpu_custom_call.1} parent=1 // loop_body
      %s26 = ssub.s32 %s21, 1
      %s27 = ssub.s32 %s21, 2
      %s28 = sadd.s32 %s21, 1
      %s29 = ssub.s32 %s21, %s28
      %p30 = scmp.eq.s32.totalorder %s29, 0
      %s32 = sadd.s32 %s31, 1
      %s33 = scalar_select %p30, %s31, %s32
      %p36 = pneg %p30
      %p37 = scmp.eq.s32.totalorder %s21, 1
      %p38 = por %p36, %p37
      %p39 = scmp.ne.s32.totalorder %s31, %s34
      %p40 = scmp.eq.s32.totalorder %s21, 0
      %p41 = por %p39, %p40
      %p42 = scmp.ne.s32.totalorder %s31, %s34
      %p43 = scmp.eq.s32.totalorder %s26, 1
      %p44 = por %p42, %p43
      %p45 = scmp.ne.s32.totalorder %s34, %s35
      %p46 = scmp.eq.s32.totalorder %s26, 0
      %p47 = por %p45, %p46
      %p48 = scmp.ne.s32.totalorder %s34, %s35
      %p49 = scmp.eq.s32.totalorder %s27, 1
      %p50 = por %p48, %p49
      %p52 = scmp.ne.s32.totalorder %s35, %s51
      %p53 = scmp.eq.s32.totalorder %s27, 0
      %p54 = por %p52, %p53
      %s56 = sadd.s32 %s55, 1
      %p59 = scmp.eq.s32.totalorder %s21, 1
      %p60 = scmp.ne.s32.totalorder %s55, %s57
      %p61 = scmp.eq.s32.totalorder %s21, 0
      %p62 = por %p60, %p61
      %p63 = scmp.ne.s32.totalorder %s55, %s57
      %p64 = scmp.eq.s32.totalorder %s26, 1
      %p65 = por %p63, %p64
      %p66 = scmp.ne.s32.totalorder %s57, %s58
      %p67 = scmp.eq.s32.totalorder %s26, 0
      %p68 = por %p66, %p67
      %p69 = scmp.ne.s32.totalorder %s57, %s58
      %p70 = scmp.eq.s32.totalorder %s27, 1
      %p71 = por %p69, %p70
      %p73 = scmp.ne.s32.totalorder %s58, %s72
      %p74 = scmp.eq.s32.totalorder %s27, 0
      %p75 = por %p73, %p74
      %s77 = sadd.s32 %s76, 1
      %p80 = scmp.eq.s32.totalorder %s21, 1
      %p81 = scmp.ne.s32.totalorder %s76, %s78
      %p82 = scmp.eq.s32.totalorder %s21, 0
      %p83 = por %p81, %p82
      %p84 = scmp.ne.s32.totalorder %s76, %s78
      %p85 = scmp.eq.s32.totalorder %s26, 1
      %p86 = por %p84, %p85
      %p87 = scmp.ne.s32.totalorder %s78, %s79
      %p88 = scmp.eq.s32.totalorder %s26, 0
      %p89 = por %p87, %p88
      %p90 = scmp.ne.s32.totalorder %s78, %s79
      %p91 = scmp.eq.s32.totalorder %s27, 1
      %p92 = por %p90, %p91
      %p94 = scmp.ne.s32.totalorder %s79, %s93
      %p95 = scmp.eq.s32.totalorder %s27, 0
      %p96 = por %p94, %p95
      %s98 = sadd.s32 %s97, 1
      %p101 = scmp.eq.s32.totalorder %s21, 1
      %p102 = scmp.ne.s32.totalorder %s97, %s99
      %p103 = scmp.eq.s32.totalorder %s21, 0
      %p104 = por %p102, %p103
      %p105 = scmp.ne.s32.totalorder %s97, %s99
      %p106 = scmp.eq.s32.totalorder %s26, 1
      %p107 = por %p105, %p106
      %p108 = scmp.ne.s32.totalorder %s99, %s100
      %p109 = scmp.eq.s32.totalorder %s26, 0
      %p110 = por %p108, %p109
      %p111 = scmp.ne.s32.totalorder %s99, %s100
      %p112 = scmp.eq.s32.totalorder %s27, 1
      %p113 = por %p111, %p112
      %p115 = scmp.ne.s32.totalorder %s100, %s114
      %p116 = scmp.eq.s32.totalorder %s27, 0
      %p117 = por %p115, %p116
      %s119 = sadd.s32 %s118, 1
      %p122 = scmp.eq.s32.totalorder %s21, 1
      %p123 = scmp.ne.s32.totalorder %s118, %s120
      %p124 = scmp.eq.s32.totalorder %s21, 0
      %p125 = por %p123, %p124
      %p126 = scmp.ne.s32.totalorder %s118, %s120
      %p127 = scmp.eq.s32.totalorder %s26, 1
      %p128 = por %p126, %p127
      %p129 = scmp.ne.s32.totalorder %s120, %s121
      %p130 = scmp.eq.s32.totalorder %s26, 0
      %p131 = por %p129, %p130
      %p132 = scmp.ne.s32.totalorder %s120, %s121
      %p133 = scmp.eq.s32.totalorder %s27, 1
      %p134 = por %p132, %p133
      %p136 = scmp.ne.s32.totalorder %s121, %s135
      %p137 = scmp.eq.s32.totalorder %s27, 0
      %p138 = por %p136, %p137
      %s140 = sadd.s32 %s139, 1
      %p143 = scmp.eq.s32.totalorder %s21, 1
      %p144 = scmp.ne.s32.totalorder %s139, %s141
      %p145 = scmp.eq.s32.totalorder %s21, 0
      %p146 = por %p144, %p145
      %p147 = scmp.ne.s32.totalorder %s139, %s141
      %p148 = scmp.eq.s32.totalorder %s26, 1
      %p149 = por %p147, %p148
      %p150 = scmp.ne.s32.totalorder %s141, %s142
      %p151 = scmp.eq.s32.totalorder %s26, 0
      %p152 = por %p150, %p151
      %p153 = scmp.ne.s32.totalorder %s141, %s142
      %p154 = scmp.eq.s32.totalorder %s27, 1
      %p155 = por %p153, %p154
      %p157 = scmp.ne.s32.totalorder %s142, %s156
      %p158 = scmp.eq.s32.totalorder %s27, 0
      %p159 = por %p157, %p158
      %s161 = sadd.s32 %s160, 1
      %p164 = scmp.eq.s32.totalorder %s21, 1
      %p165 = scmp.ne.s32.totalorder %s160, %s162
      %p166 = scmp.eq.s32.totalorder %s21, 0
      %p167 = por %p165, %p166
      %p168 = scmp.ne.s32.totalorder %s160, %s162
      %p169 = scmp.eq.s32.totalorder %s26, 1
      %p170 = por %p168, %p169
      %p171 = scmp.ne.s32.totalorder %s162, %s163
      %p172 = scmp.eq.s32.totalorder %s26, 0
      %p173 = por %p171, %p172
      %p174 = scmp.ne.s32.totalorder %s162, %s163
      %p175 = scmp.eq.s32.totalorder %s27, 1
      %p176 = por %p174, %p175
      %p178 = scmp.ne.s32.totalorder %s163, %s177
      %p179 = scmp.eq.s32.totalorder %s27, 0
      %p180 = por %p178, %p179
      %s181 = ssub.s32 %s21, %s28
      %p182 = scmp.eq.s32.totalorder %s181, 0
      %s184 = sadd.s32 %s183, 1
      %s185 = scalar_select %p182, %s183, %s184
      %p188 = pneg %p182
      %p189 = scmp.eq.s32.totalorder %s21, 1
      %p190 = por %p188, %p189
      %p191 = scmp.ne.s32.totalorder %s183, %s186
      %p192 = scmp.eq.s32.totalorder %s21, 0
      %p193 = por %p191, %p192
      %p194 = scmp.ne.s32.totalorder %s183, %s186
      %p195 = scmp.eq.s32.totalorder %s26, 1
      %p196 = por %p194, %p195
      %p197 = scmp.ne.s32.totalorder %s186, %s187
      %p198 = scmp.eq.s32.totalorder %s26, 0
      %p199 = por %p197, %p198
      %p200 = scmp.ne.s32.totalorder %s186, %s187
      %p201 = scmp.eq.s32.totalorder %s27, 1
      %p202 = por %p200, %p201
      %p204 = scmp.ne.s32.totalorder %s187, %s203
      %p205 = scmp.eq.s32.totalorder %s27, 0
      %p206 = por %p204, %p205
      %s207 = ssub.s32 %s21, %s28
      %p208 = scmp.eq.s32.totalorder %s207, 0
      %s210 = sadd.s32 %s209, 1
      %s211 = scalar_select %p208, %s209, %s210
      %p214 = pneg %p208
      %p215 = scmp.eq.s32.totalorder %s21, 1
      %p216 = por %p214, %p215
      %p217 = scmp.ne.s32.totalorder %s209, %s212
      %p218 = scmp.eq.s32.totalorder %s21, 0
      %p219 = por %p217, %p218
      %p220 = scmp.ne.s32.totalorder %s209, %s212
      %p221 = scmp.eq.s32.totalorder %s26, 1
      %p222 = por %p220, %p221
      %p223 = scmp.ne.s32.totalorder %s212, %s213
      %p224 = scmp.eq.s32.totalorder %s26, 0
      %p225 = por %p223, %p224
      %p226 = scmp.ne.s32.totalorder %s212, %s213
      %p227 = scmp.eq.s32.totalorder %s27, 1
      %p228 = por %p226, %p227
      %p230 = scmp.ne.s32.totalorder %s213, %s229
      %p231 = scmp.eq.s32.totalorder %s27, 0
      %p232 = por %p230, %p231
      %p233 = scmp.le.s32.totalorder 1, %s21
      %p234 = scmp.lt.s32.totalorder %s21, 3
      %p235 = pnand %p233, %p234
      %p236 = pneg %p235
      // Predicated region
      $region9: #{tpu_custom_call.1} parent=5 // pred_check
        _
      $region10: #{tpu_custom_call.1} parent=5 // pred_check_branch
        %238 = sbr.rel (%p235) target = $region12
      $region11: #{tpu_custom_call.1} parent=5 // pred_region
        %s239 = ssub.s32 %s21, 1
        // Predicated region
        $region13: #{tpu_custom_call.1} parent=11 // pred_check
          %p240 = pneg %p68
        $region14: #{tpu_custom_call.1} parent=11 // pred_check_branch
          %242 = sbr.rel (%p240) target = $region16
        $region15: #{tpu_custom_call.1} parent=11 // pred_region
          %s244 = ssub.s32 256, 256
          %245 = vsyncadd [#allocation6], %s244
          %s246 = sshll.u32 [#allocation5], 4
          %s247 = int_to_ptr.vmem [resolvable:$true] %s246
          %252 = dma.hbm_to_vmem [thread:$0]  %s1, 256, %s247, [#allocation6], 64, 64, 4
        $region16: #{tpu_custom_call.1} parent=11 // pred_fallthru
          _
        // Predicated region
        $region17: #{tpu_custom_call.1} parent=11 // pred_check
          %p253 = pneg %p89
        $region18: #{tpu_custom_call.1} parent=11 // pred_check_branch
          %255 = sbr.rel (%p253) target = $region20
        $region19: #{tpu_custom_call.1} parent=11 // pred_region
          _
        $region20: #{tpu_custom_call.1} parent=11 // pred_fallthru
          _
        // Predicated region
        $region21: #{tpu_custom_call.1} parent=11 // pred_check
          %p256 = pneg %p110
        $region22: #{tpu_custom_call.1} parent=11 // pred_check_branch
          %258 = sbr.rel (%p256) target = $region24
        $region23: #{tpu_custom_call.1} parent=11 // pred_region
          %s260 = ssub.s32 256, 256
          %261 = vsyncadd [#allocation6], %s260
          %s262 = sshll.u32 [#allocation7], 4
          %s263 = int_to_ptr.vmem [resolvable:$true] %s262
          %268 = dma.hbm_to_vmem [thread:$0]  %s3, 256, %s263, [#allocation6], 64, 64, 4
        $region24: #{tpu_custom_call.1} parent=11 // pred_fallthru
          _
        // Predicated region
        $region25: #{tpu_custom_call.1} parent=11 // pred_check
          %p269 = pneg %p131
        $region26: #{tpu_custom_call.1} parent=11 // pred_check_branch
          %271 = sbr.rel (%p269) target = $region28
        $region27: #{tpu_custom_call.1} parent=11 // pred_region
          _
        $region28: #{tpu_custom_call.1} parent=11 // pred_fallthru
          _
        // Predicated region
        $region29: #{tpu_custom_call.1} parent=11 // pred_check
          %p272 = pneg %p152
        $region30: #{tpu_custom_call.1} parent=11 // pred_check_branch
          %274 = sbr.rel (%p272) target = $region32
        $region31: #{tpu_custom_call.1} parent=11 // pred_region
          _
        $region32: #{tpu_custom_call.1} parent=11 // pred_fallthru
          _
        // Predicated region
        $region33: #{tpu_custom_call.1} parent=11 // pred_check
          %p275 = pneg %p173
        $region34: #{tpu_custom_call.1} parent=11 // pred_check_branch
          %277 = sbr.rel (%p275) target = $region36
        $region35: #{tpu_custom_call.1} parent=11 // pred_region
          _
        $region36: #{tpu_custom_call.1} parent=11 // pred_fallthru
          _
      $region12: #{tpu_custom_call.1} parent=5 // pred_fallthru
        _
      %p278 = scmp.lt.s32.totalorder %s21, 2
      // Predicated region
      $region37: #{tpu_custom_call.1} parent=5 // pred_check
        %p279 = pneg %p278
      $region38: #{tpu_custom_call.1} parent=5 // pred_check_branch
        %281 = sbr.rel (%p279) target = $region40
      $region39: #{tpu_custom_call.1} parent=5 // pred_region
        // Predicated region
        $region41: #{tpu_custom_call.1} parent=39 // pred_check
          %p282 = pneg %p41
        $region42: #{tpu_custom_call.1} parent=39 // pred_check_branch
          %284 = sbr.rel (%p282) target = $region44
        $region43: #{tpu_custom_call.1} parent=39 // pred_region
          %s285 = sand.u32 %s31, 1
          %s286 = scalar_lea.sflag [#allocation3], %s285
          %s287 = sand.u32 %s31, 1
          %s288 = smul.addr %s287, 4
          %s289 = scalar_lea.vmem [#allocation2], %s288
          %s291 = ssub.s32 64, 64
          %292 = vsyncadd %s286, %s291
          %s293 = smul.addr %s21, 64
          %s294 = scalar_lea.hbm %s0, %s293
          %s296 = sshll.u32 %s289, 4
          %s297 = int_to_ptr.vmem [resolvable:$true] %s296
          %299 = dma.hbm_to_vmem [thread:$0]  %s294, 64, %s297, %s286
        $region44: #{tpu_custom_call.1} parent=39 // pred_fallthru
          _
        // Predicated region
        $region45: #{tpu_custom_call.1} parent=39 // pred_check
          %p300 = pneg %p193
        $region46: #{tpu_custom_call.1} parent=39 // pred_check_branch
          %302 = sbr.rel (%p300) target = $region48
        $region47: #{tpu_custom_call.1} parent=39 // pred_region
          %p303 = scmp.lt.s32.totalorder %s21, 1
          %s304 = scalar_select %p303, %s21, 1
          %s305 = scalar_lea.vmem %s7, %s304
        $region48: #{tpu_custom_call.1} parent=39 // pred_fallthru
          _
      $region40: #{tpu_custom_call.1} parent=5 // pred_fallthru
        _
      %p306 = scmp.le.s32.totalorder 1, %s21
      %p307 = scmp.lt.s32.totalorder %s21, 3
      %p308 = pnand %p306, %p307
      %p309 = pneg %p308
      // Predicated region
      $region49: #{tpu_custom_call.1} parent=5 // pred_check
        _
      $region50: #{tpu_custom_call.1} parent=5 // pred_check_branch
        %311 = sbr.rel (%p308) target = $region52
      $region51: #{tpu_custom_call.1} parent=5 // pred_region
        %s312 = ssub.s32 %s21, 1
        %s313 = sand.u32 %s34, 1
        %s314 = scalar_lea.sflag [#allocation3], %s313
        %s315 = sand.u32 %s34, 1
        %s316 = smul.addr %s315, 4
        %s317 = scalar_lea.vmem [#allocation2], %s316
        // Predicated region
        $region53: #{tpu_custom_call.1} parent=51 // pred_check
          %p318 = pneg %p47
        $region54: #{tpu_custom_call.1} parent=51 // pred_check_branch
          %320 = sbr.rel (%p318) target = $region56
        $region55: #{tpu_custom_call.1} parent=51 // pred_region
          %321 = dma.done %s314, 64
        $region56: #{tpu_custom_call.1} parent=51 // pred_fallthru
          _
        // Predicated region
        $region57: #{tpu_custom_call.1} parent=51 // pred_check
          %p322 = pneg %p68
        $region58: #{tpu_custom_call.1} parent=51 // pred_check_branch
          %324 = sbr.rel (%p322) target = $region60
        $region59: #{tpu_custom_call.1} parent=51 // pred_region
          %325 = dma.done [#allocation6], 256
        $region60: #{tpu_custom_call.1} parent=51 // pred_fallthru
          _
        // Predicated region
        $region61: #{tpu_custom_call.1} parent=51 // pred_check
          %p326 = pneg %p110
        $region62: #{tpu_custom_call.1} parent=51 // pred_check_branch
          %328 = sbr.rel (%p326) target = $region64
        $region63: #{tpu_custom_call.1} parent=51 // pred_region
          %329 = dma.done [#allocation6], 256
        $region64: #{tpu_custom_call.1} parent=51 // pred_fallthru
          _
        %s330 = sand.u32 %s34, 1
        %s331 = scalar_lea.sflag [#allocation3], %s330
        %s332 = sand.u32 %s34, 1
        %s333 = smul.addr %s332, 4
        %s334 = scalar_lea.vmem [#allocation2], %s333
        %p335 = pneg %p47
        %p336 = pneg %p44
        %p337 = pneg %p68
        %p338 = pneg %p65
        %p339 = pneg %p89
        %p340 = pneg %p86
        %p341 = pneg %p110
        %p342 = pneg %p107
        %p343 = pneg %p131
        %p344 = pneg %p128
        %p345 = pneg %p152
        %p346 = pneg %p149
        %p347 = pneg %p173
        %p348 = pneg %p170
        %p349 = scmp.lt.s32.totalorder %s26, 1
        %s350 = scalar_select %p349, %s26, 1
        %s351 = scalar_lea.vmem %s7, %s350
        %p352 = pneg %p199
        %p353 = pneg %p196
        %p354 = pneg %p225
        %p355 = pneg %p222
        %s356 = sand.u32 %s212, 1
        %s357 = scalar_lea.sflag [#allocation4], %s356
        %s358 = sand.u32 %s212, 1
        %s359 = smul.addr %s358, 4
        %s360 = scalar_lea.vmem [#allocation8], %s359
        %p361 = scmp.lt.s32.totalorder %s26, 1
        %s362 = scalar_select %p361, %s26, 1
        %s363 = scalar_lea.vmem %s7, %s362
        %v365 = vld [vmem:[%s317] sm:$0xf]
        %v366 = vld [vmem:[#allocation5] sm:$0xf]
        %v367 = vld [vmem:[#allocation5 + $0x4] sm:$0xf]
        %v368 = vld [vmem:[#allocation5 + $0x8] sm:$0xf]
        %v369 = vld [vmem:[#allocation5 + $0xc] sm:$0xf]
        %v370 = vld [vmem:[%s2] sm:$0x1]
        %v372 = vlaneseq
        %v373 = vshrl.u32 %v372, 7
        %v374 = vsub.s32 0, %v373
        %v375 = vrot.slane %v370, %v374
        %v381 = vunpack.c.l.b16 %v366
        %v382 = vunpack.c.l.b16 %v367
        %v383 = vunpack.c.l.b16 %v368
        %v384 = vunpack.c.l.b16 %v369
        %v385 = vpack.c.b16 %v382, %v381
        %v386 = vpack.c.b16 %v384, %v383
        %vm389 = vcmask 261120
        %v391 = vsel %vm389, %v365, 0
        %393 = vmatprep.subr.bf16.mxu0 0
        %394 = vmatpush1.bf16.msra.mxu0 0
        %395 = vmatprep.subr.bf16.mxu0 0
        %396 = vmatpush1.bf16.msra.mxu0 0
        %397 = vmatprep.subr.bf16.mxu0 0
        %398 = vmatpush1.bf16.msra.mxu0 0
        %399 = vmatprep.subr.bf16.mxu0 0
        %400 = vmatpush1.bf16.msra.mxu0 0
        %401 = vmatprep.subr.bf16.mxu0 0
        %402 = vmatpush1.bf16.msra.mxu0 0
        %403 = vmatprep.subr.bf16.mxu0 0
        %404 = vmatpush1.bf16.msra.mxu0 0
        %405 = vmatprep.subr.bf16.mxu0 0
        %406 = vmatpush1.bf16.msra.mxu0 %v386
        %407 = vmatprep.subr.bf16.mxu0 0
        %408 = vmatpush1.bf16.msra.mxu0 %v385
        %409 = vmatprep.subr.bf16.mxu0 0
        %410 = vmatpush2.bf16.msra.mxu0 0
        %411 = vmatprep.subr.bf16.mxu0 0
        %412 = vmatpush2.bf16.msra.mxu0 0
        %413 = vmatprep.subr.bf16.mxu0 0
        %414 = vmatpush2.bf16.msra.mxu0 0
        %415 = vmatprep.subr.bf16.mxu0 0
        %416 = vmatpush2.bf16.msra.mxu0 0
        %417 = vmatprep.subr.bf16.mxu0 0
        %418 = vmatpush2.bf16.msra.mxu0 0
        %419 = vmatprep.subr.bf16.mxu0 0
        %420 = vmatpush2.bf16.msra.mxu0 0
        %421 = vmatprep.subr.bf16.mxu0 0
        %422 = vmatpush2.bf16.msra.mxu0 0
        %423 = vmatprep.subr.bf16.mxu0 0
        %424 = vmatpush2.bf16.msra.mxu0 0
        %425 = vmatprep.mubr.bf16.mxu0 0
        %426 = vmatmul.mubr.bf16.gmra.mxu0 %v391
        %v427 = vpop.f32.mrf.mxu0
        %v428 = vadd.f32 %v375, %v427
        %v429 = vpop.f32.mrf.mxu0
        %v430 = vpop.f32.mrf.mxu0
        %v431 = vpop.f32.mrf.mxu0
        %432 = vdwg.mxu0
        %v433 = vpack.c.bf16 %v428, %v428
        %v434 = vld [vmem:[%s363] sm:$0x1]
        %436 = vrot.lane.b32.xlu0 %v433, 120
        %v437 = vpop.permute.xlu0 %436
        %438 = vrot.lane.b32.xlu0 %v433, 112
        %v439 = vpop.permute.xlu0 %438
        %440 = vrot.lane.b32.xlu0 %v433, 104
        %v441 = vpop.permute.xlu0 %440
        %v443 = vunpack.c.l.s4 1983009808
        %v444 = vunpack.c.0.s8 %v443
        %v445 = vlaneseq
        %v446 = vshrl.u32 %v445, 7
        %v447 = vsub.s32 %v444, %v446
        %v448 = vrot.slane %v433, %v447
        %v451 = vunpack.c.l.s4 1983009808
        %v452 = vunpack.c.0.s8 %v451
        %v453 = vlaneseq
        %v454 = vshrl.u32 %v453, 7
        %v455 = vsub.s32 %v452, %v454
        %v456 = vrot.slane %v439, %v455
        %v457 = vcombine.low %v448, %v456
        %v458 = vcombine.high %v448, %v456
        %v460 = vunpack.c.l.s4 1934713408
        %v461 = vunpack.c.0.s8 %v460
        %v462 = vlaneseq
        %v463 = vshrl.u32 %v462, 7
        %v464 = vsub.s32 %v461, %v463
        %v465 = vrot.slane %v457, %v464
        %v467 = vunpack.c.l.s4 1934713408
        %v468 = vunpack.c.0.s8 %v467
        %v469 = vlaneseq
        %v470 = vshrl.u32 %v469, 7
        %v471 = vsub.s32 %v468, %v470
        %v472 = vrot.slane %v458, %v471
        %v473 = vcombine.high %v465, 0
        %v474 = vcombine.high %v472, 0
        %v477 = vunpack.c.l.s4 1983009808
        %v478 = vunpack.c.0.s8 %v477
        %v479 = vlaneseq
        %v480 = vshrl.u32 %v479, 7
        %v481 = vsub.s32 %v478, %v480
        %v482 = vrot.slane %v437, %v481
        %v485 = vunpack.c.l.s4 1983009808
        %v486 = vunpack.c.0.s8 %v485
        %v487 = vlaneseq
        %v488 = vshrl.u32 %v487, 7
        %v489 = vsub.s32 %v486, %v488
        %v490 = vrot.slane %v441, %v489
        %v491 = vcombine.low %v482, %v490
        %v492 = vcombine.high %v482, %v490
        %v494 = vunpack.c.l.s4 1934713408
        %v495 = vunpack.c.0.s8 %v494
        %v496 = vlaneseq
        %v497 = vshrl.u32 %v496, 7
        %v498 = vsub.s32 %v495, %v497
        %v499 = vrot.slane %v491, %v498
        %v501 = vunpack.c.l.s4 1934713408
        %v502 = vunpack.c.0.s8 %v501
        %v503 = vlaneseq
        %v504 = vshrl.u32 %v503, 7
        %v505 = vsub.s32 %v502, %v504
        %v506 = vrot.slane %v492, %v505
        %v507 = vcombine.high %v499, 0
        %v508 = vcombine.high %v506, 0
        %v511 = vpack.i.b16 %v499, %v465
        %v513 = vshrl.u32 %v465, 16
        %v514 = vshrl.u32 %v499, 16
        %v515 = vpack.i.b16 %v514, %v513
        %v519 = vpack.i.b16 %v507, %v473
        %v521 = vshrl.u32 %v473, 16
        %v522 = vshrl.u32 %v507, 16
        %v523 = vpack.i.b16 %v522, %v521
        %v527 = vpack.i.b16 %v506, %v472
        %v529 = vshrl.u32 %v472, 16
        %v530 = vshrl.u32 %v506, 16
        %v531 = vpack.i.b16 %v530, %v529
        %v535 = vpack.i.b16 %v508, %v474
        %v537 = vshrl.u32 %v474, 16
        %v538 = vshrl.u32 %v508, 16
        %v539 = vpack.i.b16 %v538, %v537
        %v541 = vcombine.low %v511, %v527
        %v543 = vunpack.c.l.s4 1983009808
        %v544 = vunpack.c.0.s8 %v543
        %v545 = vlaneseq
        %v546 = vshrl.u32 %v545, 7
        %v547 = vsub.s32 %v544, %v546
        %v548 = vrot.slane %v541, %v547
        %v549 = vcombine.low %v519, %v535
        %v551 = vunpack.c.l.s4 1983009808
        %v552 = vunpack.c.0.s8 %v551
        %v553 = vlaneseq
        %v554 = vshrl.u32 %v553, 7
        %v555 = vsub.s32 %v552, %v554
        %v556 = vrot.slane %v549, %v555
        %v557 = vcombine.low %v548, %v556
        %v559 = vunpack.c.l.s4 1934713408
        %v560 = vunpack.c.0.s8 %v559
        %v561 = vlaneseq
        %v562 = vshrl.u32 %v561, 7
        %v563 = vsub.s32 %v560, %v562
        %v564 = vrot.slane %v557, %v563
        %v565 = vcombine.high %v564, 0
        %v566 = vcombine.low %v515, %v531
        %v568 = vunpack.c.l.s4 1983009808
        %v569 = vunpack.c.0.s8 %v568
        %v570 = vlaneseq
        %v571 = vshrl.u32 %v570, 7
        %v572 = vsub.s32 %v569, %v571
        %v573 = vrot.slane %v566, %v572
        %v574 = vcombine.low %v523, %v539
        %v576 = vunpack.c.l.s4 1983009808
        %v577 = vunpack.c.0.s8 %v576
        %v578 = vlaneseq
        %v579 = vshrl.u32 %v578, 7
        %v580 = vsub.s32 %v577, %v579
        %v581 = vrot.slane %v574, %v580
        %v582 = vcombine.low %v573, %v581
        %v584 = vunpack.c.l.s4 1934713408
        %v585 = vunpack.c.0.s8 %v584
        %v586 = vlaneseq
        %v587 = vshrl.u32 %v586, 7
        %v588 = vsub.s32 %v585, %v587
        %v589 = vrot.slane %v582, %v588
        %v590 = vcombine.high %v589, 0
        %v593 = vpack.i.b16 %v589, %v564
        %v594 = vshrl.u32 %v564, 16
        %v595 = vshrl.u32 %v589, 16
        %v596 = vpack.i.b16 %v595, %v594
        %v599 = vpack.i.b16 %v590, %v565
        %v600 = vshrl.u32 %v565, 16
        %v601 = vshrl.u32 %v590, 16
        %v602 = vpack.i.b16 %v601, %v600
        %603 = vrot.lane.b32.xlu0 %v433, 96
        %v604 = vpop.permute.xlu0 %603
        %605 = vrot.lane.b32.xlu0 %v437, 96
        %v606 = vpop.permute.xlu0 %605
        %607 = vrot.lane.b32.xlu0 %v439, 96
        %v608 = vpop.permute.xlu0 %607
        %609 = vrot.lane.b32.xlu0 %v441, 96
        %v610 = vpop.permute.xlu0 %609
        %v613 = vunpack.c.l.s4 1983009808
        %v614 = vunpack.c.0.s8 %v613
        %v615 = vlaneseq
        %v616 = vshrl.u32 %v615, 7
        %v617 = vsub.s32 %v614, %v616
        %v618 = vrot.slane %v604, %v617
        %v621 = vunpack.c.l.s4 1983009808
        %v622 = vunpack.c.0.s8 %v621
        %v623 = vlaneseq
        %v624 = vshrl.u32 %v623, 7
        %v625 = vsub.s32 %v622, %v624
        %v626 = vrot.slane %v608, %v625
        %v627 = vcombine.low %v618, %v626
        %v628 = vcombine.high %v618, %v626
        %v630 = vunpack.c.l.s4 1934713408
        %v631 = vunpack.c.0.s8 %v630
        %v632 = vlaneseq
        %v633 = vshrl.u32 %v632, 7
        %v634 = vsub.s32 %v631, %v633
        %v635 = vrot.slane %v627, %v634
        %v637 = vunpack.c.l.s4 1934713408
        %v638 = vunpack.c.0.s8 %v637
        %v639 = vlaneseq
        %v640 = vshrl.u32 %v639, 7
        %v641 = vsub.s32 %v638, %v640
        %v642 = vrot.slane %v628, %v641
        %v643 = vcombine.high %v635, 0
        %v644 = vcombine.high %v642, 0
        %v647 = vunpack.c.l.s4 1983009808
        %v648 = vunpack.c.0.s8 %v647
        %v649 = vlaneseq
        %v650 = vshrl.u32 %v649, 7
        %v651 = vsub.s32 %v648, %v650
        %v652 = vrot.slane %v606, %v651
        %v655 = vunpack.c.l.s4 1983009808
        %v656 = vunpack.c.0.s8 %v655
        %v657 = vlaneseq
        %v658 = vshrl.u32 %v657, 7
        %v659 = vsub.s32 %v656, %v658
        %v660 = vrot.slane %v610, %v659
        %v661 = vcombine.low %v652, %v660
        %v662 = vcombine.high %v652, %v660
        %v664 = vunpack.c.l.s4 1934713408
        %v665 = vunpack.c.0.s8 %v664
        %v666 = vlaneseq
        %v667 = vshrl.u32 %v666, 7
        %v668 = vsub.s32 %v665, %v667
        %v669 = vrot.slane %v661, %v668
        %v671 = vunpack.c.l.s4 1934713408
        %v672 = vunpack.c.0.s8 %v671
        %v673 = vlaneseq
        %v674 = vshrl.u32 %v673, 7
        %v675 = vsub.s32 %v672, %v674
        %v676 = vrot.slane %v662, %v675
        %v677 = vcombine.high %v669, 0
        %v678 = vcombine.high %v676, 0
        %v681 = vpack.i.b16 %v669, %v635
        %v683 = vshrl.u32 %v635, 16
        %v684 = vshrl.u32 %v669, 16
        %v685 = vpack.i.b16 %v684, %v683
        %v689 = vpack.i.b16 %v677, %v643
        %v691 = vshrl.u32 %v643, 16
        %v692 = vshrl.u32 %v677, 16
        %v693 = vpack.i.b16 %v692, %v691
        %v697 = vpack.i.b16 %v676, %v642
        %v699 = vshrl.u32 %v642, 16
        %v700 = vshrl.u32 %v676, 16
        %v701 = vpack.i.b16 %v700, %v699
        %v705 = vpack.i.b16 %v678, %v644
        %v707 = vshrl.u32 %v644, 16
        %v708 = vshrl.u32 %v678, 16
        %v709 = vpack.i.b16 %v708, %v707
        %v711 = vcombine.low %v681, %v697
        %v713 = vunpack.c.l.s4 1983009808
        %v714 = vunpack.c.0.s8 %v713
        %v715 = vlaneseq
        %v716 = vshrl.u32 %v715, 7
        %v717 = vsub.s32 %v714, %v716
        %v718 = vrot.slane %v711, %v717
        %v719 = vcombine.low %v689, %v705
        %v721 = vunpack.c.l.s4 1983009808
        %v722 = vunpack.c.0.s8 %v721
        %v723 = vlaneseq
        %v724 = vshrl.u32 %v723, 7
        %v725 = vsub.s32 %v722, %v724
        %v726 = vrot.slane %v719, %v725
        %v727 = vcombine.low %v718, %v726
        %v729 = vunpack.c.l.s4 1934713408
        %v730 = vunpack.c.0.s8 %v729
        %v731 = vlaneseq
        %v732 = vshrl.u32 %v731, 7
        %v733 = vsub.s32 %v730, %v732
        %v734 = vrot.slane %v727, %v733
        %v735 = vcombine.high %v734, 0
        %v736 = vcombine.low %v685, %v701
        %v738 = vunpack.c.l.s4 1983009808
        %v739 = vunpack.c.0.s8 %v738
        %v740 = vlaneseq
        %v741 = vshrl.u32 %v740, 7
        %v742 = vsub.s32 %v739, %v741
        %v743 = vrot.slane %v736, %v742
        %v744 = vcombine.low %v693, %v709
        %v746 = vunpack.c.l.s4 1983009808
        %v747 = vunpack.c.0.s8 %v746
        %v748 = vlaneseq
        %v749 = vshrl.u32 %v748, 7
        %v750 = vsub.s32 %v747, %v749
        %v751 = vrot.slane %v744, %v750
        %v752 = vcombine.low %v743, %v751
        %v754 = vunpack.c.l.s4 1934713408
        %v755 = vunpack.c.0.s8 %v754
        %v756 = vlaneseq
        %v757 = vshrl.u32 %v756, 7
        %v758 = vsub.s32 %v755, %v757
        %v759 = vrot.slane %v752, %v758
        %v760 = vcombine.high %v759, 0
        %v763 = vpack.i.b16 %v759, %v734
        %v764 = vshrl.u32 %v734, 16
        %v765 = vshrl.u32 %v759, 16
        %v766 = vpack.i.b16 %v765, %v764
        %v769 = vpack.i.b16 %v760, %v735
        %v770 = vshrl.u32 %v735, 16
        %v771 = vshrl.u32 %v760, 16
        %v772 = vpack.i.b16 %v771, %v770
        %773 = vrot.lane.b32.xlu0 %v433, 64
        %v774 = vpop.permute.xlu0 %773
        %775 = vrot.lane.b32.xlu0 %v437, 64
        %v776 = vpop.permute.xlu0 %775
        %777 = vrot.lane.b32.xlu0 %v439, 64
        %v778 = vpop.permute.xlu0 %777
        %779 = vrot.lane.b32.xlu0 %v441, 64
        %v780 = vpop.permute.xlu0 %779
        %v783 = vunpack.c.l.s4 1983009808
        %v784 = vunpack.c.0.s8 %v783
        %v785 = vlaneseq
        %v786 = vshrl.u32 %v785, 7
        %v787 = vsub.s32 %v784, %v786
        %v788 = vrot.slane %v774, %v787
        %v791 = vunpack.c.l.s4 1983009808
        %v792 = vunpack.c.0.s8 %v791
        %v793 = vlaneseq
        %v794 = vshrl.u32 %v793, 7
        %v795 = vsub.s32 %v792, %v794
        %v796 = vrot.slane %v778, %v795
        %v797 = vcombine.low %v788, %v796
        %v798 = vcombine.high %v788, %v796
        %v800 = vunpack.c.l.s4 1934713408
        %v801 = vunpack.c.0.s8 %v800
        %v802 = vlaneseq
        %v803 = vshrl.u32 %v802, 7
        %v804 = vsub.s32 %v801, %v803
        %v805 = vrot.slane %v797, %v804
        %v807 = vunpack.c.l.s4 1934713408
        %v808 = vunpack.c.0.s8 %v807
        %v809 = vlaneseq
        %v810 = vshrl.u32 %v809, 7
        %v811 = vsub.s32 %v808, %v810
        %v812 = vrot.slane %v798, %v811
        %v813 = vcombine.high %v805, 0
        %v814 = vcombine.high %v812, 0
        %v817 = vunpack.c.l.s4 1983009808
        %v818 = vunpack.c.0.s8 %v817
        %v819 = vlaneseq
        %v820 = vshrl.u32 %v819, 7
        %v821 = vsub.s32 %v818, %v820
        %v822 = vrot.slane %v776, %v821
        %v825 = vunpack.c.l.s4 1983009808
        %v826 = vunpack.c.0.s8 %v825
        %v827 = vlaneseq
        %v828 = vshrl.u32 %v827, 7
        %v829 = vsub.s32 %v826, %v828
        %v830 = vrot.slane %v780, %v829
        %v831 = vcombine.low %v822, %v830
        %v832 = vcombine.high %v822, %v830
        %v834 = vunpack.c.l.s4 1934713408
        %v835 = vunpack.c.0.s8 %v834
        %v836 = vlaneseq
        %v837 = vshrl.u32 %v836, 7
        %v838 = vsub.s32 %v835, %v837
        %v839 = vrot.slane %v831, %v838
        %v841 = vunpack.c.l.s4 1934713408
        %v842 = vunpack.c.0.s8 %v841
        %v843 = vlaneseq
        %v844 = vshrl.u32 %v843, 7
        %v845 = vsub.s32 %v842, %v844
        %v846 = vrot.slane %v832, %v845
        %v847 = vcombine.high %v839, 0
        %v848 = vcombine.high %v846, 0
        %v851 = vpack.i.b16 %v839, %v805
        %v853 = vshrl.u32 %v805, 16
        %v854 = vshrl.u32 %v839, 16
        %v855 = vpack.i.b16 %v854, %v853
        %v859 = vpack.i.b16 %v847, %v813
        %v861 = vshrl.u32 %v813, 16
        %v862 = vshrl.u32 %v847, 16
        %v863 = vpack.i.b16 %v862, %v861
        %v867 = vpack.i.b16 %v846, %v812
        %v869 = vshrl.u32 %v812, 16
        %v870 = vshrl.u32 %v846, 16
        %v871 = vpack.i.b16 %v870, %v869
        %v875 = vpack.i.b16 %v848, %v814
        %v877 = vshrl.u32 %v814, 16
        %v878 = vshrl.u32 %v848, 16
        %v879 = vpack.i.b16 %v878, %v877
        %v881 = vcombine.low %v851, %v867
        %v883 = vunpack.c.l.s4 1983009808
        %v884 = vunpack.c.0.s8 %v883
        %v885 = vlaneseq
        %v886 = vshrl.u32 %v885, 7
        %v887 = vsub.s32 %v884, %v886
        %v888 = vrot.slane %v881, %v887
        %v889 = vcombine.low %v859, %v875
        %v891 = vunpack.c.l.s4 1983009808
        %v892 = vunpack.c.0.s8 %v891
        %v893 = vlaneseq
        %v894 = vshrl.u32 %v893, 7
        %v895 = vsub.s32 %v892, %v894
        %v896 = vrot.slane %v889, %v895
        %v897 = vcombine.low %v888, %v896
        %v899 = vunpack.c.l.s4 1934713408
        %v900 = vunpack.c.0.s8 %v899
        %v901 = vlaneseq
        %v902 = vshrl.u32 %v901, 7
        %v903 = vsub.s32 %v900, %v902
        %v904 = vrot.slane %v897, %v903
        %v905 = vcombine.high %v904, 0
        %v906 = vcombine.low %v855, %v871
        %v908 = vunpack.c.l.s4 1983009808
        %v909 = vunpack.c.0.s8 %v908
        %v910 = vlaneseq
        %v911 = vshrl.u32 %v910, 7
        %v912 = vsub.s32 %v909, %v911
        %v913 = vrot.slane %v906, %v912
        %v914 = vcombine.low %v863, %v879
        %v916 = vunpack.c.l.s4 1983009808
        %v917 = vunpack.c.0.s8 %v916
        %v918 = vlaneseq
        %v919 = vshrl.u32 %v918, 7
        %v920 = vsub.s32 %v917, %v919
        %v921 = vrot.slane %v914, %v920
        %v922 = vcombine.low %v913, %v921
        %v924 = vunpack.c.l.s4 1934713408
        %v925 = vunpack.c.0.s8 %v924
        %v926 = vlaneseq
        %v927 = vshrl.u32 %v926, 7
        %v928 = vsub.s32 %v925, %v927
        %v929 = vrot.slane %v922, %v928
        %v930 = vcombine.high %v929, 0
        %v933 = vpack.i.b16 %v929, %v904
        %v934 = vshrl.u32 %v904, 16
        %v935 = vshrl.u32 %v929, 16
        %v936 = vpack.i.b16 %v935, %v934
        %v939 = vpack.i.b16 %v930, %v905
        %v940 = vshrl.u32 %v905, 16
        %v941 = vshrl.u32 %v930, 16
        %v942 = vpack.i.b16 %v941, %v940
        %v944 = vlaneseq
        %v945 = vshrl.u32 %v944, 7
        %v946 = vsub.s32 0, %v945
        %v947 = vrot.slane %v434, %v946
        %vm949 = vcmask 64512
        %v951 = vsel %vm949, %v593, 0
        %v954 = vsel %vm949, %v763, 0
        %956 = vmatprep.subr.bf16.mxu0 0
        %957 = vmatpush1.bf16.xpose.msra.mxu0 0
        %958 = vmatprep.subr.bf16.mxu0 0
        %959 = vmatpush1.bf16.xpose.msra.mxu0 0
        %960 = vmatprep.subr.bf16.mxu0 0
        %961 = vmatpush1.bf16.xpose.msra.mxu0 0
        %962 = vmatprep.subr.bf16.mxu0 0
        %963 = vmatpush1.bf16.xpose.msra.mxu0 0
        %964 = vmatprep.subr.bf16.mxu0 0
        %965 = vmatpush1.bf16.xpose.msra.mxu0 0
        %966 = vmatprep.subr.bf16.mxu0 0
        %967 = vmatpush1.bf16.xpose.msra.mxu0 0
        %968 = vmatprep.subr.bf16.mxu0 0
        %969 = vmatpush1.bf16.xpose.msra.mxu0 0
        %970 = vmatprep.subr.bf16.mxu0 0
        %971 = vmatpush1.bf16.xpose.msra.mxu0 %v954
        %972 = vmatprep.subr.bf16.mxu0 0
        %973 = vmatpush2.bf16.xpose.msra.mxu0 0
        %974 = vmatprep.subr.bf16.mxu0 0
        %975 = vmatpush2.bf16.xpose.msra.mxu0 0
        %976 = vmatprep.subr.bf16.mxu0 0
        %977 = vmatpush2.bf16.xpose.msra.mxu0 0
        %978 = vmatprep.subr.bf16.mxu0 0
        %979 = vmatpush2.bf16.xpose.msra.mxu0 0
        %980 = vmatprep.subr.bf16.mxu0 0
        %981 = vmatpush2.bf16.xpose.msra.mxu0 0
        %982 = vmatprep.subr.bf16.mxu0 0
        %983 = vmatpush2.bf16.xpose.msra.mxu0 0
        %984 = vmatprep.subr.bf16.mxu0 0
        %985 = vmatpush2.bf16.xpose.msra.mxu0 0
        %986 = vmatprep.subr.bf16.mxu0 0
        %987 = vmatpush2.bf16.xpose.msra.mxu0 0
        %988 = vmatprep.mubr.bf16.mxu0 0
        %989 = vmatmul.mubr.bf16.gmra.mxu0 %v951
        %v990 = vpop.f32.mrf.mxu0
        %v991 = vadd.f32 %v947, %v990
        %v992 = vpop.f32.mrf.mxu0
        %v993 = vpop.f32.mrf.mxu0
        %v994 = vpop.f32.mrf.mxu0
        %995 = vdwg.mxu0
        %v997 = vsel %vm949, %v596, 0
        %v1000 = vsel %vm949, %v766, 0
        %1002 = vmatprep.subr.bf16.mxu0 0
        %1003 = vmatpush1.bf16.xpose.msra.mxu0 0
        %1004 = vmatprep.subr.bf16.mxu0 0
        %1005 = vmatpush1.bf16.xpose.msra.mxu0 0
        %1006 = vmatprep.subr.bf16.mxu0 0
        %1007 = vmatpush1.bf16.xpose.msra.mxu0 0
        %1008 = vmatprep.subr.bf16.mxu0 0
        %1009 = vmatpush1.bf16.xpose.msra.mxu0 0
        %1010 = vmatprep.subr.bf16.mxu0 0
        %1011 = vmatpush1.bf16.xpose.msra.mxu0 0
        %1012 = vmatprep.subr.bf16.mxu0 0
        %1013 = vmatpush1.bf16.xpose.msra.mxu0 0
        %1014 = vmatprep.subr.bf16.mxu0 0
        %1015 = vmatpush1.bf16.xpose.msra.mxu0 0
        %1016 = vmatprep.subr.bf16.mxu0 0
        %1017 = vmatpush1.bf16.xpose.msra.mxu0 %v1000
        %1018 = vmatprep.subr.bf16.mxu0 0
        %1019 = vmatpush2.bf16.xpose.msra.mxu0 0
        %1020 = vmatprep.subr.bf16.mxu0 0
        %1021 = vmatpush2.bf16.xpose.msra.mxu0 0
        %1022 = vmatprep.subr.bf16.mxu0 0
        %1023 = vmatpush2.bf16.xpose.msra.mxu0 0
        %1024 = vmatprep.subr.bf16.mxu0 0
        %1025 = vmatpush2.bf16.xpose.msra.mxu0 0
        %1026 = vmatprep.subr.bf16.mxu0 0
        %1027 = vmatpush2.bf16.xpose.msra.mxu0 0
        %1028 = vmatprep.subr.bf16.mxu0 0
        %1029 = vmatpush2.bf16.xpose.msra.mxu0 0
        %1030 = vmatprep.subr.bf16.mxu0 0
        %1031 = vmatpush2.bf16.xpose.msra.mxu0 0
        %1032 = vmatprep.subr.bf16.mxu0 0
        %1033 = vmatpush2.bf16.xpose.msra.mxu0 0
        %1034 = vmatprep.mubr.bf16.mxu0 0
        %1035 = vmatmul.mubr.bf16.gmra.mxu0 %v997
        %v1036 = vpop.f32.mrf.mxu0
        %v1037 = vadd.f32 %v947, %v1036
        %v1038 = vpop.f32.mrf.mxu0
        %v1039 = vpop.f32.mrf.mxu0
        %v1040 = vpop.f32.mrf.mxu0
        %1041 = vdwg.mxu0
        %v1043 = vsel %vm949, %v599, 0
        %v1046 = vsel %vm949, %v769, 0
        %1048 = vmatprep.subr.bf16.mxu0 0
        %1049 = vmatpush1.bf16.xpose.msra.mxu0 0
        %1050 = vmatprep.subr.bf16.mxu0 0
        %1051 = vmatpush1.bf16.xpose.msra.mxu0 0
        %1052 = vmatprep.subr.bf16.mxu0 0
        %1053 = vmatpush1.bf16.xpose.msra.mxu0 0
        %1054 = vmatprep.subr.bf16.mxu0 0
        %1055 = vmatpush1.bf16.xpose.msra.mxu0 0
        %1056 = vmatprep.subr.bf16.mxu0 0
        %1057 = vmatpush1.bf16.xpose.msra.mxu0 0
        %1058 = vmatprep.subr.bf16.mxu0 0
        %1059 = vmatpush1.bf16.xpose.msra.mxu0 0
        %1060 = vmatprep.subr.bf16.mxu0 0
        %1061 = vmatpush1.bf16.xpose.msra.mxu0 0
        %1062 = vmatprep.subr.bf16.mxu0 0
        %1063 = vmatpush1.bf16.xpose.msra.mxu0 %v1046
        %1064 = vmatprep.subr.bf16.mxu0 0
        %1065 = vmatpush2.bf16.xpose.msra.mxu0 0
        %1066 = vmatprep.subr.bf16.mxu0 0
        %1067 = vmatpush2.bf16.xpose.msra.mxu0 0
        %1068 = vmatprep.subr.bf16.mxu0 0
        %1069 = vmatpush2.bf16.xpose.msra.mxu0 0
        %1070 = vmatprep.subr.bf16.mxu0 0
        %1071 = vmatpush2.bf16.xpose.msra.mxu0 0
        %1072 = vmatprep.subr.bf16.mxu0 0
        %1073 = vmatpush2.bf16.xpose.msra.mxu0 0
        %1074 = vmatprep.subr.bf16.mxu0 0
        %1075 = vmatpush2.bf16.xpose.msra.mxu0 0
        %1076 = vmatprep.subr.bf16.mxu0 0
        %1077 = vmatpush2.bf16.xpose.msra.mxu0 0
        %1078 = vmatprep.subr.bf16.mxu0 0
        %1079 = vmatpush2.bf16.xpose.msra.mxu0 0
        %1080 = vmatprep.mubr.bf16.mxu0 0
        %1081 = vmatmul.mubr.bf16.gmra.mxu0 %v1043
        %v1082 = vpop.f32.mrf.mxu0
        %v1083 = vadd.f32 %v947, %v1082
        %v1084 = vpop.f32.mrf.mxu0
        %v1085 = vpop.f32.mrf.mxu0
        %v1086 = vpop.f32.mrf.mxu0
        %1087 = vdwg.mxu0
        %v1089 = vsel %vm949, %v602, 0
        %v1092 = vsel %vm949, %v772, 0
        %1094 = vmatprep.subr.bf16.mxu0 0
        %1095 = vmatpush1.bf16.xpose.msra.mxu0 0
        %1096 = vmatprep.subr.bf16.mxu0 0
        %1097 = vmatpush1.bf16.xpose.msra.mxu0 0
        %1098 = vmatprep.subr.bf16.mxu0 0
        %1099 = vmatpush1.bf16.xpose.msra.mxu0 0
        %1100 = vmatprep.subr.bf16.mxu0 0
        %1101 = vmatpush1.bf16.xpose.msra.mxu0 0
        %1102 = vmatprep.subr.bf16.mxu0 0
        %1103 = vmatpush1.bf16.xpose.msra.mxu0 0
        %1104 = vmatprep.subr.bf16.mxu0 0
        %1105 = vmatpush1.bf16.xpose.msra.mxu0 0
        %1106 = vmatprep.subr.bf16.mxu0 0
        %1107 = vmatpush1.bf16.xpose.msra.mxu0 0
        %1108 = vmatprep.subr.bf16.mxu0 0
        %1109 = vmatpush1.bf16.xpose.msra.mxu0 %v1092
        %1110 = vmatprep.subr.bf16.mxu0 0
        %1111 = vmatpush2.bf16.xpose.msra.mxu0 0
        %1112 = vmatprep.subr.bf16.mxu0 0
        %1113 = vmatpush2.bf16.xpose.msra.mxu0 0
        %1114 = vmatprep.subr.bf16.mxu0 0
        %1115 = vmatpush2.bf16.xpose.msra.mxu0 0
        %1116 = vmatprep.subr.bf16.mxu0 0
        %1117 = vmatpush2.bf16.xpose.msra.mxu0 0
        %1118 = vmatprep.subr.bf16.mxu0 0
        %1119 = vmatpush2.bf16.xpose.msra.mxu0 0
        %1120 = vmatprep.subr.bf16.mxu0 0
        %1121 = vmatpush2.bf16.xpose.msra.mxu0 0
        %1122 = vmatprep.subr.bf16.mxu0 0
        %1123 = vmatpush2.bf16.xpose.msra.mxu0 0
        %1124 = vmatprep.subr.bf16.mxu0 0
        %1125 = vmatpush2.bf16.xpose.msra.mxu0 0
        %1126 = vmatprep.mubr.bf16.mxu0 0
        %1127 = vmatmul.mubr.bf16.gmra.mxu0 %v1089
        %v1128 = vpop.f32.mrf.mxu0
        %v1129 = vadd.f32 %v947, %v1128
        %v1130 = vpop.f32.mrf.mxu0
        %v1131 = vpop.f32.mrf.mxu0
        %v1132 = vpop.f32.mrf.mxu0
        %1133 = vdwg.mxu0
        %v1134 = vsel %vm949, %v991, -inf
        %1135 = vmax.xlane.f32.xlu0 %v1134
        %v1136 = vpop.xlane.xlu0 %1135
        %v1137 = vsel %vm949, %v1037, -inf
        %1138 = vmax.xlane.f32.xlu0 %v1137
        %v1139 = vpop.xlane.xlu0 %1138
        %v1140 = vsel %vm949, %v1083, -inf
        %1141 = vmax.xlane.f32.xlu0 %v1140
        %v1142 = vpop.xlane.xlu0 %1141
        %v1143 = vsel %vm949, %v1129, -inf
        %1144 = vmax.xlane.f32.xlu0 %v1143
        %v1145 = vpop.xlane.xlu0 %1144
        %v1146 = vsub.f32 %v991, %v1136
        %v1147 = vsub.f32 %v1037, %v1139
        %v1148 = vsub.f32 %v1083, %v1142
        %v1149 = vsub.f32 %v1129, %v1145
        %v1150 = vmul.f32 %v1146, 1.442695
        %v1151 = vpow.pop %v1150
        %v1152 = vmul.f32 %v1147, 1.442695
        %v1153 = vpow.pop %v1152
        %v1154 = vmul.f32 %v1148, 1.442695
        %v1155 = vpow.pop %v1154
        %v1156 = vmul.f32 %v1149, 1.442695
        %v1157 = vpow.pop %v1156
        %v1158 = vsel %vm949, %v1151, 0.0
        %1159 = vadd.xlane.f32.xlu0 %v1158
        %v1160 = vpop.xlane.xlu0 %1159
        %v1161 = vsel %vm949, %v1153, 0.0
        %1162 = vadd.xlane.f32.xlu0 %v1161
        %v1163 = vpop.xlane.xlu0 %1162
        %v1164 = vsel %vm949, %v1155, 0.0
        %1165 = vadd.xlane.f32.xlu0 %v1164
        %v1166 = vpop.xlane.xlu0 %1165
        %v1167 = vsel %vm949, %v1157, 0.0
        %1168 = vadd.xlane.f32.xlu0 %v1167
        %v1169 = vpop.xlane.xlu0 %1168
        %v1170 = vrcp.pop %v1160
        %v1171 = vrcp.pop %v1163
        %v1172 = vrcp.pop %v1166
        %v1173 = vrcp.pop %v1169
        %v1174 = vmul.f32 %v1160, %v1170
        %v1175 = vmul.f32 %v1163, %v1171
        %v1176 = vmul.f32 %v1166, %v1172
        %v1177 = vmul.f32 %v1169, %v1173
        %v1178 = vsub.f32 2.0, %v1174
        %v1179 = vsub.f32 2.0, %v1175
        %v1180 = vsub.f32 2.0, %v1176
        %v1181 = vsub.f32 2.0, %v1177
        %v1182 = vmul.f32 %v1170, %v1178
        %v1183 = vmul.f32 %v1171, %v1179
        %v1184 = vmul.f32 %v1172, %v1180
        %v1185 = vmul.f32 %v1173, %v1181
        %v1186 = vmul.f32 %v1151, %v1182
        %v1187 = vmul.f32 %v1153, %v1183
        %v1188 = vmul.f32 %v1155, %v1184
        %v1189 = vmul.f32 %v1157, %v1185
        %v1190 = vpack.c.bf16 %v1186, %v1186
        %v1191 = vpack.c.bf16 %v1187, %v1187
        %v1192 = vpack.c.bf16 %v1188, %v1188
        %v1193 = vpack.c.bf16 %v1189, %v1189
        %v1195 = vsel %vm949, %v1190, 0
        %vm1197 = vcmask 1043456
        %v1199 = vsel %vm1197, %v933, 0
        %1201 = vmatprep.subr.bf16.mxu0 0
        %1202 = vmatpush1.bf16.msra.mxu0 0
        %1203 = vmatprep.subr.bf16.mxu0 0
        %1204 = vmatpush1.bf16.msra.mxu0 0
        %1205 = vmatprep.subr.bf16.mxu0 0
        %1206 = vmatpush1.bf16.msra.mxu0 0
        %1207 = vmatprep.subr.bf16.mxu0 0
        %1208 = vmatpush1.bf16.msra.mxu0 0
        %1209 = vmatprep.subr.bf16.mxu0 0
        %1210 = vmatpush1.bf16.msra.mxu0 0
        %1211 = vmatprep.subr.bf16.mxu0 0
        %1212 = vmatpush1.bf16.msra.mxu0 0
        %1213 = vmatprep.subr.bf16.mxu0 0
        %1214 = vmatpush1.bf16.msra.mxu0 0
        %1215 = vmatprep.subr.bf16.mxu0 0
        %1216 = vmatpush1.bf16.msra.mxu0 %v1199
        %1217 = vmatprep.subr.bf16.mxu0 0
        %1218 = vmatpush2.bf16.msra.mxu0 0
        %1219 = vmatprep.subr.bf16.mxu0 0
        %1220 = vmatpush2.bf16.msra.mxu0 0
        %1221 = vmatprep.subr.bf16.mxu0 0
        %1222 = vmatpush2.bf16.msra.mxu0 0
        %1223 = vmatprep.subr.bf16.mxu0 0
        %1224 = vmatpush2.bf16.msra.mxu0 0
        %1225 = vmatprep.subr.bf16.mxu0 0
        %1226 = vmatpush2.bf16.msra.mxu0 0
        %1227 = vmatprep.subr.bf16.mxu0 0
        %1228 = vmatpush2.bf16.msra.mxu0 0
        %1229 = vmatprep.subr.bf16.mxu0 0
        %1230 = vmatpush2.bf16.msra.mxu0 0
        %1231 = vmatprep.subr.bf16.mxu0 0
        %1232 = vmatpush2.bf16.msra.mxu0 0
        %1233 = vmatprep.mubr.bf16.mxu0 0
        %1234 = vmatmul.mubr.bf16.gmra.mxu0 %v1195
        %v1235 = vpop.f32.mrf.mxu0
        %v1236 = vadd.f32 0.0, %v1235
        %v1237 = vpop.f32.mrf.mxu0
        %v1238 = vpop.f32.mrf.mxu0
        %v1239 = vpop.f32.mrf.mxu0
        %1240 = vdwg.mxu0
        %v1242 = vsel %vm949, %v1191, 0
        %v1245 = vsel %vm1197, %v936, 0
        %1247 = vmatprep.subr.bf16.mxu0 0
        %1248 = vmatpush1.bf16.msra.mxu0 0
        %1249 = vmatprep.subr.bf16.mxu0 0
        %1250 = vmatpush1.bf16.msra.mxu0 0
        %1251 = vmatprep.subr.bf16.mxu0 0
        %1252 = vmatpush1.bf16.msra.mxu0 0
        %1253 = vmatprep.subr.bf16.mxu0 0
        %1254 = vmatpush1.bf16.msra.mxu0 0
        %1255 = vmatprep.subr.bf16.mxu0 0
        %1256 = vmatpush1.bf16.msra.mxu0 0
        %1257 = vmatprep.subr.bf16.mxu0 0
        %1258 = vmatpush1.bf16.msra.mxu0 0
        %1259 = vmatprep.subr.bf16.mxu0 0
        %1260 = vmatpush1.bf16.msra.mxu0 0
        %1261 = vmatprep.subr.bf16.mxu0 0
        %1262 = vmatpush1.bf16.msra.mxu0 %v1245
        %1263 = vmatprep.subr.bf16.mxu0 0
        %1264 = vmatpush2.bf16.msra.mxu0 0
        %1265 = vmatprep.subr.bf16.mxu0 0
        %1266 = vmatpush2.bf16.msra.mxu0 0
        %1267 = vmatprep.subr.bf16.mxu0 0
        %1268 = vmatpush2.bf16.msra.mxu0 0
        %1269 = vmatprep.subr.bf16.mxu0 0
        %1270 = vmatpush2.bf16.msra.mxu0 0
        %1271 = vmatprep.subr.bf16.mxu0 0
        %1272 = vmatpush2.bf16.msra.mxu0 0
        %1273 = vmatprep.subr.bf16.mxu0 0
        %1274 = vmatpush2.bf16.msra.mxu0 0
        %1275 = vmatprep.subr.bf16.mxu0 0
        %1276 = vmatpush2.bf16.msra.mxu0 0
        %1277 = vmatprep.subr.bf16.mxu0 0
        %1278 = vmatpush2.bf16.msra.mxu0 0
        %1279 = vmatprep.mubr.bf16.mxu0 0
        %1280 = vmatmul.mubr.bf16.gmra.mxu0 %v1242
        %v1281 = vpop.f32.mrf.mxu0
        %v1282 = vadd.f32 0.0, %v1281
        %v1283 = vpop.f32.mrf.mxu0
        %v1284 = vpop.f32.mrf.mxu0
        %v1285 = vpop.f32.mrf.mxu0
        %1286 = vdwg.mxu0
        %v1288 = vsel %vm949, %v1192, 0
        %v1291 = vsel %vm1197, %v939, 0
        %1293 = vmatprep.subr.bf16.mxu0 0
        %1294 = vmatpush1.bf16.msra.mxu0 0
        %1295 = vmatprep.subr.bf16.mxu0 0
        %1296 = vmatpush1.bf16.msra.mxu0 0
        %1297 = vmatprep.subr.bf16.mxu0 0
        %1298 = vmatpush1.bf16.msra.mxu0 0
        %1299 = vmatprep.subr.bf16.mxu0 0
        %1300 = vmatpush1.bf16.msra.mxu0 0
        %1301 = vmatprep.subr.bf16.mxu0 0
        %1302 = vmatpush1.bf16.msra.mxu0 0
        %1303 = vmatprep.subr.bf16.mxu0 0
        %1304 = vmatpush1.bf16.msra.mxu0 0
        %1305 = vmatprep.subr.bf16.mxu0 0
        %1306 = vmatpush1.bf16.msra.mxu0 0
        %1307 = vmatprep.subr.bf16.mxu0 0
        %1308 = vmatpush1.bf16.msra.mxu0 %v1291
        %1309 = vmatprep.subr.bf16.mxu0 0
        %1310 = vmatpush2.bf16.msra.mxu0 0
        %1311 = vmatprep.subr.bf16.mxu0 0
        %1312 = vmatpush2.bf16.msra.mxu0 0
        %1313 = vmatprep.subr.bf16.mxu0 0
        %1314 = vmatpush2.bf16.msra.mxu0 0
        %1315 = vmatprep.subr.bf16.mxu0 0
        %1316 = vmatpush2.bf16.msra.mxu0 0
        %1317 = vmatprep.subr.bf16.mxu0 0
        %1318 = vmatpush2.bf16.msra.mxu0 0
        %1319 = vmatprep.subr.bf16.mxu0 0
        %1320 = vmatpush2.bf16.msra.mxu0 0
        %1321 = vmatprep.subr.bf16.mxu0 0
        %1322 = vmatpush2.bf16.msra.mxu0 0
        %1323 = vmatprep.subr.bf16.mxu0 0
        %1324 = vmatpush2.bf16.msra.mxu0 0
        %1325 = vmatprep.mubr.bf16.mxu0 0
        %1326 = vmatmul.mubr.bf16.gmra.mxu0 %v1288
        %v1327 = vpop.f32.mrf.mxu0
        %v1328 = vadd.f32 0.0, %v1327
        %v1329 = vpop.f32.mrf.mxu0
        %v1330 = vpop.f32.mrf.mxu0
        %v1331 = vpop.f32.mrf.mxu0
        %1332 = vdwg.mxu0
        %v1334 = vsel %vm949, %v1193, 0
        %v1337 = vsel %vm1197, %v942, 0
        %1339 = vmatprep.subr.bf16.mxu0 0
        %1340 = vmatpush1.bf16.msra.mxu0 0
        %1341 = vmatprep.subr.bf16.mxu0 0
        %1342 = vmatpush1.bf16.msra.mxu0 0
        %1343 = vmatprep.subr.bf16.mxu0 0
        %1344 = vmatpush1.bf16.msra.mxu0 0
        %1345 = vmatprep.subr.bf16.mxu0 0
        %1346 = vmatpush1.bf16.msra.mxu0 0
        %1347 = vmatprep.subr.bf16.mxu0 0
        %1348 = vmatpush1.bf16.msra.mxu0 0
        %1349 = vmatprep.subr.bf16.mxu0 0
        %1350 = vmatpush1.bf16.msra.mxu0 0
        %1351 = vmatprep.subr.bf16.mxu0 0
        %1352 = vmatpush1.bf16.msra.mxu0 0
        %1353 = vmatprep.subr.bf16.mxu0 0
        %1354 = vmatpush1.bf16.msra.mxu0 %v1337
        %1355 = vmatprep.subr.bf16.mxu0 0
        %1356 = vmatpush2.bf16.msra.mxu0 0
        %1357 = vmatprep.subr.bf16.mxu0 0
        %1358 = vmatpush2.bf16.msra.mxu0 0
        %1359 = vmatprep.subr.bf16.mxu0 0
        %1360 = vmatpush2.bf16.msra.mxu0 0
        %1361 = vmatprep.subr.bf16.mxu0 0
        %1362 = vmatpush2.bf16.msra.mxu0 0
        %1363 = vmatprep.subr.bf16.mxu0 0
        %1364 = vmatpush2.bf16.msra.mxu0 0
        %1365 = vmatprep.subr.bf16.mxu0 0
        %1366 = vmatpush2.bf16.msra.mxu0 0
        %1367 = vmatprep.subr.bf16.mxu0 0
        %1368 = vmatpush2.bf16.msra.mxu0 0
        %1369 = vmatprep.subr.bf16.mxu0 0
        %1370 = vmatpush2.bf16.msra.mxu0 0
        %1371 = vmatprep.mubr.bf16.mxu0 0
        %1372 = vmatmul.mubr.bf16.gmra.mxu0 %v1334
        %v1373 = vpop.f32.mrf.mxu0
        %v1374 = vadd.f32 0.0, %v1373
        %v1375 = vpop.f32.mrf.mxu0
        %v1376 = vpop.f32.mrf.mxu0
        %v1377 = vpop.f32.mrf.mxu0
        %1378 = vdwg.mxu0
        %v1379 = vcombine.low %v1236, %v1328
        %v1380 = vcombine.high %v1236, %v1328
        %v1382 = vunpack.c.l.s4 1983009808
        %v1383 = vunpack.c.0.s8 %v1382
        %v1384 = vlaneseq
        %v1385 = vshrl.u32 %v1384, 7
        %v1386 = vsub.s32 %v1383, %v1385
        %v1387 = vrot.slane %v1379, %v1386
        %v1389 = vunpack.c.l.s4 1983009808
        %v1390 = vunpack.c.0.s8 %v1389
        %v1391 = vlaneseq
        %v1392 = vshrl.u32 %v1391, 7
        %v1393 = vsub.s32 %v1390, %v1392
        %v1394 = vrot.slane %v1380, %v1393
        %v1395 = vcombine.low %v1282, %v1374
        %v1396 = vcombine.high %v1282, %v1374
        %v1398 = vunpack.c.l.s4 1983009808
        %v1399 = vunpack.c.0.s8 %v1398
        %v1400 = vlaneseq
        %v1401 = vshrl.u32 %v1400, 7
        %v1402 = vsub.s32 %v1399, %v1401
        %v1403 = vrot.slane %v1395, %v1402
        %v1405 = vunpack.c.l.s4 1983009808
        %v1406 = vunpack.c.0.s8 %v1405
        %v1407 = vlaneseq
        %v1408 = vshrl.u32 %v1407, 7
        %v1409 = vsub.s32 %v1406, %v1408
        %v1410 = vrot.slane %v1396, %v1409
        %v1411 = vcombine.low %v1387, %v1403
        %v1412 = vcombine.high %v1387, %v1403
        %v1414 = vunpack.c.l.s4 1934713408
        %v1415 = vunpack.c.0.s8 %v1414
        %v1416 = vlaneseq
        %v1417 = vshrl.u32 %v1416, 7
        %v1418 = vsub.s32 %v1415, %v1417
        %v1419 = vrot.slane %v1411, %v1418
        %v1421 = vunpack.c.l.s4 1934713408
        %v1422 = vunpack.c.0.s8 %v1421
        %v1423 = vlaneseq
        %v1424 = vshrl.u32 %v1423, 7
        %v1425 = vsub.s32 %v1422, %v1424
        %v1426 = vrot.slane %v1412, %v1425
        %v1427 = vcombine.low %v1394, %v1410
        %v1428 = vcombine.high %v1394, %v1410
        %v1430 = vunpack.c.l.s4 1934713408
        %v1431 = vunpack.c.0.s8 %v1430
        %v1432 = vlaneseq
        %v1433 = vshrl.u32 %v1432, 7
        %v1434 = vsub.s32 %v1431, %v1433
        %v1435 = vrot.slane %v1427, %v1434
        %v1437 = vunpack.c.l.s4 1934713408
        %v1438 = vunpack.c.0.s8 %v1437
        %v1439 = vlaneseq
        %v1440 = vshrl.u32 %v1439, 7
        %v1441 = vsub.s32 %v1438, %v1440
        %v1442 = vrot.slane %v1428, %v1441
        %v1443 = vcombine.high %v1419, 0.0
        %v1444 = vcombine.high %v1426, 0.0
        %v1445 = vcombine.high %v1435, 0.0
        %v1446 = vcombine.high %v1442, 0.0
        %v1447 = vcombine.low %v1419, %v1426
        %v1449 = vunpack.c.l.s4 1983009808
        %v1450 = vunpack.c.0.s8 %v1449
        %v1451 = vlaneseq
        %v1452 = vshrl.u32 %v1451, 7
        %v1453 = vsub.s32 %v1450, %v1452
        %v1454 = vrot.slane %v1447, %v1453
        %v1455 = vcombine.low %v1443, %v1444
        %v1457 = vunpack.c.l.s4 1983009808
        %v1458 = vunpack.c.0.s8 %v1457
        %v1459 = vlaneseq
        %v1460 = vshrl.u32 %v1459, 7
        %v1461 = vsub.s32 %v1458, %v1460
        %v1462 = vrot.slane %v1455, %v1461
        %v1463 = vcombine.low %v1435, %v1442
        %v1465 = vunpack.c.l.s4 1983009808
        %v1466 = vunpack.c.0.s8 %v1465
        %v1467 = vlaneseq
        %v1468 = vshrl.u32 %v1467, 7
        %v1469 = vsub.s32 %v1466, %v1468
        %v1470 = vrot.slane %v1463, %v1469
        %v1471 = vcombine.low %v1445, %v1446
        %v1473 = vunpack.c.l.s4 1983009808
        %v1474 = vunpack.c.0.s8 %v1473
        %v1475 = vlaneseq
        %v1476 = vshrl.u32 %v1475, 7
        %v1477 = vsub.s32 %v1474, %v1476
        %v1478 = vrot.slane %v1471, %v1477
        %v1479 = vcombine.low %v1454, %v1462
        %v1480 = vcombine.high %v1454, %v1462
        %v1482 = vunpack.c.l.s4 1934713408
        %v1483 = vunpack.c.0.s8 %v1482
        %v1484 = vlaneseq
        %v1485 = vshrl.u32 %v1484, 7
        %v1486 = vsub.s32 %v1483, %v1485
        %v1487 = vrot.slane %v1479, %v1486
        %v1489 = vunpack.c.l.s4 1934713408
        %v1490 = vunpack.c.0.s8 %v1489
        %v1491 = vlaneseq
        %v1492 = vshrl.u32 %v1491, 7
        %v1493 = vsub.s32 %v1490, %v1492
        %v1494 = vrot.slane %v1480, %v1493
        %v1495 = vcombine.low %v1470, %v1478
        %v1496 = vcombine.high %v1470, %v1478
        %v1498 = vunpack.c.l.s4 1934713408
        %v1499 = vunpack.c.0.s8 %v1498
        %v1500 = vlaneseq
        %v1501 = vshrl.u32 %v1500, 7
        %v1502 = vsub.s32 %v1499, %v1501
        %v1503 = vrot.slane %v1495, %v1502
        %v1505 = vunpack.c.l.s4 1934713408
        %v1506 = vunpack.c.0.s8 %v1505
        %v1507 = vlaneseq
        %v1508 = vshrl.u32 %v1507, 7
        %v1509 = vsub.s32 %v1506, %v1508
        %v1510 = vrot.slane %v1496, %v1509
        %v1511 = vcombine.low %v1487, %v1503
        %v1512 = vcombine.high %v1487, %v1503
        %v1513 = vcombine.low %v1494, %v1510
        %v1514 = vcombine.high %v1494, %v1510
        %1516 = vrot.lane.b32.xlu0 %v1512, 8
        %v1517 = vpop.permute.xlu0 %1516
        %1520 = vrot.lane.b32.xlu0 %v1513, 16
        %v1521 = vpop.permute.xlu0 %1520
        %1524 = vrot.lane.b32.xlu0 %v1514, 24
        %v1525 = vpop.permute.xlu0 %1524
        %v1527 = vsel %vm949, %v1511, %v1517
        %vm1528 = vcmask 130048
        %v1529 = vsel %vm1528, %v1527, %v1521
        %vm1530 = vcmask 195584
        %v1531 = vsel %vm1530, %v1529, %v1525
        %v1532 = vpack.c.bf16 %v1531, %v1531
        %v1533 = vld [vmem:[#allocation7] sm:$0xf]
        %v1534 = vld [vmem:[#allocation7 + $0x4] sm:$0xf]
        %v1535 = vld [vmem:[#allocation7 + $0x8] sm:$0xf]
        %v1536 = vld [vmem:[#allocation7 + $0xc] sm:$0xf]
        %v1537 = vld [vmem:[%s4] sm:$0x1]
        %v1539 = vlaneseq
        %v1540 = vshrl.u32 %v1539, 7
        %v1541 = vsub.s32 0, %v1540
        %v1542 = vrot.slane %v1537, %v1541
        %v1548 = vunpack.c.l.b16 %v1533
        %v1549 = vunpack.c.l.b16 %v1534
        %v1550 = vunpack.c.l.b16 %v1535
        %v1551 = vunpack.c.l.b16 %v1536
        %v1552 = vpack.c.b16 %v1549, %v1548
        %v1553 = vpack.c.b16 %v1551, %v1550
        %v1557 = vsel %vm389, %v1532, 0
        %1559 = vmatprep.subr.bf16.mxu0 0
        %1560 = vmatpush1.bf16.msra.mxu0 0
        %1561 = vmatprep.subr.bf16.mxu0 0
        %1562 = vmatpush1.bf16.msra.mxu0 0
        %1563 = vmatprep.subr.bf16.mxu0 0
        %1564 = vmatpush1.bf16.msra.mxu0 0
        %1565 = vmatprep.subr.bf16.mxu0 0
        %1566 = vmatpush1.bf16.msra.mxu0 0
        %1567 = vmatprep.subr.bf16.mxu0 0
        %1568 = vmatpush1.bf16.msra.mxu0 0
        %1569 = vmatprep.subr.bf16.mxu0 0
        %1570 = vmatpush1.bf16.msra.mxu0 0
        %1571 = vmatprep.subr.bf16.mxu0 0
        %1572 = vmatpush1.bf16.msra.mxu0 %v1553
        %1573 = vmatprep.subr.bf16.mxu0 0
        %1574 = vmatpush1.bf16.msra.mxu0 %v1552
        %1575 = vmatprep.subr.bf16.mxu0 0
        %1576 = vmatpush2.bf16.msra.mxu0 0
        %1577 = vmatprep.subr.bf16.mxu0 0
        %1578 = vmatpush2.bf16.msra.mxu0 0
        %1579 = vmatprep.subr.bf16.mxu0 0
        %1580 = vmatpush2.bf16.msra.mxu0 0
        %1581 = vmatprep.subr.bf16.mxu0 0
        %1582 = vmatpush2.bf16.msra.mxu0 0
        %1583 = vmatprep.subr.bf16.mxu0 0
        %1584 = vmatpush2.bf16.msra.mxu0 0
        %1585 = vmatprep.subr.bf16.mxu0 0
        %1586 = vmatpush2.bf16.msra.mxu0 0
        %1587 = vmatprep.subr.bf16.mxu0 0
        %1588 = vmatpush2.bf16.msra.mxu0 0
        %1589 = vmatprep.subr.bf16.mxu0 0
        %1590 = vmatpush2.bf16.msra.mxu0 0
        %1591 = vmatprep.mubr.bf16.mxu0 0
        %1592 = vmatmul.mubr.bf16.gmra.mxu0 %v1557
        %v1593 = vpop.f32.mrf.mxu0
        %v1594 = vadd.f32 %v1542, %v1593
        %v1595 = vpop.f32.mrf.mxu0
        %v1596 = vpop.f32.mrf.mxu0
        %v1597 = vpop.f32.mrf.mxu0
        %1598 = vdwg.mxu0
        %v1599 = vunpack.c.l.bf16 %v365
        %v1600 = vadd.f32 %v1594, %v1599
        %v1601 = vld [vmem:[%s5] sm:$0x1]
        %v1602 = vld [vmem:[%s6] sm:$0x1]
        %v1603 = vsel %vm389, %v1600, 0.0
        %1604 = vadd.xlane.f32.xlu0 %v1603
        %v1605 = vpop.xlane.xlu0 %1604
        %v1606 = vrcp.pop 32.0
        %v1607 = vmul.f32 %v1605, %v1606
        %v1608 = vsub.f32 %v1600, %v1607
        %v1609 = vmul.f32 %v1608, %v1608
        %v1610 = vsel %vm389, %v1609, 0.0
        %1611 = vadd.xlane.f32.xlu0 %v1610
        %v1612 = vpop.xlane.xlu0 %1611
        %v1613 = vmul.f32 %v1612, %v1606
        %v1614 = vadd.f32 %v1613, 1e-12
        %v1615 = vrsqrt.pop %v1614
        %v1616 = vmul.f32 %v1608, %v1615
        %v1618 = vlaneseq
        %v1619 = vshrl.u32 %v1618, 7
        %v1620 = vsub.s32 0, %v1619
        %v1621 = vrot.slane %v1601, %v1620
        %v1623 = vmul.f32 %v1616, %v1621
        %v1625 = vlaneseq
        %v1626 = vshrl.u32 %v1625, 7
        %v1627 = vsub.s32 0, %v1626
        %v1628 = vrot.slane %v1602, %v1627
        %v1630 = vadd.f32 %v1623, %v1628
        %v1631 = vpack.c.bf16 %v1630, %v1630
        %vm1632 = vcmask 257024
        %1633 = vst.msk [vmem:[%s360] sm:$0xf] %vm1632, %v1631
        %s1634 = sand.u32 %s212, 1
        %s1635 = scalar_lea.sflag [#allocation4], %s1634
        %s1636 = sand.u32 %s212, 1
        %s1637 = smul.addr %s1636, 4
        %s1638 = scalar_lea.vmem [#allocation8], %s1637
        // Predicated region
        $region65: #{tpu_custom_call.1} parent=51 // pred_check
          %p1639 = pneg %p222
        $region66: #{tpu_custom_call.1} parent=51 // pred_check_branch
          %1641 = sbr.rel (%p1639) target = $region68
        $region67: #{tpu_custom_call.1} parent=51 // pred_region
          %s1643 = ssub.s32 64, 64
          %1644 = vsyncadd %s1635, %s1643
          %s1645 = smul.addr %s26, 64
          %s1646 = scalar_lea.hbm %s8, %s1645
          %s1648 = sshll.u32 %s1638, 4
          %s1649 = int_to_ptr.vmem [resolvable:$true] %s1648
          %1651 = dma.vmem_to_hbm [thread:$0]  %s1649, 64, %s1646, %s1635
        $region68: #{tpu_custom_call.1} parent=51 // pred_fallthru
          _
      $region52: #{tpu_custom_call.1} parent=5 // pred_fallthru
        _
      %p1652 = scmp.le.s32.totalorder 2, %s21
      // Predicated region
      $region69: #{tpu_custom_call.1} parent=5 // pred_check
        %p1653 = pneg %p1652
      $region70: #{tpu_custom_call.1} parent=5 // pred_check_branch
        %1655 = sbr.rel (%p1653) target = $region72
      $region71: #{tpu_custom_call.1} parent=5 // pred_region
        %s1656 = ssub.s32 %s21, 2
        // Predicated region
        $region73: #{tpu_custom_call.1} parent=71 // pred_check
          %p1657 = pneg %p228
        $region74: #{tpu_custom_call.1} parent=71 // pred_check_branch
          %1659 = sbr.rel (%p1657) target = $region76
        $region75: #{tpu_custom_call.1} parent=71 // pred_region
          %s1660 = sand.u32 %s213, 1
          %s1661 = scalar_lea.sflag [#allocation4], %s1660
          %s1662 = sand.u32 %s213, 1
          %s1663 = smul.addr %s1662, 4
          %s1664 = scalar_lea.vmem [#allocation8], %s1663
          %1665 = dma.done %s1661, 64
        $region76: #{tpu_custom_call.1} parent=71 // pred_fallthru
          _
      $region72: #{tpu_custom_call.1} parent=5 // pred_fallthru
        _
    $region6: #{tpu_custom_call.1} parent=1 // loop_footer
      %s25 = sadd.s32 1, %s21
    $region7: #{tpu_custom_call.1} parent=1 // loop_footer_branch
      %20 = sbr.rel target = $region3
    $region8: #{tpu_custom_call.1} parent=1 // loop_exit
      _
    %1666 = vsyncpa [#allocation3], 1
    %s1667 = scalar_lea.sflag [#allocation3], 1
    %1668 = vsyncpa %s1667, 1
    %1669 = vsyncpa [#allocation6], 1
    %1670 = vsyncpa [#allocation4], 1
    %s1671 = scalar_lea.sflag [#allocation4], 1
    %1672 = vsyncpa %s1671, 1

// kernel: tpu_custom_call.1
$region0: #{tpu_custom_call.1}
  #allocation0 [shape = 'u32[]', space=smem, size = 0x4, offset = 0x4, fixed_abs, tag = 'smem constant byte address 0x4 - core index']
  #allocation1 [shape = 'u32[144,128]{1,0:T(1,128)}', space=vmem, size = 0x12000, scoped, tag = 'internal scratch']
  %s0 = inlined_call_operand.hbm [shape: bf16[2,8,32], index: 0, kind: input, shape index: {}]
  %s1 = inlined_call_operand.hbm [shape: bf16[32,96], index: 1, kind: input, shape index: {}]
  %s2 = inlined_call_operand.vmem [shape: f32[1,96], index: 2, kind: input, shape index: {}]
  %s3 = inlined_call_operand.hbm [shape: bf16[32,32], index: 3, kind: input, shape index: {}]
  %s4 = inlined_call_operand.vmem [shape: f32[1,32], index: 4, kind: input, shape index: {}]
  %s5 = inlined_call_operand.vmem [shape: f32[1,32], index: 5, kind: input, shape index: {}]
  %s6 = inlined_call_operand.vmem [shape: f32[1,32], index: 6, kind: input, shape index: {}]
  %s7 = inlined_call_operand.vmem [shape: f32[2,1,8], index: 7, kind: input, shape index: {}]
  %s8 = inlined_call_operand.hbm [shape: bf16[2,8,32], index: 8, kind: output, shape index: {}]
  %s9 = sld [smem:[#allocation0]]
  $region77: #{tpu_custom_call.1} parent=0
    _
  %s11 = ssub.s32 1, %s9
  %s12 = scalar_select 0, %s11, %s9
  $region1: #{tpu_custom_call.1} parent=0
    #allocation2 [shape = 'u8[4096]{0}', space=vmem, size = 0x1000, scoped, tag = 'input window, operand 0']
    #allocation3 [shape = 's32[2]{0}', space=sflag, size = 0x8, scoped, tag = 'scoped memory for tpu_custom_call.1']
    #allocation4 [shape = 's32[2]{0}', space=sflag, size = 0x8, scoped, tag = 'scoped memory for tpu_custom_call.1']
    #allocation5 [shape = 'u8[8192]{0}', space=vmem, size = 0x2000, scoped, tag = 'input window, operand 1, single buffered']
    #allocation6 [shape = 's32[1]{0}', space=sflag, size = 0x4, scoped, tag = 'scoped memory for tpu_custom_call.1']
    #allocation7 [shape = 'u8[8192]{0}', space=vmem, size = 0x2000, scoped, tag = 'input window, operand 3, single buffered']
    #allocation8 [shape = 'u8[4096]{0}', space=vmem, size = 0x1000, scoped, tag = 'output window, operand 0']
    %13 = vsyncpa [#allocation3], 0
    %s14 = scalar_lea.sflag [#allocation3], 1
    %15 = vsyncpa %s14, 0
    %16 = vsyncpa [#allocation6], 0
    %17 = vsyncpa [#allocation4], 0
    %s18 = scalar_lea.sflag [#allocation4], 1
    %19 = vsyncpa %s18, 0
    loop: start=0, step=1, limit=4
    $region2: #{tpu_custom_call.1} parent=1 // loop_pre_header
      _
    $region3: #{tpu_custom_call.1} parent=1 // loop_header
      %s21 = sphi 0, %s25
      %p22 = scmp.ge.s32.totalorder %s21, 4
      %s31 = sphi 0, %s33
      %s34 = sphi 0, %s31
      %s35 = sphi 0, %s34
      %s51 = sphi 0, %s35
      %s55 = sphi 0, %s55
      %s57 = sphi 0, %s55
      %s58 = sphi 0, %s57
      %s72 = sphi 0, %s58
      %s76 = sphi 0, %s76
      %s78 = sphi 0, %s76
      %s79 = sphi 0, %s78
      %s93 = sphi 0, %s79
      %s97 = sphi 0, %s97
      %s99 = sphi 0, %s97
      %s100 = sphi 0, %s99
      %s114 = sphi 0, %s100
      %s118 = sphi 0, %s118
      %s120 = sphi 0, %s118
      %s121 = sphi 0, %s120
      %s135 = sphi 0, %s121
      %s139 = sphi 0, %s139
      %s141 = sphi 0, %s139
      %s142 = sphi 0, %s141
      %s156 = sphi 0, %s142
      %s160 = sphi 0, %s160
      %s162 = sphi 0, %s160
      %s163 = sphi 0, %s162
      %s177 = sphi 0, %s163
      %s183 = sphi 0, %s185
      %s186 = sphi 0, %s183
      %s187 = sphi 0, %s186
      %s203 = sphi 0, %s187
      %s209 = sphi 0, %s211
      %s212 = sphi 0, %s209
      %s213 = sphi 0, %s212
      %s229 = sphi 0, %s213
    $region4: #{tpu_custom_call.1} parent=1 // loop_header_branch
      %24 = sbr.rel (%p22) target = $region8
    $region5: #{tpu_custom_call.1} parent=1 // loop_body
      %s26 = ssub.s32 %s21, 1
      %s27 = ssub.s32 %s21, 2
      %s28 = sadd.s32 %s21, 1
      %s29 = ssub.s32 %s21, %s28
      %p30 = scmp.eq.s32.totalorder %s29, 0
      %s32 = sadd.s32 %s31, 1
      %s33 = scalar_select %p30, %s31, %s32
      %p36 = pneg %p30
      %p37 = scmp.eq.s32.totalorder %s21, 1
      %p38 = por %p36, %p37
      %p39 = scmp.ne.s32.totalorder %s31, %s34
      %p40 = scmp.eq.s32.totalorder %s21, 0
      %p41 = por %p39, %p40
      %p42 = scmp.ne.s32.totalorder %s31, %s34
      %p43 = scmp.eq.s32.totalorder %s26, 1
      %p44 = por %p42, %p43
      %p45 = scmp.ne.s32.totalorder %s34, %s35
      %p46 = scmp.eq.s32.totalorder %s26, 0
      %p47 = por %p45, %p46
      %p48 = scmp.ne.s32.totalorder %s34, %s35
      %p49 = scmp.eq.s32.totalorder %s27, 1
      %p50 = por %p48, %p49
      %p52 = scmp.ne.s32.totalorder %s35, %s51
      %p53 = scmp.eq.s32.totalorder %s27, 0
      %p54 = por %p52, %p53
      %s56 = sadd.s32 %s55, 1
      %p59 = scmp.eq.s32.totalorder %s21, 1
      %p60 = scmp.ne.s32.totalorder %s55, %s57
      %p61 = scmp.eq.s32.totalorder %s21, 0
      %p62 = por %p60, %p61
      %p63 = scmp.ne.s32.totalorder %s55, %s57
      %p64 = scmp.eq.s32.totalorder %s26, 1
      %p65 = por %p63, %p64
      %p66 = scmp.ne.s32.totalorder %s57, %s58
      %p67 = scmp.eq.s32.totalorder %s26, 0
      %p68 = por %p66, %p67
      %p69 = scmp.ne.s32.totalorder %s57, %s58
      %p70 = scmp.eq.s32.totalorder %s27, 1
      %p71 = por %p69, %p70
      %p73 = scmp.ne.s32.totalorder %s58, %s72
      %p74 = scmp.eq.s32.totalorder %s27, 0
      %p75 = por %p73, %p74
      %s77 = sadd.s32 %s76, 1
      %p80 = scmp.eq.s32.totalorder %s21, 1
      %p81 = scmp.ne.s32.totalorder %s76, %s78
      %p82 = scmp.eq.s32.totalorder %s21, 0
      %p83 = por %p81, %p82
      %p84 = scmp.ne.s32.totalorder %s76, %s78
      %p85 = scmp.eq.s32.totalorder %s26, 1
      %p86 = por %p84, %p85
      %p87 = scmp.ne.s32.totalorder %s78, %s79
      %p88 = scmp.eq.s32.totalorder %s26, 0
      %p89 = por %p87, %p88
      %p90 = scmp.ne.s32.totalorder %s78, %s79
      %p91 = scmp.eq.s32.totalorder %s27, 1
      %p92 = por %p90, %p91
      %p94 = scmp.ne.s32.totalorder %s79, %s93
      %p95 = scmp.eq.s32.totalorder %s27, 0
      %p96 = por %p94, %p95
      %s98 = sadd.s32 %s97, 1
      %p101 = scmp.eq.s32.totalorder %s21, 1
      %p102 = scmp.ne.s32.totalorder %s97, %s99
      %p103 = scmp.eq.s32.totalorder %s21, 0
      %p104 = por %p102, %p103
      %p105 = scmp.ne.s32.totalorder %s97, %s99
      %p106 = scmp.eq.s32.totalorder %s26, 1
      %p107 = por %p105, %p106
      %p108 = scmp.ne.s32.totalorder %s99, %s100
      %p109 = scmp.eq.s32.totalorder %s26, 0
      %p110 = por %p108, %p109
      %p111 = scmp.ne.s32.totalorder %s99, %s100
      %p112 = scmp.eq.s32.totalorder %s27, 1
      %p113 = por %p111, %p112
      %p115 = scmp.ne.s32.totalorder %s100, %s114
      %p116 = scmp.eq.s32.totalorder %s27, 0
      %p117 = por %p115, %p116
      %s119 = sadd.s32 %s118, 1
      %p122 = scmp.eq.s32.totalorder %s21, 1
      %p123 = scmp.ne.s32.totalorder %s118, %s120
      %p124 = scmp.eq.s32.totalorder %s21, 0
      %p125 = por %p123, %p124
      %p126 = scmp.ne.s32.totalorder %s118, %s120
      %p127 = scmp.eq.s32.totalorder %s26, 1
      %p128 = por %p126, %p127
      %p129 = scmp.ne.s32.totalorder %s120, %s121
      %p130 = scmp.eq.s32.totalorder %s26, 0
      %p131 = por %p129, %p130
      %p132 = scmp.ne.s32.totalorder %s120, %s121
      %p133 = scmp.eq.s32.totalorder %s27, 1
      %p134 = por %p132, %p133
      %p136 = scmp.ne.s32.totalorder %s121, %s135
      %p137 = scmp.eq.s32.totalorder %s27, 0
      %p138 = por %p136, %p137
      %s140 = sadd.s32 %s139, 1
      %p143 = scmp.eq.s32.totalorder %s21, 1
      %p144 = scmp.ne.s32.totalorder %s139, %s141
      %p145 = scmp.eq.s32.totalorder %s21, 0
      %p146 = por %p144, %p145
      %p147 = scmp.ne.s32.totalorder %s139, %s141
      %p148 = scmp.eq.s32.totalorder %s26, 1
      %p149 = por %p147, %p148
      %p150 = scmp.ne.s32.totalorder %s141, %s142
      %p151 = scmp.eq.s32.totalorder %s26, 0
      %p152 = por %p150, %p151
      %p153 = scmp.ne.s32.totalorder %s141, %s142
      %p154 = scmp.eq.s32.totalorder %s27, 1
      %p155 = por %p153, %p154
      %p157 = scmp.ne.s32.totalorder %s142, %s156
      %p158 = scmp.eq.s32.totalorder %s27, 0
      %p159 = por %p157, %p158
      %s161 = sadd.s32 %s160, 1
      %p164 = scmp.eq.s32.totalorder %s21, 1
      %p165 = scmp.ne.s32.totalorder %s160, %s162
      %p166 = scmp.eq.s32.totalorder %s21, 0
      %p167 = por %p165, %p166
      %p168 = scmp.ne.s32.totalorder %s160, %s162
      %p169 = scmp.eq.s32.totalorder %s26, 1
      %p170 = por %p168, %p169
      %p171 = scmp.ne.s32.totalorder %s162, %s163
      %p172 = scmp.eq.s32.totalorder %s26, 0
      %p173 = por %p171, %p172
      %p174 = scmp.ne.s32.totalorder %s162, %s163
      %p175 = scmp.eq.s32.totalorder %s27, 1
      %p176 = por %p174, %p175
      %p178 = scmp.ne.s32.totalorder %s163, %s177
      %p179 = scmp.eq.s32.totalorder %s27, 0
      %p180 = por %p178, %p179
      %s181 = ssub.s32 %s21, %s28
      %p182 = scmp.eq.s32.totalorder %s181, 0
      %s184 = sadd.s32 %s183, 1
      %s185 = scalar_select %p182, %s183, %s184
      %p188 = pneg %p182
      %p189 = scmp.eq.s32.totalorder %s21, 1
      %p190 = por %p188, %p189
      %p191 = scmp.ne.s32.totalorder %s183, %s186
      %p192 = scmp.eq.s32.totalorder %s21, 0
      %p193 = por %p191, %p192
      %p194 = scmp.ne.s32.totalorder %s183, %s186
      %p195 = scmp.eq.s32.totalorder %s26, 1
      %p196 = por %p194, %p195
      %p197 = scmp.ne.s32.totalorder %s186, %s187
      %p198 = scmp.eq.s32.totalorder %s26, 0
      %p199 = por %p197, %p198
      %p200 = scmp.ne.s32.totalorder %s186, %s187
      %p201 = scmp.eq.s32.totalorder %s27, 1
      %p202 = por %p200, %p201
      %p204 = scmp.ne.s32.totalorder %s187, %s203
      %p205 = scmp.eq.s32.totalorder %s27, 0
      %p206 = por %p204, %p205
      %s207 = ssub.s32 %s21, %s28
      %p208 = scmp.eq.s32.totalorder %s207, 0
      %s210 = sadd.s32 %s209, 1
      %s211 = scalar_select %p208, %s209, %s210
      %p214 = pneg %p208
      %p215 = scmp.eq.s32.totalorder %s21, 1
      %p216 = por %p214, %p215
      %p217 = scmp.ne.s32.totalorder %s209, %s212
      %p218 = scmp.eq.s32.totalorder %s21, 0
      %p219 = por %p217, %p218
      %p220 = scmp.ne.s32.totalorder %s209, %s212
      %p221 = scmp.eq.s32.totalorder %s26, 1
      %p222 = por %p220, %p221
      %p223 = scmp.ne.s32.totalorder %s212, %s213
      %p224 = scmp.eq.s32.totalorder %s26, 0
      %p225 = por %p223, %p224
      %p226 = scmp.ne.s32.totalorder %s212, %s213
      %p227 = scmp.eq.s32.totalorder %s27, 1
      %p228 = por %p226, %p227
      %p230 = scmp.ne.s32.totalorder %s213, %s229
      %p231 = scmp.eq.s32.totalorder %s27, 0
      %p232 = por %p230, %p231
      %p233 = scmp.le.s32.totalorder 1, %s21
      %p234 = scmp.lt.s32.totalorder %s21, 3
      %p235 = pnand %p233, %p234
      %p236 = pneg %p235
      // Predicated region
      $region9: #{tpu_custom_call.1} parent=5 // pred_check
        _
      $region10: #{tpu_custom_call.1} parent=5 // pred_check_branch
        %238 = sbr.rel (%p235) target = $region12
      $region11: #{tpu_custom_call.1} parent=5 // pred_region
        %s239 = ssub.s32 %s21, 1
        // Predicated region
        $region13: #{tpu_custom_call.1} parent=11 // pred_check
          %p240 = pneg %p68
        $region14: #{tpu_custom_call.1} parent=11 // pred_check_branch
          %242 = sbr.rel (%p240) target = $region16
        $region15: #{tpu_custom_call.1} parent=11 // pred_region
          %s244 = ssub.s32 256, 256
          %245 = vsyncadd [#allocation6], %s244
          %s246 = sshll.u32 [#allocation5], 4
          %s247 = int_to_ptr.vmem [resolvable:$true] %s246
          %252 = dma.hbm_to_vmem [thread:$0]  %s1, 256, %s247, [#allocation6], 64, 64, 4
        $region16: #{tpu_custom_call.1} parent=11 // pred_fallthru
          _
        // Predicated region
        $region17: #{tpu_custom_call.1} parent=11 // pred_check
          %p253 = pneg %p89
        $region18: #{tpu_custom_call.1} parent=11 // pred_check_branch
          %255 = sbr.rel (%p253) target = $region20
        $region19: #{tpu_custom_call.1} parent=11 // pred_region
          _
        $region20: #{tpu_custom_call.1} parent=11 // pred_fallthru
          _
        // Predicated region
        $region21: #{tpu_custom_call.1} parent=11 // pred_check
          %p256 = pneg %p110
        $region22: #{tpu_custom_call.1} parent=11 // pred_check_branch
          %258 = sbr.rel (%p256) target = $region24
        $region23: #{tpu_custom_call.1} parent=11 // pred_region
          %s260 = ssub.s32 256, 256
          %261 = vsyncadd [#allocation6], %s260
          %s262 = sshll.u32 [#allocation7], 4
          %s263 = int_to_ptr.vmem [resolvable:$true] %s262
          %268 = dma.hbm_to_vmem [thread:$0]  %s3, 256, %s263, [#allocation6], 64, 64, 4
        $region24: #{tpu_custom_call.1} parent=11 // pred_fallthru
          _
        // Predicated region
        $region25: #{tpu_custom_call.1} parent=11 // pred_check
          %p269 = pneg %p131
        $region26: #{tpu_custom_call.1} parent=11 // pred_check_branch
          %271 = sbr.rel (%p269) target = $region28
        $region27: #{tpu_custom_call.1} parent=11 // pred_region
          _
        $region28: #{tpu_custom_call.1} parent=11 // pred_fallthru
          _
        // Predicated region
        $region29: #{tpu_custom_call.1} parent=11 // pred_check
          %p272 = pneg %p152
        $region30: #{tpu_custom_call.1} parent=11 // pred_check_branch
          %274 = sbr.rel (%p272) target = $region32
        $region31: #{tpu_custom_call.1} parent=11 // pred_region
          _
        $region32: #{tpu_custom_call.1} parent=11 // pred_fallthru
          _
        // Predicated region
        $region33: #{tpu_custom_call.1} parent=11 // pred_check
          %p275 = pneg %p173
        $region34: #{tpu_custom_call.1} parent=11 // pred_check_branch
          %277 = sbr.rel (%p275) target = $region36
        $region35: #{tpu_custom_call.1} parent=11 // pred_region
          _
        $region36: #{tpu_custom_call.1} parent=11 // pred_fallthru
          _
      $region12: #{tpu_custom_call.1} parent=5 // pred_fallthru
        _
      %p278 = scmp.lt.s32.totalorder %s21, 2
      // Predicated region
      $region37: #{tpu_custom_call.1} parent=5 // pred_check
        %p279 = pneg %p278
      $region38: #{tpu_custom_call.1} parent=5 // pred_check_branch
        %281 = sbr.rel (%p279) target = $region40
      $region39: #{tpu_custom_call.1} parent=5 // pred_region
        // Predicated region
        $region41: #{tpu_custom_call.1} parent=39 // pred_check
          %p282 = pneg %p41
        $region42: #{tpu_custom_call.1} parent=39 // pred_check_branch
          %284 = sbr.rel (%p282) target = $region44
        $region43: #{tpu_custom_call.1} parent=39 // pred_region
          %s285 = sand.u32 %s31, 1
          %s286 = scalar_lea.sflag [#allocation3], %s285
          %s287 = sand.u32 %s31, 1
          %s288 = smul.addr %s287, 4
          %s289 = scalar_lea.vmem [#allocation2], %s288
          %s291 = ssub.s32 64, 64
          %292 = vsyncadd %s286, %s291
          %s293 = smul.addr %s21, 64
          %s294 = scalar_lea.hbm %s0, %s293
          %s296 = sshll.u32 %s289, 4
          %s297 = int_to_ptr.vmem [resolvable:$true] %s296
          %299 = dma.hbm_to_vmem [thread:$0]  %s294, 64, %s297, %s286
        $region44: #{tpu_custom_call.1} parent=39 // pred_fallthru
          _
        // Predicated region
        $region45: #{tpu_custom_call.1} parent=39 // pred_check
          %p300 = pneg %p193
        $region46: #{tpu_custom_call.1} parent=39 // pred_check_branch
          %302 = sbr.rel (%p300) target = $region48
        $region47: #{tpu_custom_call.1} parent=39 // pred_region
          %p303 = scmp.lt.s32.totalorder %s21, 1
          %s304 = scalar_select %p303, %s21, 1
          %s305 = scalar_lea.vmem %s7, %s304
        $region48: #{tpu_custom_call.1} parent=39 // pred_fallthru
          _
      $region40: #{tpu_custom_call.1} parent=5 // pred_fallthru
        _
      %p306 = scmp.le.s32.totalorder 1, %s21
      %p307 = scmp.lt.s32.totalorder %s21, 3
      %p308 = pnand %p306, %p307
      %p309 = pneg %p308
      // Predicated region
      $region49: #{tpu_custom_call.1} parent=5 // pred_check
        _
      $region50: #{tpu_custom_call.1} parent=5 // pred_check_branch
        %311 = sbr.rel (%p308) target = $region52
      $region51: #{tpu_custom_call.1} parent=5 // pred_region
        %s312 = ssub.s32 %s21, 1
        %s313 = sand.u32 %s34, 1
        %s314 = scalar_lea.sflag [#allocation3], %s313
        %s315 = sand.u32 %s34, 1
        %s316 = smul.addr %s315, 4
        %s317 = scalar_lea.vmem [#allocation2], %s316
        // Predicated region
        $region53: #{tpu_custom_call.1} parent=51 // pred_check
          %p318 = pneg %p47
        $region54: #{tpu_custom_call.1} parent=51 // pred_check_branch
          %320 = sbr.rel (%p318) target = $region56
        $region55: #{tpu_custom_call.1} parent=51 // pred_region
          %321 = dma.done %s314, 64
        $region56: #{tpu_custom_call.1} parent=51 // pred_fallthru
          _
        // Predicated region
        $region57: #{tpu_custom_call.1} parent=51 // pred_check
          %p322 = pneg %p68
        $region58: #{tpu_custom_call.1} parent=51 // pred_check_branch
          %324 = sbr.rel (%p322) target = $region60
        $region59: #{tpu_custom_call.1} parent=51 // pred_region
          %325 = dma.done [#allocation6], 256
        $region60: #{tpu_custom_call.1} parent=51 // pred_fallthru
          _
        // Predicated region
        $region61: #{tpu_custom_call.1} parent=51 // pred_check
          %p326 = pneg %p110
        $region62: #{tpu_custom_call.1} parent=51 // pred_check_branch
          %328 = sbr.rel (%p326) target = $region64
        $region63: #{tpu_custom_call.1} parent=51 // pred_region
          %329 = dma.done [#allocation6], 256
        $region64: #{tpu_custom_call.1} parent=51 // pred_fallthru
          _
        %s330 = sand.u32 %s34, 1
        %s331 = scalar_lea.sflag [#allocation3], %s330
        %s332 = sand.u32 %s34, 1
        %s333 = smul.addr %s332, 4
        %s334 = scalar_lea.vmem [#allocation2], %s333
        %p335 = pneg %p47
        %p336 = pneg %p44
        %p337 = pneg %p68
        %p338 = pneg %p65
        %p339 = pneg %p89
        %p340 = pneg %p86
        %p341 = pneg %p110
        %p342 = pneg %p107
        %p343 = pneg %p131
        %p344 = pneg %p128
        %p345 = pneg %p152
        %p346 = pneg %p149
        %p347 = pneg %p173
        %p348 = pneg %p170
        %p349 = scmp.lt.s32.totalorder %s26, 1
        %s350 = scalar_select %p349, %s26, 1
        %s351 = scalar_lea.vmem %s7, %s350
        %p352 = pneg %p199
        %p353 = pneg %p196
        %p354 = pneg %p225
        %p355 = pneg %p222
        %s356 = sand.u32 %s212, 1
        %s357 = scalar_lea.sflag [#allocation4], %s356
        %s358 = sand.u32 %s212, 1
        %s359 = smul.addr %s358, 4
        %s360 = scalar_lea.vmem [#allocation8], %s359
        %p361 = scmp.lt.s32.totalorder %s26, 1
        %s362 = scalar_select %p361, %s26, 1
        %s363 = scalar_lea.vmem %s7, %s362
        %v365 = vld [vmem:[%s317] sm:$0xf]
        %v366 = vld [vmem:[#allocation5] sm:$0xf]
        %v367 = vld [vmem:[#allocation5 + $0x4] sm:$0xf]
        %v368 = vld [vmem:[#allocation5 + $0x8] sm:$0xf]
        %v369 = vld [vmem:[#allocation5 + $0xc] sm:$0xf]
        %v370 = vld [vmem:[%s2] sm:$0x1]
        %v372 = vlaneseq
        %v373 = vshrl.u32 %v372, 7
        %v374 = vsub.s32 0, %v373
        %v375 = vrot.slane %v370, %v374
        %v381 = vunpack.c.l.b16 %v366
        %v382 = vunpack.c.l.b16 %v367
        %v383 = vunpack.c.l.b16 %v368
        %v384 = vunpack.c.l.b16 %v369
        %v385 = vpack.c.b16 %v382, %v381
        %v386 = vpack.c.b16 %v384, %v383
        %vm389 = vcmask 261120
        %v391 = vsel %vm389, %v365, 0
        %393 = vmatprep.subr.bf16.mxu0 0
        %394 = vmatpush1.bf16.msra.mxu0 0
        %395 = vmatprep.subr.bf16.mxu0 0
        %396 = vmatpush1.bf16.msra.mxu0 0
        %397 = vmatprep.subr.bf16.mxu0 0
        %398 = vmatpush1.bf16.msra.mxu0 0
        %399 = vmatprep.subr.bf16.mxu0 0
        %400 = vmatpush1.bf16.msra.mxu0 0
        %401 = vmatprep.subr.bf16.mxu0 0
        %402 = vmatpush1.bf16.msra.mxu0 0
        %403 = vmatprep.subr.bf16.mxu0 0
        %404 = vmatpush1.bf16.msra.mxu0 0
        %405 = vmatprep.subr.bf16.mxu0 0
        %406 = vmatpush1.bf16.msra.mxu0 %v386
        %407 = vmatprep.subr.bf16.mxu0 0
        %408 = vmatpush1.bf16.msra.mxu0 %v385
        %409 = vmatprep.subr.bf16.mxu0 0
        %410 = vmatpush2.bf16.msra.mxu0 0
        %411 = vmatprep.subr.bf16.mxu0 0
        %412 = vmatpush2.bf16.msra.mxu0 0
        %413 = vmatprep.subr.bf16.mxu0 0
        %414 = vmatpush2.bf16.msra.mxu0 0
        %415 = vmatprep.subr.bf16.mxu0 0
        %416 = vmatpush2.bf16.msra.mxu0 0
        %417 = vmatprep.subr.bf16.mxu0 0
        %418 = vmatpush2.bf16.msra.mxu0 0
        %419 = vmatprep.subr.bf16.mxu0 0
        %420 = vmatpush2.bf16.msra.mxu0 0
        %421 = vmatprep.subr.bf16.mxu0 0
        %422 = vmatpush2.bf16.msra.mxu0 0
        %423 = vmatprep.subr.bf16.mxu0 0
        %424 = vmatpush2.bf16.msra.mxu0 0
        %425 = vmatprep.mubr.bf16.mxu0 0
        %426 = vmatmul.mubr.bf16.gmra.mxu0 %v391
        %v427 = vpop.f32.mrf.mxu0
        %v428 = vadd.f32 %v375, %v427
        %v429 = vpop.f32.mrf.mxu0
        %v430 = vpop.f32.mrf.mxu0
        %v431 = vpop.f32.mrf.mxu0
        %432 = vdwg.mxu0
        %v433 = vpack.c.bf16 %v428, %v428
        %v434 = vld [vmem:[%s363] sm:$0x1]
        %436 = vrot.lane.b32.xlu0 %v433, 120
        %v437 = vpop.permute.xlu0 %436
        %438 = vrot.lane.b32.xlu0 %v433, 112
        %v439 = vpop.permute.xlu0 %438
        %440 = vrot.lane.b32.xlu0 %v433, 104
        %v441 = vpop.permute.xlu0 %440
        %v443 = vunpack.c.l.s4 1983009808
        %v444 = vunpack.c.0.s8 %v443
        %v445 = vlaneseq
        %v446 = vshrl.u32 %v445, 7
        %v447 = vsub.s32 %v444, %v446
        %v448 = vrot.slane %v433, %v447
        %v451 = vunpack.c.l.s4 1983009808
        %v452 = vunpack.c.0.s8 %v451
        %v453 = vlaneseq
        %v454 = vshrl.u32 %v453, 7
        %v455 = vsub.s32 %v452, %v454
        %v456 = vrot.slane %v439, %v455
        %v457 = vcombine.low %v448, %v456
        %v458 = vcombine.high %v448, %v456
        %v460 = vunpack.c.l.s4 1934713408
        %v461 = vunpack.c.0.s8 %v460
        %v462 = vlaneseq
        %v463 = vshrl.u32 %v462, 7
        %v464 = vsub.s32 %v461, %v463
        %v465 = vrot.slane %v457, %v464
        %v467 = vunpack.c.l.s4 1934713408
        %v468 = vunpack.c.0.s8 %v467
        %v469 = vlaneseq
        %v470 = vshrl.u32 %v469, 7
        %v471 = vsub.s32 %v468, %v470
        %v472 = vrot.slane %v458, %v471
        %v473 = vcombine.high %v465, 0
        %v474 = vcombine.high %v472, 0
        %v477 = vunpack.c.l.s4 1983009808
        %v478 = vunpack.c.0.s8 %v477
        %v479 = vlaneseq
        %v480 = vshrl.u32 %v479, 7
        %v481 = vsub.s32 %v478, %v480
        %v482 = vrot.slane %v437, %v481
        %v485 = vunpack.c.l.s4 1983009808
        %v486 = vunpack.c.0.s8 %v485
        %v487 = vlaneseq
        %v488 = vshrl.u32 %v487, 7
        %v489 = vsub.s32 %v486, %v488
        %v490 = vrot.slane %v441, %v489
        %v491 = vcombine.low %v482, %v490
        %v492 = vcombine.high %v482, %v490
        %v494 = vunpack.c.l.s4 1934713408
        %v495 = vunpack.c.0.s8 %v494
        %v496 = vlaneseq
        %v497 = vshrl.u32 %v496, 7
        %v498 = vsub.s32 %v495, %v497
        %v499 = vrot.slane %v491, %v498
        %v501 = vunpack.c.l.s4 1934713408
        %v502 = vunpack.c.0.s8 %v501
        %v503 = vlaneseq
        %v504 = vshrl.u32 %v503, 7
        %v505 = vsub.s32 %v502, %v504
        %v506 = vrot.slane %v492, %v505
        %v507 = vcombine.high %v499, 0
        %v508 = vcombine.high %v506, 0
        %v511 = vpack.i.b16 %v499, %v465
        %v513 = vshrl.u32 %v465, 16
        %v514 = vshrl.u32 %v499, 16
        %v515 = vpack.i.b16 %v514, %v513
        %v519 = vpack.i.b16 %v507, %v473
        %v521 = vshrl.u32 %v473, 16
        %v522 = vshrl.u32 %v507, 16
        %v523 = vpack.i.b16 %v522, %v521
        %v527 = vpack.i.b16 %v506, %v472
        %v529 = vshrl.u32 %v472, 16
        %v530 = vshrl.u32 %v506, 16
        %v531 = vpack.i.b16 %v530, %v529
        %v535 = vpack.i.b16 %v508, %v474
        %v537 = vshrl.u32 %v474, 16
        %v538 = vshrl.u32 %v508, 16
        %v539 = vpack.i.b16 %v538, %v537
        %v541 = vcombine.low %v511, %v527
        %v543 = vunpack.c.l.s4 1983009808
        %v544 = vunpack.c.0.s8 %v543
        %v545 = vlaneseq
        %v546 = vshrl.u32 %v545, 7
        %v547 = vsub.s32 %v544, %v546
        %v548 = vrot.slane %v541, %v547
        %v549 = vcombine.low %v519, %v535
        %v551 = vunpack.c.l.s4 1983009808
        %v552 = vunpack.c.0.s8 %v551
        %v553 = vlaneseq
        %v554 = vshrl.u32 %v553, 7
        %v555 = vsub.s32 %v552, %v554
        %v556 = vrot.slane %v549, %v555
        %v557 = vcombine.low %v548, %v556
        %v559 = vunpack.c.l.s4 1934713408
        %v560 = vunpack.c.0.s8 %v559
        %v561 = vlaneseq
        %v562 = vshrl.u32 %v561, 7
        %v563 = vsub.s32 %v560, %v562
        %v564 = vrot.slane %v557, %v563
        %v565 = vcombine.high %v564, 0
        %v566 = vcombine.low %v515, %v531
        %v568 = vunpack.c.l.s4 1983009808
        %v569 = vunpack.c.0.s8 %v568
        %v570 = vlaneseq
        %v571 = vshrl.u32 %v570, 7
        %v572 = vsub.s32 %v569, %v571
        %v573 = vrot.slane %v566, %v572
        %v574 = vcombine.low %v523, %v539
        %v576 = vunpack.c.l.s4 1983009808
        %v577 = vunpack.c.0.s8 %v576
        %v578 = vlaneseq
        %v579 = vshrl.u32 %v578, 7
        %v580 = vsub.s32 %v577, %v579
        %v581 = vrot.slane %v574, %v580
        %v582 = vcombine.low %v573, %v581
        %v584 = vunpack.c.l.s4 1934713408
        %v585 = vunpack.c.0.s8 %v584
        %v586 = vlaneseq
        %v587 = vshrl.u32 %v586, 7
        %v588 = vsub.s32 %v585, %v587
        %v589 = vrot.slane %v582, %v588
        %v590 = vcombine.high %v589, 0
        %v593 = vpack.i.b16 %v589, %v564
        %v594 = vshrl.u32 %v564, 16
        %v595 = vshrl.u32 %v589, 16
        %v596 = vpack.i.b16 %v595, %v594
        %v599 = vpack.i.b16 %v590, %v565
        %v600 = vshrl.u32 %v565, 16
        %v601 = vshrl.u32 %v590, 16
        %v602 = vpack.i.b16 %v601, %v600
        %603 = vrot.lane.b32.xlu0 %v433, 96
        %v604 = vpop.permute.xlu0 %603
        %605 = vrot.lane.b32.xlu0 %v437, 96
        %v606 = vpop.permute.xlu0 %605
        %607 = vrot.lane.b32.xlu0 %v439, 96
        %v608 = vpop.permute.xlu0 %607
        %609 = vrot.lane.b32.xlu0 %v441, 96
        %v610 = vpop.permute.xlu0 %609
        %v613 = vunpack.c.l.s4 1983009808
        %v614 = vunpack.c.0.s8 %v613
        %v615 = vlaneseq
        %v616 = vshrl.u32 %v615, 7
        %v617 = vsub.s32 %v614, %v616
        %v618 = vrot.slane %v604, %v617
        %v621 = vunpack.c.l.s4 1983009808
        %v622 = vunpack.c.0.s8 %v621
        %v623 = vlaneseq
        %v624 = vshrl.u32 %v623, 7
        %v625 = vsub.s32 %v622, %v624
        %v626 = vrot.slane %v608, %v625
        %v627 = vcombine.low %v618, %v626
        %v628 = vcombine.high %v618, %v626
        %v630 = vunpack.c.l.s4 1934713408
        %v631 = vunpack.c.0.s8 %v630
        %v632 = vlaneseq
        %v633 = vshrl.u32 %v632, 7
        %v634 = vsub.s32 %v631, %v633
        %v635 = vrot.slane %v627, %v634
        %v637 = vunpack.c.l.s4 1934713408
        %v638 = vunpack.c.0.s8 %v637
        %v639 = vlaneseq
        %v640 = vshrl.u32 %v639, 7
        %v641 = vsub.s32 %v638, %v640
        %v642 = vrot.slane %v628, %v641
        %v643 = vcombine.high %v635, 0
        %v644 = vcombine.high %v642, 0
        %v647 = vunpack.c.l.s4 1983009808
        %v648 = vunpack.c.0.s8 %v647
        %v649 = vlaneseq
        %v650 = vshrl.u32 %v649, 7
        %v651 = vsub.s32 %v648, %v650
        %v652 = vrot.slane %v606, %v651
        %v655 = vunpack.c.l.s4 1983009808
        %v656 = vunpack.c.0.s8 %v655
        %v657 = vlaneseq
        %v658 = vshrl.u32 %v657, 7
        %v659 = vsub.s32 %v656, %v658
        %v660 = vrot.slane %v610, %v659
        %v661 = vcombine.low %v652, %v660
        %v662 = vcombine.high %v652, %v660
        %v664 = vunpack.c.l.s4 1934713408
        %v665 = vunpack.c.0.s8 %v664
        %v666 = vlaneseq
        %v667 = vshrl.u32 %v666, 7
        %v668 = vsub.s32 %v665, %v667
        %v669 = vrot.slane %v661, %v668
        %v671 = vunpack.c.l.s4 1934713408
        %v672 = vunpack.c.0.s8 %v671
        %v673 = vlaneseq
        %v674 = vshrl.u32 %v673, 7
        %v675 = vsub.s32 %v672, %v674
        %v676 = vrot.slane %v662, %v675
        %v677 = vcombine.high %v669, 0
        %v678 = vcombine.high %v676, 0
        %v681 = vpack.i.b16 %v669, %v635
        %v683 = vshrl.u32 %v635, 16
        %v684 = vshrl.u32 %v669, 16
        %v685 = vpack.i.b16 %v684, %v683
        %v689 = vpack.i.b16 %v677, %v643
        %v691 = vshrl.u32 %v643, 16
        %v692 = vshrl.u32 %v677, 16
        %v693 = vpack.i.b16 %v692, %v691
        %v697 = vpack.i.b16 %v676, %v642
        %v699 = vshrl.u32 %v642, 16
        %v700 = vshrl.u32 %v676, 16
        %v701 = vpack.i.b16 %v700, %v699
        %v705 = vpack.i.b16 %v678, %v644
        %v707 = vshrl.u32 %v644, 16
        %v708 = vshrl.u32 %v678, 16
        %v709 = vpack.i.b16 %v708, %v707
        %v711 = vcombine.low %v681, %v697
        %v713 = vunpack.c.l.s4 1983009808
        %v714 = vunpack.c.0.s8 %v713
        %v715 = vlaneseq
        %v716 = vshrl.u32 %v715, 7
        %v717 = vsub.s32 %v714, %v716
        %v718 = vrot.slane %v711, %v717
        %v719 = vcombine.low %v689, %v705
        %v721 = vunpack.c.l.s4 1983009808
        %v722 = vunpack.c.0.s8 %v721
        %v723 = vlaneseq
        %v724 = vshrl.u32 %v723, 7
        %v725 = vsub.s32 %v722, %v724
        %v726 = vrot.slane %v719, %v725
        %v727 = vcombine.low %v718, %v726
        %v729 = vunpack.c.l.s4 1934713408
        %v730 = vunpack.c.0.s8 %v729
        %v731 = vlaneseq
        %v732 = vshrl.u32 %v731, 7
        %v733 = vsub.s32 %v730, %v732
        %v734 = vrot.slane %v727, %v733
        %v735 = vcombine.high %v734, 0
        %v736 = vcombine.low %v685, %v701
        %v738 = vunpack.c.l.s4 1983009808
        %v739 = vunpack.c.0.s8 %v738
        %v740 = vlaneseq
        %v741 = vshrl.u32 %v740, 7
        %v742 = vsub.s32 %v739, %v741
        %v743 = vrot.slane %v736, %v742
        %v744 = vcombine.low %v693, %v709
        %v746 = vunpack.c.l.s4 1983009808
        %v747 = vunpack.c.0.s8 %v746
        %v748 = vlaneseq
        %v749 = vshrl.u32 %v748, 7
        %v750 = vsub.s32 %v747, %v749
        %v751 = vrot.slane %v744, %v750
        %v752 = vcombine.low %v743, %v751
        %v754 = vunpack.c.l.s4 1934713408
        %v755 = vunpack.c.0.s8 %v754
        %v756 = vlaneseq
        %v757 = vshrl.u32 %v756, 7
        %v758 = vsub.s32 %v755, %v757
        %v759 = vrot.slane %v752, %v758
        %v760 = vcombine.high %v759, 0
        %v763 = vpack.i.b16 %v759, %v734
        %v764 = vshrl.u32 %v734, 16
        %v765 = vshrl.u32 %v759, 16
        %v766 = vpack.i.b16 %v765, %v764
        %v769 = vpack.i.b16 %v760, %v735
        %v770 = vshrl.u32 %v735, 16
        %v771 = vshrl.u32 %v760, 16
        %v772 = vpack.i.b16 %v771, %v770
        %773 = vrot.lane.b32.xlu0 %v433, 64
        %v774 = vpop.permute.xlu0 %773
        %775 = vrot.lane.b32.xlu0 %v437, 64
        %v776 = vpop.permute.xlu0 %775
        %777 = vrot.lane.b32.xlu0 %v439, 64
        %v778 = vpop.permute.xlu0 %777
        %779 = vrot.lane.b32.xlu0 %v441, 64
        %v780 = vpop.permute.xlu0 %779
        %v783 = vunpack.c.l.s4 1983009808
        %v784 = vunpack.c.0.s8 %v783
        %v785 = vlaneseq
        %v786 = vshrl.u32 %v785, 7
        %v787 = vsub.s32 %v784, %v786
        %v788 = vrot.slane %v774, %v787
        %v791 = vunpack.c.l.s4 1983009808
        %v792 = vunpack.c.0.s8 %v791
        %v793 = vlaneseq
        %v794 = vshrl.u32 %v793, 7
        %v795 = vsub.s32 %v792, %v794
        %v796 = vrot.slane %v778, %v795
        %v797 = vcombine.low %v788, %v796
        %v798 = vcombine.high %v788, %v796
        %v800 = vunpack.c.l.s4 1934713408
        %v801 = vunpack.c.0.s8 %v800
        %v802 = vlaneseq
        %v803 = vshrl.u32 %v802, 7
        %v804 = vsub.s32 %v801, %v803
        %v805 = vrot.slane %v797, %v804
        %v807 = vunpack.c.l.s4 1934713408
        %v808 = vunpack.c.0.s8 %v807
        %v809 = vlaneseq
        %v810 = vshrl.u32 %v809, 7
        %v811 = vsub.s32 %v808, %v810
        %v812 = vrot.slane %v798, %v811
        %v813 = vcombine.high %v805, 0
        %v814 = vcombine.high %v812, 0
        %v817 = vunpack.c.l.s4 1983009808
        %v818 = vunpack.c.0.s8 %v817
        %v819 = vlaneseq
        %v820 = vshrl.u32 %v819, 7
        %v821 = vsub.s32 %v818, %v820
        %v822 = vrot.slane %v776, %v821
        %v825 = vunpack.c.l.s4 1983009808
        %v826 = vunpack.c.0.s8 %v825
        %v827 = vlaneseq
        %v828 = vshrl.u32 %v827, 7
        %v829 = vsub.s32 %v826, %v828
        %v830 = vrot.slane %v780, %v829
        %v831 = vcombine.low %v822, %v830
        %v832 = vcombine.high %v822, %v830
        %v834 = vunpack.c.l.s4 1934713408
        %v835 = vunpack.c.0.s8 %v834
        %v836 = vlaneseq
        %v837 = vshrl.u32 %v836, 7
        %v838 = vsub.s32 %v835, %v837
        %v839 = vrot.slane %v831, %v838
        %v841 = vunpack.c.l.s4 1934713408
        %v842 = vunpack.c.0.s8 %v841
        %v843 = vlaneseq
        %v844 = vshrl.u32 %v843, 7
        %v845 = vsub.s32 %v842, %v844
        %v846 = vrot.slane %v832, %v845
        %v847 = vcombine.high %v839, 0
        %v848 = vcombine.high %v846, 0
        %v851 = vpack.i.b16 %v839, %v805
        %v853 = vshrl.u32 %v805, 16
        %v854 = vshrl.u32 %v839, 16
        %v855 = vpack.i.b16 %v854, %v853
        %v859 = vpack.i.b16 %v847, %v813
        %v861 = vshrl.u32 %v813, 16
        %v862 = vshrl.u32 %v847, 16
        %v863 = vpack.i.b16 %v862, %v861
        %v867 = vpack.i.b16 %v846, %v812
        %v869 = vshrl.u32 %v812, 16
        %v870 = vshrl.u32 %v846, 16
        %v871 = vpack.i.b16 %v870, %v869
        %v875 = vpack.i.b16 %v848, %v814
        %v877 = vshrl.u32 %v814, 16
        %v878 = vshrl.u32 %v848, 16
        %v879 = vpack.i.b16 %v878, %v877
        %v881 = vcombine.low %v851, %v867
        %v883 = vunpack.c.l.s4 1983009808
        %v884 = vunpack.c.0.s8 %v883
        %v885 = vlaneseq
        %v886 = vshrl.u32 %v885, 7
        %v887 = vsub.s32 %v884, %v886
        %v888 = vrot.slane %v881, %v887
        %v889 = vcombine.low %v859, %v875
        %v891 = vunpack.c.l.s4 1983009808
        %v892 = vunpack.c.0.s8 %v891
        %v893 = vlaneseq
        %v894 = vshrl.u32 %v893, 7
        %v895 = vsub.s32 %v892, %v894
        %v896 = vrot.slane %v889, %v895
        %v897 = vcombine.low %v888, %v896
        %v899 = vunpack.c.l.s4 1934713408
        %v900 = vunpack.c.0.s8 %v899
        %v901 = vlaneseq
        %v902 = vshrl.u32 %v901, 7
        %v903 = vsub.s32 %v900, %v902
        %v904 = vrot.slane %v897, %v903
        %v905 = vcombine.high %v904, 0
        %v906 = vcombine.low %v855, %v871
        %v908 = vunpack.c.l.s4 1983009808
        %v909 = vunpack.c.0.s8 %v908
        %v910 = vlaneseq
        %v911 = vshrl.u32 %v910, 7
        %v912 = vsub.s32 %v909, %v911
        %v913 = vrot.slane %v906, %v912
        %v914 = vcombine.low %v863, %v879
        %v916 = vunpack.c.l.s4 1983009808
        %v917 = vunpack.c.0.s8 %v916
        %v918 = vlaneseq
        %v919 = vshrl.u32 %v918, 7
        %v920 = vsub.s32 %v917, %v919
        %v921 = vrot.slane %v914, %v920
        %v922 = vcombine.low %v913, %v921
        %v924 = vunpack.c.l.s4 1934713408
        %v925 = vunpack.c.0.s8 %v924
        %v926 = vlaneseq
        %v927 = vshrl.u32 %v926, 7
        %v928 = vsub.s32 %v925, %v927
        %v929 = vrot.slane %v922, %v928
        %v930 = vcombine.high %v929, 0
        %v933 = vpack.i.b16 %v929, %v904
        %v934 = vshrl.u32 %v904, 16
        %v935 = vshrl.u32 %v929, 16
        %v936 = vpack.i.b16 %v935, %v934
        %v939 = vpack.i.b16 %v930, %v905
        %v940 = vshrl.u32 %v905, 16
        %v941 = vshrl.u32 %v930, 16
        %v942 = vpack.i.b16 %v941, %v940
        %v944 = vlaneseq
        %v945 = vshrl.u32 %v944, 7
        %v946 = vsub.s32 0, %v945
        %v947 = vrot.slane %v434, %v946
        %vm949 = vcmask 64512
        %v951 = vsel %vm949, %v593, 0
        %v954 = vsel %vm949, %v763, 0
        %956 = vmatprep.subr.bf16.mxu0 0
        %957 = vmatpush1.bf16.xpose.msra.mxu0 0
        %958 = vmatprep.subr.bf16.mxu0 0
        %959 = vmatpush1.bf16.xpose.msra.mxu0 0
        %960 = vmatprep.subr.bf16.mxu0 0
        %961 = vmatpush1.bf16.xpose.msra.mxu0 0
        %962 = vmatprep.subr.bf16.mxu0 0
        %963 = vmatpush1.bf16.xpose.msra.mxu0 0
        %964 = vmatprep.subr.bf16.mxu0 0
        %965 = vmatpush1.bf16.xpose.msra.mxu0 0
        %966 = vmatprep.subr.bf16.mxu0 0
        %967 = vmatpush1.bf16.xpose.msra.mxu0 0
        %968 = vmatprep.subr.bf16.mxu0 0
        %969 = vmatpush1.bf16.xpose.msra.mxu0 0
        %970 = vmatprep.subr.bf16.mxu0 0
        %971 = vmatpush1.bf16.xpose.msra.mxu0 %v954
        %972 = vmatprep.subr.bf16.mxu0 0
        %973 = vmatpush2.bf16.xpose.msra.mxu0 0
        %974 = vmatprep.subr.bf16.mxu0 0
        %975 = vmatpush2.bf16.xpose.msra.mxu0 0
        %976 = vmatprep.subr.bf16.mxu0 0
        %977 = vmatpush2.bf16.xpose.msra.mxu0 0
        %978 = vmatprep.subr.bf16.mxu0 0
        %979 = vmatpush2.bf16.xpose.msra.mxu0 0
        %980 = vmatprep.subr.bf16.mxu0 0
        %981 = vmatpush2.bf16.xpose.msra.mxu0 0
        %982 = vmatprep.subr.bf16.mxu0 0
        %983 = vmatpush2.bf16.xpose.msra.mxu0 0
        %984 = vmatprep.subr.bf16.mxu0 0
        %985 = vmatpush2.bf16.xpose.msra.mxu0 0
        %986 = vmatprep.subr.bf16.mxu0 0
        %987 = vmatpush2.bf16.xpose.msra.mxu0 0
        %988 = vmatprep.mubr.bf16.mxu0 0
        %989 = vmatmul.mubr.bf16.gmra.mxu0 %v951
        %v990 = vpop.f32.mrf.mxu0
        %v991 = vadd.f32 %v947, %v990
        %v992 = vpop.f32.mrf.mxu0
        %v993 = vpop.f32.mrf.mxu0
        %v994 = vpop.f32.mrf.mxu0
        %995 = vdwg.mxu0
        %v997 = vsel %vm949, %v596, 0
        %v1000 = vsel %vm949, %v766, 0
        %1002 = vmatprep.subr.bf16.mxu0 0
        %1003 = vmatpush1.bf16.xpose.msra.mxu0 0
        %1004 = vmatprep.subr.bf16.mxu0 0
        %1005 = vmatpush1.bf16.xpose.msra.mxu0 0
        %1006 = vmatprep.subr.bf16.mxu0 0
        %1007 = vmatpush1.bf16.xpose.msra.mxu0 0
        %1008 = vmatprep.subr.bf16.mxu0 0
        %1009 = vmatpush1.bf16.xpose.msra.mxu0 0
        %1010 = vmatprep.subr.bf16.mxu0 0
        %1011 = vmatpush1.bf16.xpose.msra.mxu0 0
        %1012 = vmatprep.subr.bf16.mxu0 0
        %1013 = vmatpush1.bf16.xpose.msra.mxu0 0
        %1014 = vmatprep.subr.bf16.mxu0 0
        %1015 = vmatpush1.bf16.xpose.msra.mxu0 0
        %1016 = vmatprep.subr.bf16.mxu0 0
        %1017 = vmatpush1.bf16.xpose.msra.mxu0 %v1000
        %1018 = vmatprep.subr.bf16.mxu0 0
        %1019 = vmatpush2.bf16.xpose.msra.mxu0 0
        %1020 = vmatprep.subr.bf16.mxu0 0
        %1021 = vmatpush2.bf16.xpose.msra.mxu0 0
        %1022 = vmatprep.subr.bf16.mxu0 0
        %1023 = vmatpush2.bf16.xpose.msra.mxu0 0
        %1024 = vmatprep.subr.bf16.mxu0 0
        %1025 = vmatpush2.bf16.xpose.msra.mxu0 0
        %1026 = vmatprep.subr.bf16.mxu0 0
        %1027 = vmatpush2.bf16.xpose.msra.mxu0 0
        %1028 = vmatprep.subr.bf16.mxu0 0
        %1029 = vmatpush2.bf16.xpose.msra.mxu0 0
        %1030 = vmatprep.subr.bf16.mxu0 0
        %1031 = vmatpush2.bf16.xpose.msra.mxu0 0
        %1032 = vmatprep.subr.bf16.mxu0 0
        %1033 = vmatpush2.bf16.xpose.msra.mxu0 0
        %1034 = vmatprep.mubr.bf16.mxu0 0
        %1035 = vmatmul.mubr.bf16.gmra.mxu0 %v997
        %v1036 = vpop.f32.mrf.mxu0
        %v1037 = vadd.f32 %v947, %v1036
        %v1038 = vpop.f32.mrf.mxu0
        %v1039 = vpop.f32.mrf.mxu0
        %v1040 = vpop.f32.mrf.mxu0
        %1041 = vdwg.mxu0
        %v1043 = vsel %vm949, %v599, 0
        %v1046 = vsel %vm949, %v769, 0
        %1048 = vmatprep.subr.bf16.mxu0 0
        %1049 = vmatpush1.bf16.xpose.msra.mxu0 0
        %1050 = vmatprep.subr.bf16.mxu0 0
        %1051 = vmatpush1.bf16.xpose.msra.mxu0 0
        %1052 = vmatprep.subr.bf16.mxu0 0
        %1053 = vmatpush1.bf16.xpose.msra.mxu0 0
        %1054 = vmatprep.subr.bf16.mxu0 0
        %1055 = vmatpush1.bf16.xpose.msra.mxu0 0
        %1056 = vmatprep.subr.bf16.mxu0 0
        %1057 = vmatpush1.bf16.xpose.msra.mxu0 0
        %1058 = vmatprep.subr.bf16.mxu0 0
        %1059 = vmatpush1.bf16.xpose.msra.mxu0 0
        %1060 = vmatprep.subr.bf16.mxu0 0
        %1061 = vmatpush1.bf16.xpose.msra.mxu0 0
        %1062 = vmatprep.subr.bf16.mxu0 0
        %1063 = vmatpush1.bf16.xpose.msra.mxu0 %v1046
        %1064 = vmatprep.subr.bf16.mxu0 0
        %1065 = vmatpush2.bf16.xpose.msra.mxu0 0
        %1066 = vmatprep.subr.bf16.mxu0 0
        %1067 = vmatpush2.bf16.xpose.msra.mxu0 0
        %1068 = vmatprep.subr.bf16.mxu0 0
        %1069 = vmatpush2.bf16.xpose.msra.mxu0 0
        %1070 = vmatprep.subr.bf16.mxu0 0
        %1071 = vmatpush2.bf16.xpose.msra.mxu0 0
        %1072 = vmatprep.subr.bf16.mxu0 0
        %1073 = vmatpush2.bf16.xpose.msra.mxu0 0
        %1074 = vmatprep.subr.bf16.mxu0 0
        %1075 = vmatpush2.bf16.xpose.msra.mxu0 0
        %1076 = vmatprep.subr.bf16.mxu0 0
        %1077 = vmatpush2.bf16.xpose.msra.mxu0 0
        %1078 = vmatprep.subr.bf16.mxu0 0
        %1079 = vmatpush2.bf16.xpose.msra.mxu0 0
        %1080 = vmatprep.mubr.bf16.mxu0 0
        %1081 = vmatmul.mubr.bf16.gmra.mxu0 %v1043
        %v1082 = vpop.f32.mrf.mxu0
        %v1083 = vadd.f32 %v947, %v1082
        %v1084 = vpop.f32.mrf.mxu0
        %v1085 = vpop.f32.mrf.mxu0
        %v1086 = vpop.f32.mrf.mxu0
        %1087 = vdwg.mxu0
        %v1089 = vsel %vm949, %v602, 0
        %v1092 = vsel %vm949, %v772, 0
        %1094 = vmatprep.subr.bf16.mxu0 0
        %1095 = vmatpush1.bf16.xpose.msra.mxu0 0
        %1096 = vmatprep.subr.bf16.mxu0 0
        %1097 = vmatpush1.bf16.xpose.msra.mxu0 0
        %1098 = vmatprep.subr.bf16.mxu0 0
        %1099 = vmatpush1.bf16.xpose.msra.mxu0 0
        %1100 = vmatprep.subr.bf16.mxu0 0
        %1101 = vmatpush1.bf16.xpose.msra.mxu0 0
        %1102 = vmatprep.subr.bf16.mxu0 0
        %1103 = vmatpush1.bf16.xpose.msra.mxu0 0
        %1104 = vmatprep.subr.bf16.mxu0 0
        %1105 = vmatpush1.bf16.xpose.msra.mxu0 0
        %1106 = vmatprep.subr.bf16.mxu0 0
        %1107 = vmatpush1.bf16.xpose.msra.mxu0 0
        %1108 = vmatprep.subr.bf16.mxu0 0
        %1109 = vmatpush1.bf16.xpose.msra.mxu0 %v1092
        %1110 = vmatprep.subr.bf16.mxu0 0
        %1111 = vmatpush2.bf16.xpose.msra.mxu0 0
        %1112 = vmatprep.subr.bf16.mxu0 0
        %1113 = vmatpush2.bf16.xpose.msra.mxu0 0
        %1114 = vmatprep.subr.bf16.mxu0 0
        %1115 = vmatpush2.bf16.xpose.msra.mxu0 0
        %1116 = vmatprep.subr.bf16.mxu0 0
        %1117 = vmatpush2.bf16.xpose.msra.mxu0 0
        %1118 = vmatprep.subr.bf16.mxu0 0
        %1119 = vmatpush2.bf16.xpose.msra.mxu0 0
        %1120 = vmatprep.subr.bf16.mxu0 0
        %1121 = vmatpush2.bf16.xpose.msra.mxu0 0
        %1122 = vmatprep.subr.bf16.mxu0 0
        %1123 = vmatpush2.bf16.xpose.msra.mxu0 0
        %1124 = vmatprep.subr.bf16.mxu0 0
        %1125 = vmatpush2.bf16.xpose.msra.mxu0 0
        %1126 = vmatprep.mubr.bf16.mxu0 0
        %1127 = vmatmul.mubr.bf16.gmra.mxu0 %v1089
        %v1128 = vpop.f32.mrf.mxu0
        %v1129 = vadd.f32 %v947, %v1128
        %v1130 = vpop.f32.mrf.mxu0
        %v1131 = vpop.f32.mrf.mxu0
        %v1132 = vpop.f32.mrf.mxu0
        %1133 = vdwg.mxu0
        %v1134 = vsel %vm949, %v991, -inf
        %1135 = vmax.xlane.f32.xlu0 %v1134
        %v1136 = vpop.xlane.xlu0 %1135
        %v1137 = vsel %vm949, %v1037, -inf
        %1138 = vmax.xlane.f32.xlu0 %v1137
        %v1139 = vpop.xlane.xlu0 %1138
        %v1140 = vsel %vm949, %v1083, -inf
        %1141 = vmax.xlane.f32.xlu0 %v1140
        %v1142 = vpop.xlane.xlu0 %1141
        %v1143 = vsel %vm949, %v1129, -inf
        %1144 = vmax.xlane.f32.xlu0 %v1143
        %v1145 = vpop.xlane.xlu0 %1144
        %v1146 = vsub.f32 %v991, %v1136
        %v1147 = vsub.f32 %v1037, %v1139
        %v1148 = vsub.f32 %v1083, %v1142
        %v1149 = vsub.f32 %v1129, %v1145
        %v1150 = vmul.f32 %v1146, 1.442695
        %v1151 = vpow.pop %v1150
        %v1152 = vmul.f32 %v1147, 1.442695
        %v1153 = vpow.pop %v1152
        %v1154 = vmul.f32 %v1148, 1.442695
        %v1155 = vpow.pop %v1154
        %v1156 = vmul.f32 %v1149, 1.442695
        %v1157 = vpow.pop %v1156
        %v1158 = vsel %vm949, %v1151, 0.0
        %1159 = vadd.xlane.f32.xlu0 %v1158
        %v1160 = vpop.xlane.xlu0 %1159
        %v1161 = vsel %vm949, %v1153, 0.0
        %1162 = vadd.xlane.f32.xlu0 %v1161
        %v1163 = vpop.xlane.xlu0 %1162
        %v1164 = vsel %vm949, %v1155, 0.0
        %1165 = vadd.xlane.f32.xlu0 %v1164
        %v1166 = vpop.xlane.xlu0 %1165
        %v1167 = vsel %vm949, %v1157, 0.0
        %1168 = vadd.xlane.f32.xlu0 %v1167
        %v1169 = vpop.xlane.xlu0 %1168
        %v1170 = vrcp.pop %v1160
        %v1171 = vrcp.pop %v1163
        %v1172 = vrcp.pop %v1166
        %v1173 = vrcp.pop %v1169
        %v1174 = vmul.f32 %v1160, %v1170
        %v1175 = vmul.f32 %v1163, %v1171
        %v1176 = vmul.f32 %v1166, %v1172
        %v1177 = vmul.f32 %v1169, %v1173
        %v1178 = vsub.f32 2.0, %v1174
        %v1179 = vsub.f32 2.0, %v1175
        %v1180 = vsub.f32 2.0, %v1176
        %v1181 = vsub.f32 2.0, %v1177
        %v1182 = vmul.f32 %v1170, %v1178
        %v1183 = vmul.f32 %v1171, %v1179
        %v1184 = vmul.f32 %v1172, %v1180
        %v1185 = vmul.f32 %v1173, %v1181
        %v1186 = vmul.f32 %v1151, %v1182
        %v1187 = vmul.f32 %v1153, %v1183
        %v1188 = vmul.f32 %v1155, %v1184
        %v1189 = vmul.f32 %v1157, %v1185
        %v1190 = vpack.c.bf16 %v1186, %v1186
        %v1191 = vpack.c.bf16 %v1187, %v1187
        %v1192 = vpack.c.bf16 %v1188, %v1188
        %v1193 = vpack.c.bf16 %v1189, %v1189
        %v1195 = vsel %vm949, %v1190, 0
        %vm1197 = vcmask 1043456
        %v1199 = vsel %vm1197, %v933, 0
        %1201 = vmatprep.subr.bf16.mxu0 0
        %1202 = vmatpush1.bf16.msra.mxu0 0
        %1203 = vmatprep.subr.bf16.mxu0 0
        %1204 = vmatpush1.bf16.msra.mxu0 0
        %1205 = vmatprep.subr.bf16.mxu0 0
        %1206 = vmatpush1.bf16.msra.mxu0 0
        %1207 = vmatprep.subr.bf16.mxu0 0
        %1208 = vmatpush1.bf16.msra.mxu0 0
        %1209 = vmatprep.subr.bf16.mxu0 0
        %1210 = vmatpush1.bf16.msra.mxu0 0
        %1211 = vmatprep.subr.bf16.mxu0 0
        %1212 = vmatpush1.bf16.msra.mxu0 0
        %1213 = vmatprep.subr.bf16.mxu0 0
        %1214 = vmatpush1.bf16.msra.mxu0 0
        %1215 = vmatprep.subr.bf16.mxu0 0
        %1216 = vmatpush1.bf16.msra.mxu0 %v1199
        %1217 = vmatprep.subr.bf16.mxu0 0
        %1218 = vmatpush2.bf16.msra.mxu0 0
        %1219 = vmatprep.subr.bf16.mxu0 0
        %1220 = vmatpush2.bf16.msra.mxu0 0
        %1221 = vmatprep.subr.bf16.mxu0 0
        %1222 = vmatpush2.bf16.msra.mxu0 0
        %1223 = vmatprep.subr.bf16.mxu0 0
        %1224 = vmatpush2.bf16.msra.mxu0 0
        %1225 = vmatprep.subr.bf16.mxu0 0
        %1226 = vmatpush2.bf16.msra.mxu0 0
        %1227 = vmatprep.subr.bf16.mxu0 0
        %1228 = vmatpush2.bf16.msra.mxu0 0
        %1229 = vmatprep.subr.bf16.mxu0 0
        %1230 = vmatpush2.bf16.msra.mxu0 0
        %1231 = vmatprep.subr.bf16.mxu0 0
        %1232 = vmatpush2.bf16.msra.mxu0 0
        %1233 = vmatprep.mubr.bf16.mxu0 0
        %1234 = vmatmul.mubr.bf16.gmra.mxu0 %v1195
        %v1235 = vpop.f32.mrf.mxu0
        %v1236 = vadd.f32 0.0, %v1235
        %v1237 = vpop.f32.mrf.mxu0
        %v1238 = vpop.f32.mrf.mxu0
        %v1239 = vpop.f32.mrf.mxu0
        %1240 = vdwg.mxu0
        %v1242 = vsel %vm949, %v1191, 0
        %v1245 = vsel %vm1197, %v936, 0
        %1247 = vmatprep.subr.bf16.mxu0 0
        %1248 = vmatpush1.bf16.msra.mxu0 0
        %1249 = vmatprep.subr.bf16.mxu0 0
        %1250 = vmatpush1.bf16.msra.mxu0 0
        %1251 = vmatprep.subr.bf16.mxu0 0
        %1252 = vmatpush1.bf16.msra.mxu0 0
        %1253 = vmatprep.subr.bf16.mxu0 0
        %1254 = vmatpush1.bf16.msra.mxu0 0
        %1255 = vmatprep.subr.bf16.mxu0 0
        %1256 = vmatpush1.bf16.msra.mxu0 0
        %1257 = vmatprep.subr.bf16.mxu0 0
        %1258 = vmatpush1.bf16.msra.mxu0 0
        %1259 = vmatprep.subr.bf16.mxu0 0
        %1260 = vmatpush1.bf16.msra.mxu0 0
        %1261 = vmatprep.subr.bf16.mxu0 0
        %1262 = vmatpush1.bf16.msra.mxu0 %v1245
        %1263 = vmatprep.subr.bf16.mxu0 0
        %1264 = vmatpush2.bf16.msra.mxu0 0
        %1265 = vmatprep.subr.bf16.mxu0 0
        %1266 = vmatpush2.bf16.msra.mxu0 0
        %1267 = vmatprep.subr.bf16.mxu0 0
        %1268 = vmatpush2.bf16.msra.mxu0 0
        %1269 = vmatprep.subr.bf16.mxu0 0
        %1270 = vmatpush2.bf16.msra.mxu0 0
        %1271 = vmatprep.subr.bf16.mxu0 0
        %1272 = vmatpush2.bf16.msra.mxu0 0
        %1273 = vmatprep.subr.bf16.mxu0 0
        %1274 = vmatpush2.bf16.msra.mxu0 0
        %1275 = vmatprep.subr.bf16.mxu0 0
        %1276 = vmatpush2.bf16.msra.mxu0 0
        %1277 = vmatprep.subr.bf16.mxu0 0
        %1278 = vmatpush2.bf16.msra.mxu0 0
        %1279 = vmatprep.mubr.bf16.mxu0 0
        %1280 = vmatmul.mubr.bf16.gmra.mxu0 %v1242
        %v1281 = vpop.f32.mrf.mxu0
        %v1282 = vadd.f32 0.0, %v1281
        %v1283 = vpop.f32.mrf.mxu0
        %v1284 = vpop.f32.mrf.mxu0
        %v1285 = vpop.f32.mrf.mxu0
        %1286 = vdwg.mxu0
        %v1288 = vsel %vm949, %v1192, 0
        %v1291 = vsel %vm1197, %v939, 0
        %1293 = vmatprep.subr.bf16.mxu0 0
        %1294 = vmatpush1.bf16.msra.mxu0 0
        %1295 = vmatprep.subr.bf16.mxu0 0
        %1296 = vmatpush1.bf16.msra.mxu0 0
        %1297 = vmatprep.subr.bf16.mxu0 0
        %1298 = vmatpush1.bf16.msra.mxu0 0
        %1299 = vmatprep.subr.bf16.mxu0 0
        %1300 = vmatpush1.bf16.msra.mxu0 0
        %1301 = vmatprep.subr.bf16.mxu0 0
        %1302 = vmatpush1.bf16.msra.mxu0 0
        %1303 = vmatprep.subr.bf16.mxu0 0
        %1304 = vmatpush1.bf16.msra.mxu0 0
        %1305 = vmatprep.subr.bf16.mxu0 0
        %1306 = vmatpush1.bf16.msra.mxu0 0
        %1307 = vmatprep.subr.bf16.mxu0 0
        %1308 = vmatpush1.bf16.msra.mxu0 %v1291
        %1309 = vmatprep.subr.bf16.mxu0 0
        %1310 = vmatpush2.bf16.msra.mxu0 0
        %1311 = vmatprep.subr.bf16.mxu0 0
        %1312 = vmatpush2.bf16.msra.mxu0 0
        %1313 = vmatprep.subr.bf16.mxu0 0
        %1314 = vmatpush2.bf16.msra.mxu0 0
        %1315 = vmatprep.subr.bf16.mxu0 0
        %1316 = vmatpush2.bf16.msra.mxu0 0
        %1317 = vmatprep.subr.bf16.mxu0 0
        %1318 = vmatpush2.bf16.msra.mxu0 0
        %1319 = vmatprep.subr.bf16.mxu0 0
        %1320 = vmatpush2.bf16.msra.mxu0 0
        %1321 = vmatprep.subr.bf16.mxu0 0
        %1322 = vmatpush2.bf16.msra.mxu0 0
        %1323 = vmatprep.subr.bf16.mxu0 0
        %1324 = vmatpush2.bf16.msra.mxu0 0
        %1325 = vmatprep.mubr.bf16.mxu0 0
        %1326 = vmatmul.mubr.bf16.gmra.mxu0 %v1288
        %v1327 = vpop.f32.mrf.mxu0
        %v1328 = vadd.f32 0.0, %v1327
        %v1329 = vpop.f32.mrf.mxu0
        %v1330 = vpop.f32.mrf.mxu0
        %v1331 = vpop.f32.mrf.mxu0
        %1332 = vdwg.mxu0
        %v1334 = vsel %vm949, %v1193, 0
        %v1337 = vsel %vm1197, %v942, 0
        %1339 = vmatprep.subr.bf16.mxu0 0
        %1340 = vmatpush1.bf16.msra.mxu0 0
        %1341 = vmatprep.subr.bf16.mxu0 0
        %1342 = vmatpush1.bf16.msra.mxu0 0
        %1343 = vmatprep.subr.bf16.mxu0 0
        %1344 = vmatpush1.bf16.msra.mxu0 0
        %1345 = vmatprep.subr.bf16.mxu0 0
        %1346 = vmatpush1.bf16.msra.mxu0 0
        %1347 = vmatprep.subr.bf16.mxu0 0
        %1348 = vmatpush1.bf16.msra.mxu0 0
        %1349 = vmatprep.subr.bf16.mxu0 0
        %1350 = vmatpush1.bf16.msra.mxu0 0
        %1351 = vmatprep.subr.bf16.mxu0 0
        %1352 = vmatpush1.bf16.msra.mxu0 0
        %1353 = vmatprep.subr.bf16.mxu0 0
        %1354 = vmatpush1.bf16.msra.mxu0 %v1337
        %1355 = vmatprep.subr.bf16.mxu0 0
        %1356 = vmatpush2.bf16.msra.mxu0 0
        %1357 = vmatprep.subr.bf16.mxu0 0
        %1358 = vmatpush2.bf16.msra.mxu0 0
        %1359 = vmatprep.subr.bf16.mxu0 0
        %1360 = vmatpush2.bf16.msra.mxu0 0
        %1361 = vmatprep.subr.bf16.mxu0 0
        %1362 = vmatpush2.bf16.msra.mxu0 0
        %1363 = vmatprep.subr.bf16.mxu0 0
        %1364 = vmatpush2.bf16.msra.mxu0 0
        %1365 = vmatprep.subr.bf16.mxu0 0
        %1366 = vmatpush2.bf16.msra.mxu0 0
        %1367 = vmatprep.subr.bf16.mxu0 0
        %1368 = vmatpush2.bf16.msra.mxu0 0
        %1369 = vmatprep.subr.bf16.mxu0 0
        %1370 = vmatpush2.bf16.msra.mxu0 0
        %1371 = vmatprep.mubr.bf16.mxu0 0
        %1372 = vmatmul.mubr.bf16.gmra.mxu0 %v1334
        %v1373 = vpop.f32.mrf.mxu0
        %v1374 = vadd.f32 0.0, %v1373
        %v1375 = vpop.f32.mrf.mxu0
        %v1376 = vpop.f32.mrf.mxu0
        %v1377 = vpop.f32.mrf.mxu0
        %1378 = vdwg.mxu0
        %v1379 = vcombine.low %v1236, %v1328
        %v1380 = vcombine.high %v1236, %v1328
        %v1382 = vunpack.c.l.s4 1983009808
        %v1383 = vunpack.c.0.s8 %v1382
        %v1384 = vlaneseq
        %v1385 = vshrl.u32 %v1384, 7
        %v1386 = vsub.s32 %v1383, %v1385
        %v1387 = vrot.slane %v1379, %v1386
        %v1389 = vunpack.c.l.s4 1983009808
        %v1390 = vunpack.c.0.s8 %v1389
        %v1391 = vlaneseq
        %v1392 = vshrl.u32 %v1391, 7
        %v1393 = vsub.s32 %v1390, %v1392
        %v1394 = vrot.slane %v1380, %v1393
        %v1395 = vcombine.low %v1282, %v1374
        %v1396 = vcombine.high %v1282, %v1374
        %v1398 = vunpack.c.l.s4 1983009808
        %v1399 = vunpack.c.0.s8 %v1398
        %v1400 = vlaneseq
        %v1401 = vshrl.u32 %v1400, 7
        %v1402 = vsub.s32 %v1399, %v1401
        %v1403 = vrot.slane %v1395, %v1402
        %v1405 = vunpack.c.l.s4 1983009808
        %v1406 = vunpack.c.0.s8 %v1405
        %v1407 = vlaneseq
        %v1408 = vshrl.u32 %v1407, 7
        %v1409 = vsub.s32 %v1406, %v1408
        %v1410 = vrot.slane %v1396, %v1409
        %v1411 = vcombine.low %v1387, %v1403
        %v1412 = vcombine.high %v1387, %v1403
        %v1414 = vunpack.c.l.s4 1934713408
        %v1415 = vunpack.c.0.s8 %v1414
        %v1416 = vlaneseq
        %v1417 = vshrl.u32 %v1416, 7
        %v1418 = vsub.s32 %v1415, %v1417
        %v1419 = vrot.slane %v1411, %v1418
        %v1421 = vunpack.c.l.s4 1934713408
        %v1422 = vunpack.c.0.s8 %v1421
        %v1423 = vlaneseq
        %v1424 = vshrl.u32 %v1423, 7
        %v1425 = vsub.s32 %v1422, %v1424
        %v1426 = vrot.slane %v1412, %v1425
        %v1427 = vcombine.low %v1394, %v1410
        %v1428 = vcombine.high %v1394, %v1410
        %v1430 = vunpack.c.l.s4 1934713408
        %v1431 = vunpack.c.0.s8 %v1430
        %v1432 = vlaneseq
        %v1433 = vshrl.u32 %v1432, 7
        %v1434 = vsub.s32 %v1431, %v1433
        %v1435 = vrot.slane %v1427, %v1434
        %v1437 = vunpack.c.l.s4 1934713408
        %v1438 = vunpack.c.0.s8 %v1437
        %v1439 = vlaneseq
        %v1440 = vshrl.u32 %v1439, 7
        %v1441 = vsub.s32 %v1438, %v1440
        %v1442 = vrot.slane %v1428, %v1441
        %v1443 = vcombine.high %v1419, 0.0
        %v1444 = vcombine.high %v1426, 0.0
        %v1445 = vcombine.high %v1435, 0.0
        %v1446 = vcombine.high %v1442, 0.0
        %v1447 = vcombine.low %v1419, %v1426
        %v1449 = vunpack.c.l.s4 1983009808
        %v1450 = vunpack.c.0.s8 %v1449
        %v1451 = vlaneseq
        %v1452 = vshrl.u32 %v1451, 7
        %v1453 = vsub.s32 %v1450, %v1452
        %v1454 = vrot.slane %v1447, %v1453
        %v1455 = vcombine.low %v1443, %v1444
        %v1457 = vunpack.c.l.s4 1983009808
        %v1458 = vunpack.c.0.s8 %v1457
        %v1459 = vlaneseq
        %v1460 = vshrl.u32 %v1459, 7
        %v1461 = vsub.s32 %v1458, %v1460
        %v1462 = vrot.slane %v1455, %v1461
        %v1463 = vcombine.low %v1435, %v1442
        %v1465 = vunpack.c.l.s4 1983009808
        %v1466 = vunpack.c.0.s8 %v1465
        %v1467 = vlaneseq
        %v1468 = vshrl.u32 %v1467, 7
        %v1469 = vsub.s32 %v1466, %v1468
        %v1470 = vrot.slane %v1463, %v1469
        %v1471 = vcombine.low %v1445, %v1446
        %v1473 = vunpack.c.l.s4 1983009808
        %v1474 = vunpack.c.0.s8 %v1473
        %v1475 = vlaneseq
        %v1476 = vshrl.u32 %v1475, 7
        %v1477 = vsub.s32 %v1474, %v1476
        %v1478 = vrot.slane %v1471, %v1477
        %v1479 = vcombine.low %v1454, %v1462
        %v1480 = vcombine.high %v1454, %v1462
        %v1482 = vunpack.c.l.s4 1934713408
        %v1483 = vunpack.c.0.s8 %v1482
        %v1484 = vlaneseq
        %v1485 = vshrl.u32 %v1484, 7
        %v1486 = vsub.s32 %v1483, %v1485
        %v1487 = vrot.slane %v1479, %v1486
        %v1489 = vunpack.c.l.s4 1934713408
        %v1490 = vunpack.c.0.s8 %v1489
        %v1491 = vlaneseq
        %v1492 = vshrl.u32 %v1491, 7
        %v1493 = vsub.s32 %v1490, %v1492
        %v1494 = vrot.slane %v1480, %v1493
        %v1495 = vcombine.low %v1470, %v1478
        %v1496 = vcombine.high %v1470, %v1478
        %v1498 = vunpack.c.l.s4 1934713408
        %v1499 = vunpack.c.0.s8 %v1498
        %v1500 = vlaneseq
        %v1501 = vshrl.u32 %v1500, 7
        %v1502 = vsub.s32 %v1499, %v1501
        %v1503 = vrot.slane %v1495, %v1502
        %v1505 = vunpack.c.l.s4 1934713408
        %v1506 = vunpack.c.0.s8 %v1505
        %v1507 = vlaneseq
        %v1508 = vshrl.u32 %v1507, 7
        %v1509 = vsub.s32 %v1506, %v1508
        %v1510 = vrot.slane %v1496, %v1509
        %v1511 = vcombine.low %v1487, %v1503
        %v1512 = vcombine.high %v1487, %v1503
        %v1513 = vcombine.low %v1494, %v1510
        %v1514 = vcombine.high %v1494, %v1510
        %1516 = vrot.lane.b32.xlu0 %v1512, 8
        %v1517 = vpop.permute.xlu0 %1516
        %1520 = vrot.lane.b32.xlu0 %v1513, 16
        %v1521 = vpop.permute.xlu0 %1520
        %1524 = vrot.lane.b32.xlu0 %v1514, 24
        %v1525 = vpop.permute.xlu0 %1524
        %v1527 = vsel %vm949, %v1511, %v1517
        %vm1528 = vcmask 130048
        %v1529 = vsel %vm1528, %v1527, %v1521
        %vm1530 = vcmask 195584
        %v1531 = vsel %vm1530, %v1529, %v1525
        %v1532 = vpack.c.bf16 %v1531, %v1531
        %v1533 = vld [vmem:[#allocation7] sm:$0xf]
        %v1534 = vld [vmem:[#allocation7 + $0x4] sm:$0xf]
        %v1535 = vld [vmem:[#allocation7 + $0x8] sm:$0xf]
        %v1536 = vld [vmem:[#allocation7 + $0xc] sm:$0xf]
        %v1537 = vld [vmem:[%s4] sm:$0x1]
        %v1539 = vlaneseq
        %v1540 = vshrl.u32 %v1539, 7
        %v1541 = vsub.s32 0, %v1540
        %v1542 = vrot.slane %v1537, %v1541
        %v1548 = vunpack.c.l.b16 %v1533
        %v1549 = vunpack.c.l.b16 %v1534
        %v1550 = vunpack.c.l.b16 %v1535
        %v1551 = vunpack.c.l.b16 %v1536
        %v1552 = vpack.c.b16 %v1549, %v1548
        %v1553 = vpack.c.b16 %v1551, %v1550
        %v1557 = vsel %vm389, %v1532, 0
        %1559 = vmatprep.subr.bf16.mxu0 0
        %1560 = vmatpush1.bf16.msra.mxu0 0
        %1561 = vmatprep.subr.bf16.mxu0 0
        %1562 = vmatpush1.bf16.msra.mxu0 0
        %1563 = vmatprep.subr.bf16.mxu0 0
        %1564 = vmatpush1.bf16.msra.mxu0 0
        %1565 = vmatprep.subr.bf16.mxu0 0
        %1566 = vmatpush1.bf16.msra.mxu0 0
        %1567 = vmatprep.subr.bf16.mxu0 0
        %1568 = vmatpush1.bf16.msra.mxu0 0
        %1569 = vmatprep.subr.bf16.mxu0 0
        %1570 = vmatpush1.bf16.msra.mxu0 0
        %1571 = vmatprep.subr.bf16.mxu0 0
        %1572 = vmatpush1.bf16.msra.mxu0 %v1553
        %1573 = vmatprep.subr.bf16.mxu0 0
        %1574 = vmatpush1.bf16.msra.mxu0 %v1552
        %1575 = vmatprep.subr.bf16.mxu0 0
        %1576 = vmatpush2.bf16.msra.mxu0 0
        %1577 = vmatprep.subr.bf16.mxu0 0
        %1578 = vmatpush2.bf16.msra.mxu0 0
        %1579 = vmatprep.subr.bf16.mxu0 0
        %1580 = vmatpush2.bf16.msra.mxu0 0
        %1581 = vmatprep.subr.bf16.mxu0 0
        %1582 = vmatpush2.bf16.msra.mxu0 0
        %1583 = vmatprep.subr.bf16.mxu0 0
        %1584 = vmatpush2.bf16.msra.mxu0 0
        %1585 = vmatprep.subr.bf16.mxu0 0
        %1586 = vmatpush2.bf16.msra.mxu0 0
        %1587 = vmatprep.subr.bf16.mxu0 0
        %1588 = vmatpush2.bf16.msra.mxu0 0
        %1589 = vmatprep.subr.bf16.mxu0 0
        %1590 = vmatpush2.bf16.msra.mxu0 0
        %1591 = vmatprep.mubr.bf16.mxu0 0
        %1592 = vmatmul.mubr.bf16.gmra.mxu0 %v1557
        %v1593 = vpop.f32.mrf.mxu0
        %v1594 = vadd.f32 %v1542, %v1593
        %v1595 = vpop.f32.mrf.mxu0
        %v1596 = vpop.f32.mrf.mxu0
        %v1597 = vpop.f32.mrf.mxu0
        %1598 = vdwg.mxu0
        %v1599 = vunpack.c.l.bf16 %v365
        %v1600 = vadd.f32 %v1594, %v1599
        %v1601 = vld [vmem:[%s5] sm:$0x1]
        %v1602 = vld [vmem:[%s6] sm:$0x1]
        %v1603 = vsel %vm389, %v1600, 0.0
        %1604 = vadd.xlane.f32.xlu0 %v1603
        %v1605 = vpop.xlane.xlu0 %1604
        %v1606 = vrcp.pop 32.0
        %v1607 = vmul.f32 %v1605, %v1606
        %v1608 = vsub.f32 %v1600, %v1607
        %v1609 = vmul.f32 %v1608, %v1608
        %v1610 = vsel %vm389, %v1609, 0.0
        %1611 = vadd.xlane.f32.xlu0 %v1610
        %v1612 = vpop.xlane.xlu0 %1611
        %v1613 = vmul.f32 %v1612, %v1606
        %v1614 = vadd.f32 %v1613, 1e-12
        %v1615 = vrsqrt.pop %v1614
        %v1616 = vmul.f32 %v1608, %v1615
        %v1618 = vlaneseq
        %v1619 = vshrl.u32 %v1618, 7
        %v1620 = vsub.s32 0, %v1619
        %v1621 = vrot.slane %v1601, %v1620
        %v1623 = vmul.f32 %v1616, %v1621
        %v1625 = vlaneseq
        %v1626 = vshrl.u32 %v1625, 7
        %v1627 = vsub.s32 0, %v1626
        %v1628 = vrot.slane %v1602, %v1627
        %v1630 = vadd.f32 %v1623, %v1628
        %v1631 = vpack.c.bf16 %v1630, %v1630
        %vm1632 = vcmask 257024
        %1633 = vst.msk [vmem:[%s360] sm:$0xf] %vm1632, %v1631
        %s1634 = sand.u32 %s212, 1
        %s1635 = scalar_lea.sflag [#allocation4], %s1634
        %s1636 = sand.u32 %s212, 1
        %s1637 = smul.addr %s1636, 4
        %s1638 = scalar_lea.vmem [#allocation8], %s1637
        // Predicated region
        $region65: #{tpu_custom_call.1} parent=51 // pred_check
          %p1639 = pneg %p222
        $region66: #{tpu_custom_call.1} parent=51 // pred_check_branch
          %1641 = sbr.rel (%p1639) target = $region68
        $region67: #{tpu_custom_call.1} parent=51 // pred_region
          %s1643 = ssub.s32 64, 64
          %1644 = vsyncadd %s1635, %s1643
          %s1645 = smul.addr %s26, 64
          %s1646 = scalar_lea.hbm %s8, %s1645
          %s1648 = sshll.u32 %s1638, 4
          %s1649 = int_to_ptr.vmem [resolvable:$true] %s1648
          %1651 = dma.vmem_to_hbm [thread:$0]  %s1649, 64, %s1646, %s1635
        $region68: #{tpu_custom_call.1} parent=51 // pred_fallthru
          _
      $region52: #{tpu_custom_call.1} parent=5 // pred_fallthru
        _
      %p1652 = scmp.le.s32.totalorder 2, %s21
      // Predicated region
      $region69: #{tpu_custom_call.1} parent=5 // pred_check
        %p1653 = pneg %p1652
      $region70: #{tpu_custom_call.1} parent=5 // pred_check_branch
        %1655 = sbr.rel (%p1653) target = $region72
      $region71: #{tpu_custom_call.1} parent=5 // pred_region
        %s1656 = ssub.s32 %s21, 2
        // Predicated region
        $region73: #{tpu_custom_call.1} parent=71 // pred_check
          %p1657 = pneg %p228
        $region74: #{tpu_custom_call.1} parent=71 // pred_check_branch
          %1659 = sbr.rel (%p1657) target = $region76
        $region75: #{tpu_custom_call.1} parent=71 // pred_region
          %s1660 = sand.u32 %s213, 1
          %s1661 = scalar_lea.sflag [#allocation4], %s1660
          %s1662 = sand.u32 %s213, 1
          %s1663 = smul.addr %s1662, 4
          %s1664 = scalar_lea.vmem [#allocation8], %s1663
          %1665 = dma.done %s1661, 64
        $region76: #{tpu_custom_call.1} parent=71 // pred_fallthru
          _
      $region72: #{tpu_custom_call.1} parent=5 // pred_fallthru
        _
    $region6: #{tpu_custom_call.1} parent=1 // loop_footer
      %s25 = sadd.s32 1, %s21
    $region7: #{tpu_custom_call.1} parent=1 // loop_footer_branch
      %20 = sbr.rel target = $region3
    $region8: #{tpu_custom_call.1} parent=1 // loop_exit
      _
    %1666 = vsyncpa [#allocation3], 1
    %s1667 = scalar_lea.sflag [#allocation3], 1
    %1668 = vsyncpa %s1667, 1
    %1669 = vsyncpa [#allocation6], 1
    %1670 = vsyncpa [#allocation4], 1
    %s1671 = scalar_lea.sflag [#allocation4], 1
    %1672 = vsyncpa %s1671, 1

</llo_original>
